<compile_context>
chip_gen: v6e
topology: v6e:2x2x1
jax: 0.10.0
libtpu: 0.0.40
codegen_flags: <defaults>
</compile_context>

<pallas_src>
import math
import functools

import jax
import jax.numpy as jnp
from jax.experimental import pallas as pl
from jax.experimental.pallas import tpu as pltpu


# ----------------------------------------------------------------------------
# Fused forward kernel: proj_enc -> encoder LSTM -> decoder LSTM -> proj_dec
# ----------------------------------------------------------------------------
def _fclstm_kernel(
    x_ref,                                   # [T*B, Din]  (time-major, flattened)
    pe_w1, pe_b1, pe_w2, pe_b2, pe_w3, pe_b3,
    enc_wx, enc_wh, enc_b,                   # [L, H, 4H], [L, H, 4H], [L, 1, 4H]
    dec_wx, dec_wh, dec_b,                   # [L, H, 4H], [L, H, 4H], [L, 1, 4H]
    pd_w1, pd_b1, pd_w2, pd_b2, pd_w3, pd_b3,
    out_ref,                                 # [n_pred*B, Dout]
    dec_scr,                                 # [n_pred*B, H] VMEM staging buffer
    *, n_hist, n_pred, batch,
):
    L, H, H4 = enc_wx.shape
    B = batch
    T = n_hist
    f32 = jnp.float32

    # ---- projector_encode, batched over the full history (3 dots at M=T*B) ----
    y = jnp.dot(x_ref[...], pe_w1[...], preferred_element_type=f32) + pe_b1[...]
    y = jnp.dot(y, pe_w2[...], preferred_element_type=f32) + pe_b2[...]
    y = jnp.dot(y, pe_w3[...], preferred_element_type=f32) + pe_b3[...]   # [T*B, H]

    # ---- hoist loop-invariant weights; pre-broadcast biases once ----
    enc_wx_l = [enc_wx[l] for l in range(L)]
    enc_wh_l = [enc_wh[l] for l in range(L)]
    dec_wx_l = [dec_wx[l] for l in range(L)]
    dec_wh_l = [dec_wh[l] for l in range(L)]
    enc_b_bc = [None] + [jnp.broadcast_to(enc_b[l], (B, H4)) for l in range(1, L)]
    dec_b_bc = [jnp.broadcast_to(dec_b[l], (B, H4)) for l in range(L)]

    # ---- cuDNN-style: encoder layer-0 input contribution (+ bias) for all T
    #      steps in one MXU dot, off the recurrence path ----
    enc0_gates = (jnp.dot(y, enc_wx_l[0], preferred_element_type=f32)
                  + enc_b[0])                                            # [T*B, 4H]

    # gate order is (i, f, o, g): sigmoid only over the first 3H lanes.
    def lstm_act(gates, c_prev):
        sig = jax.nn.sigmoid(gates[:, :3 * H])
        i = sig[:, 0:H]
        f = sig[:, H:2 * H]
        o = sig[:, 2 * H:3 * H]
        g = jnp.tanh(gates[:, 3 * H:])
        c_new = f * c_prev + i * g
        h_new = o * jnp.tanh(c_new)
        return h_new, c_new

    zeros_bh = jnp.zeros((B, H), f32)
    h = [zeros_bh] * L
    c = [zeros_bh] * L

    # -------- encoder recurrence (fully unrolled; state lives in vregs) --------
    for t in range(T):
        g0 = enc0_gates[t * B:(t + 1) * B, :] + jnp.dot(
            h[0], enc_wh_l[0], preferred_element_type=f32)
        h[0], c[0] = lstm_act(g0, c[0])
        for l in range(1, L):
            gl = (jnp.dot(h[l - 1], enc_wx_l[l], preferred_element_type=f32)
                  + jnp.dot(h[l], enc_wh_l[l], preferred_element_type=f32)
                  + enc_b_bc[l])
            h[l], c[l] = lstm_act(gl, c[l])

    # -------- decoder: autoregressive feedback of the raw top-layer h ----------
    y_fb = zeros_bh
    for t in range(n_pred):
        x_in = y_fb
        for l in range(L):
            gl = (jnp.dot(x_in, dec_wx_l[l], preferred_element_type=f32)
                  + jnp.dot(h[l], dec_wh_l[l], preferred_element_type=f32)
                  + dec_b_bc[l])
            h[l], c[l] = lstm_act(gl, c[l])
            x_in = h[l]
        y_fb = x_in
        dec_scr[pl.ds(t * B, B), :] = y_fb    # staging store, off the recurrence chain

    # ---- projector_decode, batched over all predictions; single output store ----
    z = dec_scr[...]                                                      # [n_pred*B, H]
    z = jnp.dot(z, pd_w1[...], preferred_element_type=f32) + pd_b1[...]
    z = jnp.dot(z, pd_w2[...], preferred_element_type=f32) + pd_b2[...]
    z = jnp.dot(z, pd_w3[...], preferred_element_type=f32) + pd_b3[...]
    out_ref[...] = z


# ----------------------------------------------------------------------------
# Full FCLSTM_BNode forward (inference path) — one grid-less pallas_call
# ----------------------------------------------------------------------------
def fclstm_bnode_forward(x, params, n_pred):
    B, n_hist, N, D = x.shape
    Din = N * D
    # [B, n_hist, N, D] -> [n_hist*B, N*D]  (time-major rows, matches torch transpose/reshape)
    x_flat = jnp.transpose(x, (1, 0, 2, 3)).reshape(n_hist * B, Din)

    (pe1w, pe1b), (pe2w, pe2b), (pe3w, pe3b) = params['proj_enc']
    (pd1w, pd1b), (pd2w, pd2b), (pd3w, pd3b) = params['proj_dec']
    enc_wx, enc_wh, enc_b = params['enc_lstm']
    dec_wx, dec_wh, dec_b = params['dec_lstm']
    H = enc_wx.shape[1]

    args = (x_flat,
            pe1w, pe1b, pe2w, pe2b, pe3w, pe3b,
            enc_wx, enc_wh, enc_b, dec_wx, dec_wh, dec_b,
            pd1w, pd1b, pd2w, pd2b, pd3w, pd3b)

    out = pl.pallas_call(
        functools.partial(_fclstm_kernel, n_hist=n_hist, n_pred=n_pred, batch=B),
        out_shape=jax.ShapeDtypeStruct((n_pred * B, Din), jnp.float32),
        in_specs=[pl.BlockSpec(memory_space=pltpu.MemorySpace.VMEM)] * len(args),
        out_specs=pl.BlockSpec(memory_space=pltpu.MemorySpace.VMEM),
        scratch_shapes=[pltpu.VMEM((n_pred * B, H), jnp.float32)],
    )(*args)

    # [n_pred*B, Din] -> [B, n_pred, N, D]
    return jnp.transpose(out.reshape(n_pred, B, Din), (1, 0, 2)).reshape(B, n_pred, N, D)


# ----------------------------------------------------------------------------
# Deterministic parameter initialization (same logical shapes as torch module;
# LSTM weights stored pre-transposed and split: W_x [L,H,4H], W_h [L,H,4H],
# combined bias (b_ih + b_hh) [L,1,4H], gate order (i, f, o, g)).
# ----------------------------------------------------------------------------
def init_params(key, hidden_size, h1, h2, n_layers, input_dim, node_num):
    keys = jax.random.split(key, 8)

    def lin(k, fan_in, fan_out):
        kw, kb = jax.random.split(k)
        bound = 1.0 / math.sqrt(fan_in)
        w = jax.random.uniform(kw, (fan_in, fan_out), jnp.float32, -bound, bound)
        b = jax.random.uniform(kb, (1, fan_out), jnp.float32, -bound, bound)
        return w, b

    def lstm(k, L, H):
        ks = jax.random.split(k, 4)
        bound = 1.0 / math.sqrt(H)
        wx = jax.random.uniform(ks[0], (L, H, 4 * H), jnp.float32, -bound, bound)
        wh = jax.random.uniform(ks[1], (L, H, 4 * H), jnp.float32, -bound, bound)
        b = (jax.random.uniform(ks[2], (L, 1, 4 * H), jnp.float32, -bound, bound)
             + jax.random.uniform(ks[3], (L, 1, 4 * H), jnp.float32, -bound, bound))
        return wx, wh, b

    Din = input_dim * node_num
    return {
        'proj_enc': [lin(keys[0], Din, h1), lin(keys[1], h1, h2),
                     lin(keys[2], h2, hidden_size)],
        'proj_dec': [lin(keys[3], hidden_size, h2), lin(keys[4], h2, h1),
                     lin(keys[5], h1, Din)],
        'enc_lstm': lstm(keys[6], n_layers, hidden_size),
        'dec_lstm': lstm(keys[7], n_layers, hidden_size),
    }


# ----------------------------------------------------------------------------
# Pure-JAX reference for verification
# ----------------------------------------------------------------------------
def reference_forward(x, params, n_pred):
    B, n_hist, N, D = x.shape
    y = jnp.transpose(x, (1, 0, 2, 3)).reshape(n_hist, B, N * D)
    for w, b in params['proj_enc']:
        y = y @ w + b
    H = y.shape[-1]

    def cell(x_in, h, c, wx, wh, b):
        g = x_in @ wx + h @ wh + b
        i = jax.nn.sigmoid(g[:, :H])
        f = jax.nn.sigmoid(g[:, H:2 * H])
        o = jax.nn.sigmoid(g[:, 2 * H:3 * H])
        gg = jnp.tanh(g[:, 3 * H:])
        c2 = f * c + i * gg
        return o * jnp.tanh(c2), c2

    enc_wx, enc_wh, enc_b = params['enc_lstm']
    L = enc_wx.shape[0]
    h = [jnp.zeros((B, H), jnp.float32) for _ in range(L)]
    c = [jnp.zeros((B, H), jnp.float32) for _ in range(L)]
    for t in range(n_hist):
        xin = y[t]
        for l in range(L):
            h[l], c[l] = cell(xin, h[l], c[l], enc_wx[l], enc_wh[l], enc_b[l])
            xin = h[l]

    dec_wx, dec_wh, dec_b = params['dec_lstm']
    xin = jnp.zeros((B, H), jnp.float32)
    outs = []
    for t in range(n_pred):
        for l in range(L):
            h[l], c[l] = cell(xin, h[l], c[l], dec_wx[l], dec_wh[l], dec_b[l])
            xin = h[l]
        outs.append(xin)
    dec = jnp.stack(outs)                                   # [n_pred, B, H]

    y = jnp.transpose(dec, (1, 0, 2))                       # [B, n_pred, H]
    for w, b in params['proj_dec']:
        y = y @ w + b
    return y.reshape(B, n_pred, N, D)


if __name__ == "__main__":
    # Module hyper-params (small, consistent with the forward pass)
    n_hist, n_pred = 8, 4
    hidden_size, hidden_layer1, hidden_layer2 = 32, 64, 48
    n_rnn_layers = 2
    input_dim, node_num = 2, 4
    B = 2

    key = jax.random.PRNGKey(0)
    kx, kp = jax.random.split(key)
    x = jax.random.normal(kx, (B, n_hist, node_num, input_dim), jnp.float32)
    params = init_params(kp, hidden_size, hidden_layer1, hidden_layer2,
                         n_rnn_layers, input_dim, node_num)

    fwd = jax.jit(functools.partial(fclstm_bnode_forward, n_pred=n_pred))
    out = jax.block_until_ready(fwd(x, params))
    assert out.shape == (B, n_pred, node_num, input_dim), out.shape

    ref = reference_forward(x, params, n_pred)
    err = float(jnp.max(jnp.abs(out - ref)))
    assert err < 1e-4, f"mismatch vs reference, max abs err = {err}"

    print("KERNEL_OK")
</pallas_src>

<mosaic_0001>
module attributes {stable_mosaic.version = 11 : i64} {
  func.func @_fclstm_kernel(%arg0: memref<16x8xf32, #tpu.memory_space<vmem>>, %arg1: memref<8x64xf32, #tpu.memory_space<vmem>>, %arg2: memref<1x64xf32, #tpu.memory_space<vmem>>, %arg3: memref<64x48xf32, #tpu.memory_space<vmem>>, %arg4: memref<1x48xf32, #tpu.memory_space<vmem>>, %arg5: memref<48x32xf32, #tpu.memory_space<vmem>>, %arg6: memref<1x32xf32, #tpu.memory_space<vmem>>, %arg7: memref<2x32x128xf32, #tpu.memory_space<vmem>>, %arg8: memref<2x32x128xf32, #tpu.memory_space<vmem>>, %arg9: memref<2x1x128xf32, #tpu.memory_space<vmem>>, %arg10: memref<2x32x128xf32, #tpu.memory_space<vmem>>, %arg11: memref<2x32x128xf32, #tpu.memory_space<vmem>>, %arg12: memref<2x1x128xf32, #tpu.memory_space<vmem>>, %arg13: memref<32x48xf32, #tpu.memory_space<vmem>>, %arg14: memref<1x48xf32, #tpu.memory_space<vmem>>, %arg15: memref<48x64xf32, #tpu.memory_space<vmem>>, %arg16: memref<1x64xf32, #tpu.memory_space<vmem>>, %arg17: memref<64x8xf32, #tpu.memory_space<vmem>>, %arg18: memref<1x8xf32, #tpu.memory_space<vmem>>, %arg19: memref<8x8xf32, #tpu.memory_space<vmem>>, %arg20: memref<8x32xf32, #tpu.memory_space<vmem>>) attributes {dimension_semantics = [], scalar_prefetch = 0 : i64, scratch_operands = 1 : i64, tpu.core_type = #tpu.core_type<tc>} {
    %c0 = arith.constant 0 : index
    %c0_0 = arith.constant 0 : index
    %0 = vector.load %arg0[%c0, %c0_0] : memref<16x8xf32, #tpu.memory_space<vmem>>, vector<16x8xf32>
    %c0_1 = arith.constant 0 : index
    %c0_2 = arith.constant 0 : index
    %1 = vector.load %arg1[%c0_1, %c0_2] : memref<8x64xf32, #tpu.memory_space<vmem>>, vector<8x64xf32>
    %cst = arith.constant dense<0.000000e+00> : vector<16x64xf32>
    %2 = tpu.matmul %0, %1, %cst {dimension_numbers = #tpu.dot_dimension_numbers<[1], [0], [0], [1], [0, 0, 1, 1], [], []>} : vector<16x8xf32>, vector<8x64xf32>, vector<16x64xf32> -> vector<16x64xf32>
    %c0_3 = arith.constant 0 : index
    %c0_4 = arith.constant 0 : index
    %3 = vector.load %arg2[%c0_3, %c0_4] : memref<1x64xf32, #tpu.memory_space<vmem>>, vector<1x64xf32>
    %4 = vector.broadcast %3 : vector<1x64xf32> to vector<16x64xf32>
    %5 = arith.addf %2, %4 : vector<16x64xf32>
    %c0_5 = arith.constant 0 : index
    %c0_6 = arith.constant 0 : index
    %6 = vector.load %arg3[%c0_5, %c0_6] : memref<64x48xf32, #tpu.memory_space<vmem>>, vector<64x48xf32>
    %cst_7 = arith.constant dense<0.000000e+00> : vector<16x48xf32>
    %7 = tpu.matmul %5, %6, %cst_7 {dimension_numbers = #tpu.dot_dimension_numbers<[1], [0], [0], [1], [0, 0, 1, 1], [], []>} : vector<16x64xf32>, vector<64x48xf32>, vector<16x48xf32> -> vector<16x48xf32>
    %c0_8 = arith.constant 0 : index
    %c0_9 = arith.constant 0 : index
    %8 = vector.load %arg4[%c0_8, %c0_9] : memref<1x48xf32, #tpu.memory_space<vmem>>, vector<1x48xf32>
    %9 = vector.broadcast %8 : vector<1x48xf32> to vector<16x48xf32>
    %10 = arith.addf %7, %9 : vector<16x48xf32>
    %c0_10 = arith.constant 0 : index
    %c0_11 = arith.constant 0 : index
    %11 = vector.load %arg5[%c0_10, %c0_11] : memref<48x32xf32, #tpu.memory_space<vmem>>, vector<48x32xf32>
    %cst_12 = arith.constant dense<0.000000e+00> : vector<16x32xf32>
    %12 = tpu.matmul %10, %11, %cst_12 {dimension_numbers = #tpu.dot_dimension_numbers<[1], [0], [0], [1], [0, 0, 1, 1], [], []>} : vector<16x48xf32>, vector<48x32xf32>, vector<16x32xf32> -> vector<16x32xf32>
    %c0_13 = arith.constant 0 : index
    %c0_14 = arith.constant 0 : index
    %13 = vector.load %arg6[%c0_13, %c0_14] : memref<1x32xf32, #tpu.memory_space<vmem>>, vector<1x32xf32>
    %14 = vector.broadcast %13 : vector<1x32xf32> to vector<16x32xf32>
    %15 = arith.addf %12, %14 : vector<16x32xf32>
    %c0_15 = arith.constant 0 : index
    %c0_16 = arith.constant 0 : index
    %c0_17 = arith.constant 0 : index
    %16 = vector.load %arg7[%c0_15, %c0_16, %c0_17] : memref<2x32x128xf32, #tpu.memory_space<vmem>>, vector<1x32x128xf32>
    %17 = vector.shape_cast %16 : vector<1x32x128xf32> to vector<32x128xf32>
    %c1 = arith.constant 1 : index
    %c0_18 = arith.constant 0 : index
    %c0_19 = arith.constant 0 : index
    %18 = vector.load %arg7[%c1, %c0_18, %c0_19] : memref<2x32x128xf32, #tpu.memory_space<vmem>>, vector<1x32x128xf32>
    %19 = vector.shape_cast %18 : vector<1x32x128xf32> to vector<32x128xf32>
    %c0_20 = arith.constant 0 : index
    %c0_21 = arith.constant 0 : index
    %c0_22 = arith.constant 0 : index
    %20 = vector.load %arg8[%c0_20, %c0_21, %c0_22] : memref<2x32x128xf32, #tpu.memory_space<vmem>>, vector<1x32x128xf32>
    %21 = vector.shape_cast %20 : vector<1x32x128xf32> to vector<32x128xf32>
    %c1_23 = arith.constant 1 : index
    %c0_24 = arith.constant 0 : index
    %c0_25 = arith.constant 0 : index
    %22 = vector.load %arg8[%c1_23, %c0_24, %c0_25] : memref<2x32x128xf32, #tpu.memory_space<vmem>>, vector<1x32x128xf32>
    %23 = vector.shape_cast %22 : vector<1x32x128xf32> to vector<32x128xf32>
    %c0_26 = arith.constant 0 : index
    %c0_27 = arith.constant 0 : index
    %c0_28 = arith.constant 0 : index
    %24 = vector.load %arg10[%c0_26, %c0_27, %c0_28] : memref<2x32x128xf32, #tpu.memory_space<vmem>>, vector<1x32x128xf32>
    %25 = vector.shape_cast %24 : vector<1x32x128xf32> to vector<32x128xf32>
    %c1_29 = arith.constant 1 : index
    %c0_30 = arith.constant 0 : index
    %c0_31 = arith.constant 0 : index
    %26 = vector.load %arg10[%c1_29, %c0_30, %c0_31] : memref<2x32x128xf32, #tpu.memory_space<vmem>>, vector<1x32x128xf32>
    %27 = vector.shape_cast %26 : vector<1x32x128xf32> to vector<32x128xf32>
    %c0_32 = arith.constant 0 : index
    %c0_33 = arith.constant 0 : index
    %c0_34 = arith.constant 0 : index
    %28 = vector.load %arg11[%c0_32, %c0_33, %c0_34] : memref<2x32x128xf32, #tpu.memory_space<vmem>>, vector<1x32x128xf32>
    %29 = vector.shape_cast %28 : vector<1x32x128xf32> to vector<32x128xf32>
    %c1_35 = arith.constant 1 : index
    %c0_36 = arith.constant 0 : index
    %c0_37 = arith.constant 0 : index
    %30 = vector.load %arg11[%c1_35, %c0_36, %c0_37] : memref<2x32x128xf32, #tpu.memory_space<vmem>>, vector<1x32x128xf32>
    %31 = vector.shape_cast %30 : vector<1x32x128xf32> to vector<32x128xf32>
    %c1_38 = arith.constant 1 : index
    %c0_39 = arith.constant 0 : index
    %c0_40 = arith.constant 0 : index
    %32 = vector.load %arg9[%c1_38, %c0_39, %c0_40] : memref<2x1x128xf32, #tpu.memory_space<vmem>>, vector<1x1x128xf32>
    %33 = vector.shape_cast %32 : vector<1x1x128xf32> to vector<1x128xf32>
    %34 = vector.shape_cast %33 : vector<1x128xf32> to vector<1x128xf32>
    %35 = vector.broadcast %34 : vector<1x128xf32> to vector<2x128xf32>
    %c0_41 = arith.constant 0 : index
    %c0_42 = arith.constant 0 : index
    %c0_43 = arith.constant 0 : index
    %36 = vector.load %arg12[%c0_41, %c0_42, %c0_43] : memref<2x1x128xf32, #tpu.memory_space<vmem>>, vector<1x1x128xf32>
    %37 = vector.shape_cast %36 : vector<1x1x128xf32> to vector<1x128xf32>
    %38 = vector.shape_cast %37 : vector<1x128xf32> to vector<1x128xf32>
    %39 = vector.broadcast %38 : vector<1x128xf32> to vector<2x128xf32>
    %c1_44 = arith.constant 1 : index
    %c0_45 = arith.constant 0 : index
    %c0_46 = arith.constant 0 : index
    %40 = vector.load %arg12[%c1_44, %c0_45, %c0_46] : memref<2x1x128xf32, #tpu.memory_space<vmem>>, vector<1x1x128xf32>
    %41 = vector.shape_cast %40 : vector<1x1x128xf32> to vector<1x128xf32>
    %42 = vector.shape_cast %41 : vector<1x128xf32> to vector<1x128xf32>
    %43 = vector.broadcast %42 : vector<1x128xf32> to vector<2x128xf32>
    %cst_47 = arith.constant dense<0.000000e+00> : vector<16x128xf32>
    %44 = tpu.matmul %15, %17, %cst_47 {dimension_numbers = #tpu.dot_dimension_numbers<[1], [0], [0], [1], [0, 0, 1, 1], [], []>} : vector<16x32xf32>, vector<32x128xf32>, vector<16x128xf32> -> vector<16x128xf32>
    %c0_48 = arith.constant 0 : index
    %c0_49 = arith.constant 0 : index
    %c0_50 = arith.constant 0 : index
    %45 = vector.load %arg9[%c0_48, %c0_49, %c0_50] : memref<2x1x128xf32, #tpu.memory_space<vmem>>, vector<1x1x128xf32>
    %46 = vector.shape_cast %45 : vector<1x1x128xf32> to vector<1x128xf32>
    %47 = vector.broadcast %46 : vector<1x128xf32> to vector<16x128xf32>
    %48 = arith.addf %44, %47 : vector<16x128xf32>
    %cst_51 = arith.constant 0.000000e+00 : f32
    %49 = vector.broadcast %cst_51 : f32 to vector<2x32xf32>
    %50 = vector.extract_strided_slice %48 {offsets = [0, 0], sizes = [2, 128], strides = [1, 1]} : vector<16x128xf32> to vector<2x128xf32>
    %cst_52 = arith.constant dense<0.000000e+00> : vector<2x128xf32>
    %51 = tpu.matmul %49, %21, %cst_52 {dimension_numbers = #tpu.dot_dimension_numbers<[1], [0], [0], [1], [0, 0, 1, 1], [], []>} : vector<2x32xf32>, vector<32x128xf32>, vector<2x128xf32> -> vector<2x128xf32>
    %52 = arith.addf %50, %51 : vector<2x128xf32>
    %53 = vector.extract_strided_slice %52 {offsets = [0, 0], sizes = [2, 96], strides = [1, 1]} : vector<2x128xf32> to vector<2x96xf32>
    %54 = arith.negf %53 : vector<2x96xf32>
    %55 = math.exp %54 : vector<2x96xf32>
    %cst_53 = arith.constant 1.000000e+00 : f32
    %56 = vector.broadcast %cst_53 : f32 to vector<2x96xf32>
    %57 = arith.addf %56, %55 : vector<2x96xf32>
    %58 = arith.divf %56, %57 : vector<2x96xf32>
    %59 = vector.extract_strided_slice %58 {offsets = [0, 0], sizes = [2, 32], strides = [1, 1]} : vector<2x96xf32> to vector<2x32xf32>
    %60 = vector.extract_strided_slice %58 {offsets = [0, 32], sizes = [2, 32], strides = [1, 1]} : vector<2x96xf32> to vector<2x32xf32>
    %61 = vector.extract_strided_slice %58 {offsets = [0, 64], sizes = [2, 32], strides = [1, 1]} : vector<2x96xf32> to vector<2x32xf32>
    %62 = vector.extract_strided_slice %52 {offsets = [0, 96], sizes = [2, 32], strides = [1, 1]} : vector<2x128xf32> to vector<2x32xf32>
    %63 = math.tanh %62 : vector<2x32xf32>
    %64 = arith.mulf %60, %49 : vector<2x32xf32>
    %65 = arith.mulf %59, %63 : vector<2x32xf32>
    %66 = arith.addf %64, %65 : vector<2x32xf32>
    %67 = math.tanh %66 : vector<2x32xf32>
    %68 = arith.mulf %61, %67 : vector<2x32xf32>
    %cst_54 = arith.constant dense<0.000000e+00> : vector<2x128xf32>
    %69 = tpu.matmul %68, %19, %cst_54 {dimension_numbers = #tpu.dot_dimension_numbers<[1], [0], [0], [1], [0, 0, 1, 1], [], []>} : vector<2x32xf32>, vector<32x128xf32>, vector<2x128xf32> -> vector<2x128xf32>
    %cst_55 = arith.constant dense<0.000000e+00> : vector<2x128xf32>
    %70 = tpu.matmul %49, %23, %cst_55 {dimension_numbers = #tpu.dot_dimension_numbers<[1], [0], [0], [1], [0, 0, 1, 1], [], []>} : vector<2x32xf32>, vector<32x128xf32>, vector<2x128xf32> -> vector<2x128xf32>
    %71 = arith.addf %69, %70 : vector<2x128xf32>
    %72 = arith.addf %71, %35 : vector<2x128xf32>
    %73 = vector.extract_strided_slice %72 {offsets = [0, 0], sizes = [2, 96], strides = [1, 1]} : vector<2x128xf32> to vector<2x96xf32>
    %74 = arith.negf %73 : vector<2x96xf32>
    %75 = math.exp %74 : vector<2x96xf32>
    %cst_56 = arith.constant 1.000000e+00 : f32
    %76 = vector.broadcast %cst_56 : f32 to vector<2x96xf32>
    %77 = arith.addf %76, %75 : vector<2x96xf32>
    %78 = arith.divf %76, %77 : vector<2x96xf32>
    %79 = vector.extract_strided_slice %78 {offsets = [0, 0], sizes = [2, 32], strides = [1, 1]} : vector<2x96xf32> to vector<2x32xf32>
    %80 = vector.extract_strided_slice %78 {offsets = [0, 32], sizes = [2, 32], strides = [1, 1]} : vector<2x96xf32> to vector<2x32xf32>
    %81 = vector.extract_strided_slice %78 {offsets = [0, 64], sizes = [2, 32], strides = [1, 1]} : vector<2x96xf32> to vector<2x32xf32>
    %82 = vector.extract_strided_slice %72 {offsets = [0, 96], sizes = [2, 32], strides = [1, 1]} : vector<2x128xf32> to vector<2x32xf32>
    %83 = math.tanh %82 : vector<2x32xf32>
    %84 = arith.mulf %80, %49 : vector<2x32xf32>
    %85 = arith.mulf %79, %83 : vector<2x32xf32>
    %86 = arith.addf %84, %85 : vector<2x32xf32>
    %87 = math.tanh %86 : vector<2x32xf32>
    %88 = arith.mulf %81, %87 : vector<2x32xf32>
    %89 = vector.extract_strided_slice %48 {offsets = [2, 0], sizes = [2, 128], strides = [1, 1]} : vector<16x128xf32> to vector<2x128xf32>
    %cst_57 = arith.constant dense<0.000000e+00> : vector<2x128xf32>
    %90 = tpu.matmul %68, %21, %cst_57 {dimension_numbers = #tpu.dot_dimension_numbers<[1], [0], [0], [1], [0, 0, 1, 1], [], []>} : vector<2x32xf32>, vector<32x128xf32>, vector<2x128xf32> -> vector<2x128xf32>
    %91 = arith.addf %89, %90 : vector<2x128xf32>
    %92 = vector.extract_strided_slice %91 {offsets = [0, 0], sizes = [2, 96], strides = [1, 1]} : vector<2x128xf32> to vector<2x96xf32>
    %93 = arith.negf %92 : vector<2x96xf32>
    %94 = math.exp %93 : vector<2x96xf32>
    %cst_58 = arith.constant 1.000000e+00 : f32
    %95 = vector.broadcast %cst_58 : f32 to vector<2x96xf32>
    %96 = arith.addf %95, %94 : vector<2x96xf32>
    %97 = arith.divf %95, %96 : vector<2x96xf32>
    %98 = vector.extract_strided_slice %97 {offsets = [0, 0], sizes = [2, 32], strides = [1, 1]} : vector<2x96xf32> to vector<2x32xf32>
    %99 = vector.extract_strided_slice %97 {offsets = [0, 32], sizes = [2, 32], strides = [1, 1]} : vector<2x96xf32> to vector<2x32xf32>
    %100 = vector.extract_strided_slice %97 {offsets = [0, 64], sizes = [2, 32], strides = [1, 1]} : vector<2x96xf32> to vector<2x32xf32>
    %101 = vector.extract_strided_slice %91 {offsets = [0, 96], sizes = [2, 32], strides = [1, 1]} : vector<2x128xf32> to vector<2x32xf32>
    %102 = math.tanh %101 : vector<2x32xf32>
    %103 = arith.mulf %99, %66 : vector<2x32xf32>
    %104 = arith.mulf %98, %102 : vector<2x32xf32>
    %105 = arith.addf %103, %104 : vector<2x32xf32>
    %106 = math.tanh %105 : vector<2x32xf32>
    %107 = arith.mulf %100, %106 : vector<2x32xf32>
    %cst_59 = arith.constant dense<0.000000e+00> : vector<2x128xf32>
    %108 = tpu.matmul %107, %19, %cst_59 {dimension_numbers = #tpu.dot_dimension_numbers<[1], [0], [0], [1], [0, 0, 1, 1], [], []>} : vector<2x32xf32>, vector<32x128xf32>, vector<2x128xf32> -> vector<2x128xf32>
    %cst_60 = arith.constant dense<0.000000e+00> : vector<2x128xf32>
    %109 = tpu.matmul %88, %23, %cst_60 {dimension_numbers = #tpu.dot_dimension_numbers<[1], [0], [0], [1], [0, 0, 1, 1], [], []>} : vector<2x32xf32>, vector<32x128xf32>, vector<2x128xf32> -> vector<2x128xf32>
    %110 = arith.addf %108, %109 : vector<2x128xf32>
    %111 = arith.addf %110, %35 : vector<2x128xf32>
    %112 = vector.extract_strided_slice %111 {offsets = [0, 0], sizes = [2, 96], strides = [1, 1]} : vector<2x128xf32> to vector<2x96xf32>
    %113 = arith.negf %112 : vector<2x96xf32>
    %114 = math.exp %113 : vector<2x96xf32>
    %cst_61 = arith.constant 1.000000e+00 : f32
    %115 = vector.broadcast %cst_61 : f32 to vector<2x96xf32>
    %116 = arith.addf %115, %114 : vector<2x96xf32>
    %117 = arith.divf %115, %116 : vector<2x96xf32>
    %118 = vector.extract_strided_slice %117 {offsets = [0, 0], sizes = [2, 32], strides = [1, 1]} : vector<2x96xf32> to vector<2x32xf32>
    %119 = vector.extract_strided_slice %117 {offsets = [0, 32], sizes = [2, 32], strides = [1, 1]} : vector<2x96xf32> to vector<2x32xf32>
    %120 = vector.extract_strided_slice %117 {offsets = [0, 64], sizes = [2, 32], strides = [1, 1]} : vector<2x96xf32> to vector<2x32xf32>
    %121 = vector.extract_strided_slice %111 {offsets = [0, 96], sizes = [2, 32], strides = [1, 1]} : vector<2x128xf32> to vector<2x32xf32>
    %122 = math.tanh %121 : vector<2x32xf32>
    %123 = arith.mulf %119, %86 : vector<2x32xf32>
    %124 = arith.mulf %118, %122 : vector<2x32xf32>
    %125 = arith.addf %123, %124 : vector<2x32xf32>
    %126 = math.tanh %125 : vector<2x32xf32>
    %127 = arith.mulf %120, %126 : vector<2x32xf32>
    %128 = vector.extract_strided_slice %48 {offsets = [4, 0], sizes = [2, 128], strides = [1, 1]} : vector<16x128xf32> to vector<2x128xf32>
    %cst_62 = arith.constant dense<0.000000e+00> : vector<2x128xf32>
    %129 = tpu.matmul %107, %21, %cst_62 {dimension_numbers = #tpu.dot_dimension_numbers<[1], [0], [0], [1], [0, 0, 1, 1], [], []>} : vector<2x32xf32>, vector<32x128xf32>, vector<2x128xf32> -> vector<2x128xf32>
    %130 = arith.addf %128, %129 : vector<2x128xf32>
    %131 = vector.extract_strided_slice %130 {offsets = [0, 0], sizes = [2, 96], strides = [1, 1]} : vector<2x128xf32> to vector<2x96xf32>
    %132 = arith.negf %131 : vector<2x96xf32>
    %133 = math.exp %132 : vector<2x96xf32>
    %cst_63 = arith.constant 1.000000e+00 : f32
    %134 = vector.broadcast %cst_63 : f32 to vector<2x96xf32>
    %135 = arith.addf %134, %133 : vector<2x96xf32>
    %136 = arith.divf %134, %135 : vector<2x96xf32>
    %137 = vector.extract_strided_slice %136 {offsets = [0, 0], sizes = [2, 32], strides = [1, 1]} : vector<2x96xf32> to vector<2x32xf32>
    %138 = vector.extract_strided_slice %136 {offsets = [0, 32], sizes = [2, 32], strides = [1, 1]} : vector<2x96xf32> to vector<2x32xf32>
    %139 = vector.extract_strided_slice %136 {offsets = [0, 64], sizes = [2, 32], strides = [1, 1]} : vector<2x96xf32> to vector<2x32xf32>
    %140 = vector.extract_strided_slice %130 {offsets = [0, 96], sizes = [2, 32], strides = [1, 1]} : vector<2x128xf32> to vector<2x32xf32>
    %141 = math.tanh %140 : vector<2x32xf32>
    %142 = arith.mulf %138, %105 : vector<2x32xf32>
    %143 = arith.mulf %137, %141 : vector<2x32xf32>
    %144 = arith.addf %142, %143 : vector<2x32xf32>
    %145 = math.tanh %144 : vector<2x32xf32>
    %146 = arith.mulf %139, %145 : vector<2x32xf32>
    %cst_64 = arith.constant dense<0.000000e+00> : vector<2x128xf32>
    %147 = tpu.matmul %146, %19, %cst_64 {dimension_numbers = #tpu.dot_dimension_numbers<[1], [0], [0], [1], [0, 0, 1, 1], [], []>} : vector<2x32xf32>, vector<32x128xf32>, vector<2x128xf32> -> vector<2x128xf32>
    %cst_65 = arith.constant dense<0.000000e+00> : vector<2x128xf32>
    %148 = tpu.matmul %127, %23, %cst_65 {dimension_numbers = #tpu.dot_dimension_numbers<[1], [0], [0], [1], [0, 0, 1, 1], [], []>} : vector<2x32xf32>, vector<32x128xf32>, vector<2x128xf32> -> vector<2x128xf32>
    %149 = arith.addf %147, %148 : vector<2x128xf32>
    %150 = arith.addf %149, %35 : vector<2x128xf32>
    %151 = vector.extract_strided_slice %150 {offsets = [0, 0], sizes = [2, 96], strides = [1, 1]} : vector<2x128xf32> to vector<2x96xf32>
    %152 = arith.negf %151 : vector<2x96xf32>
    %153 = math.exp %152 : vector<2x96xf32>
    %cst_66 = arith.constant 1.000000e+00 : f32
    %154 = vector.broadcast %cst_66 : f32 to vector<2x96xf32>
    %155 = arith.addf %154, %153 : vector<2x96xf32>
    %156 = arith.divf %154, %155 : vector<2x96xf32>
    %157 = vector.extract_strided_slice %156 {offsets = [0, 0], sizes = [2, 32], strides = [1, 1]} : vector<2x96xf32> to vector<2x32xf32>
    %158 = vector.extract_strided_slice %156 {offsets = [0, 32], sizes = [2, 32], strides = [1, 1]} : vector<2x96xf32> to vector<2x32xf32>
    %159 = vector.extract_strided_slice %156 {offsets = [0, 64], sizes = [2, 32], strides = [1, 1]} : vector<2x96xf32> to vector<2x32xf32>
    %160 = vector.extract_strided_slice %150 {offsets = [0, 96], sizes = [2, 32], strides = [1, 1]} : vector<2x128xf32> to vector<2x32xf32>
    %161 = math.tanh %160 : vector<2x32xf32>
    %162 = arith.mulf %158, %125 : vector<2x32xf32>
    %163 = arith.mulf %157, %161 : vector<2x32xf32>
    %164 = arith.addf %162, %163 : vector<2x32xf32>
    %165 = math.tanh %164 : vector<2x32xf32>
    %166 = arith.mulf %159, %165 : vector<2x32xf32>
    %167 = vector.extract_strided_slice %48 {offsets = [6, 0], sizes = [2, 128], strides = [1, 1]} : vector<16x128xf32> to vector<2x128xf32>
    %cst_67 = arith.constant dense<0.000000e+00> : vector<2x128xf32>
    %168 = tpu.matmul %146, %21, %cst_67 {dimension_numbers = #tpu.dot_dimension_numbers<[1], [0], [0], [1], [0, 0, 1, 1], [], []>} : vector<2x32xf32>, vector<32x128xf32>, vector<2x128xf32> -> vector<2x128xf32>
    %169 = arith.addf %167, %168 : vector<2x128xf32>
    %170 = vector.extract_strided_slice %169 {offsets = [0, 0], sizes = [2, 96], strides = [1, 1]} : vector<2x128xf32> to vector<2x96xf32>
    %171 = arith.negf %170 : vector<2x96xf32>
    %172 = math.exp %171 : vector<2x96xf32>
    %cst_68 = arith.constant 1.000000e+00 : f32
    %173 = vector.broadcast %cst_68 : f32 to vector<2x96xf32>
    %174 = arith.addf %173, %172 : vector<2x96xf32>
    %175 = arith.divf %173, %174 : vector<2x96xf32>
    %176 = vector.extract_strided_slice %175 {offsets = [0, 0], sizes = [2, 32], strides = [1, 1]} : vector<2x96xf32> to vector<2x32xf32>
    %177 = vector.extract_strided_slice %175 {offsets = [0, 32], sizes = [2, 32], strides = [1, 1]} : vector<2x96xf32> to vector<2x32xf32>
    %178 = vector.extract_strided_slice %175 {offsets = [0, 64], sizes = [2, 32], strides = [1, 1]} : vector<2x96xf32> to vector<2x32xf32>
    %179 = vector.extract_strided_slice %169 {offsets = [0, 96], sizes = [2, 32], strides = [1, 1]} : vector<2x128xf32> to vector<2x32xf32>
    %180 = math.tanh %179 : vector<2x32xf32>
    %181 = arith.mulf %177, %144 : vector<2x32xf32>
    %182 = arith.mulf %176, %180 : vector<2x32xf32>
    %183 = arith.addf %181, %182 : vector<2x32xf32>
    %184 = math.tanh %183 : vector<2x32xf32>
    %185 = arith.mulf %178, %184 : vector<2x32xf32>
    %cst_69 = arith.constant dense<0.000000e+00> : vector<2x128xf32>
    %186 = tpu.matmul %185, %19, %cst_69 {dimension_numbers = #tpu.dot_dimension_numbers<[1], [0], [0], [1], [0, 0, 1, 1], [], []>} : vector<2x32xf32>, vector<32x128xf32>, vector<2x128xf32> -> vector<2x128xf32>
    %cst_70 = arith.constant dense<0.000000e+00> : vector<2x128xf32>
    %187 = tpu.matmul %166, %23, %cst_70 {dimension_numbers = #tpu.dot_dimension_numbers<[1], [0], [0], [1], [0, 0, 1, 1], [], []>} : vector<2x32xf32>, vector<32x128xf32>, vector<2x128xf32> -> vector<2x128xf32>
    %188 = arith.addf %186, %187 : vector<2x128xf32>
    %189 = arith.addf %188, %35 : vector<2x128xf32>
    %190 = vector.extract_strided_slice %189 {offsets = [0, 0], sizes = [2, 96], strides = [1, 1]} : vector<2x128xf32> to vector<2x96xf32>
    %191 = arith.negf %190 : vector<2x96xf32>
    %192 = math.exp %191 : vector<2x96xf32>
    %cst_71 = arith.constant 1.000000e+00 : f32
    %193 = vector.broadcast %cst_71 : f32 to vector<2x96xf32>
    %194 = arith.addf %193, %192 : vector<2x96xf32>
    %195 = arith.divf %193, %194 : vector<2x96xf32>
    %196 = vector.extract_strided_slice %195 {offsets = [0, 0], sizes = [2, 32], strides = [1, 1]} : vector<2x96xf32> to vector<2x32xf32>
    %197 = vector.extract_strided_slice %195 {offsets = [0, 32], sizes = [2, 32], strides = [1, 1]} : vector<2x96xf32> to vector<2x32xf32>
    %198 = vector.extract_strided_slice %195 {offsets = [0, 64], sizes = [2, 32], strides = [1, 1]} : vector<2x96xf32> to vector<2x32xf32>
    %199 = vector.extract_strided_slice %189 {offsets = [0, 96], sizes = [2, 32], strides = [1, 1]} : vector<2x128xf32> to vector<2x32xf32>
    %200 = math.tanh %199 : vector<2x32xf32>
    %201 = arith.mulf %197, %164 : vector<2x32xf32>
    %202 = arith.mulf %196, %200 : vector<2x32xf32>
    %203 = arith.addf %201, %202 : vector<2x32xf32>
    %204 = math.tanh %203 : vector<2x32xf32>
    %205 = arith.mulf %198, %204 : vector<2x32xf32>
    %206 = vector.extract_strided_slice %48 {offsets = [8, 0], sizes = [2, 128], strides = [1, 1]} : vector<16x128xf32> to vector<2x128xf32>
    %cst_72 = arith.constant dense<0.000000e+00> : vector<2x128xf32>
    %207 = tpu.matmul %185, %21, %cst_72 {dimension_numbers = #tpu.dot_dimension_numbers<[1], [0], [0], [1], [0, 0, 1, 1], [], []>} : vector<2x32xf32>, vector<32x128xf32>, vector<2x128xf32> -> vector<2x128xf32>
    %208 = arith.addf %206, %207 : vector<2x128xf32>
    %209 = vector.extract_strided_slice %208 {offsets = [0, 0], sizes = [2, 96], strides = [1, 1]} : vector<2x128xf32> to vector<2x96xf32>
    %210 = arith.negf %209 : vector<2x96xf32>
    %211 = math.exp %210 : vector<2x96xf32>
    %cst_73 = arith.constant 1.000000e+00 : f32
    %212 = vector.broadcast %cst_73 : f32 to vector<2x96xf32>
    %213 = arith.addf %212, %211 : vector<2x96xf32>
    %214 = arith.divf %212, %213 : vector<2x96xf32>
    %215 = vector.extract_strided_slice %214 {offsets = [0, 0], sizes = [2, 32], strides = [1, 1]} : vector<2x96xf32> to vector<2x32xf32>
    %216 = vector.extract_strided_slice %214 {offsets = [0, 32], sizes = [2, 32], strides = [1, 1]} : vector<2x96xf32> to vector<2x32xf32>
    %217 = vector.extract_strided_slice %214 {offsets = [0, 64], sizes = [2, 32], strides = [1, 1]} : vector<2x96xf32> to vector<2x32xf32>
    %218 = vector.extract_strided_slice %208 {offsets = [0, 96], sizes = [2, 32], strides = [1, 1]} : vector<2x128xf32> to vector<2x32xf32>
    %219 = math.tanh %218 : vector<2x32xf32>
    %220 = arith.mulf %216, %183 : vector<2x32xf32>
    %221 = arith.mulf %215, %219 : vector<2x32xf32>
    %222 = arith.addf %220, %221 : vector<2x32xf32>
    %223 = math.tanh %222 : vector<2x32xf32>
    %224 = arith.mulf %217, %223 : vector<2x32xf32>
    %cst_74 = arith.constant dense<0.000000e+00> : vector<2x128xf32>
    %225 = tpu.matmul %224, %19, %cst_74 {dimension_numbers = #tpu.dot_dimension_numbers<[1], [0], [0], [1], [0, 0, 1, 1], [], []>} : vector<2x32xf32>, vector<32x128xf32>, vector<2x128xf32> -> vector<2x128xf32>
    %cst_75 = arith.constant dense<0.000000e+00> : vector<2x128xf32>
    %226 = tpu.matmul %205, %23, %cst_75 {dimension_numbers = #tpu.dot_dimension_numbers<[1], [0], [0], [1], [0, 0, 1, 1], [], []>} : vector<2x32xf32>, vector<32x128xf32>, vector<2x128xf32> -> vector<2x128xf32>
    %227 = arith.addf %225, %226 : vector<2x128xf32>
    %228 = arith.addf %227, %35 : vector<2x128xf32>
    %229 = vector.extract_strided_slice %228 {offsets = [0, 0], sizes = [2, 96], strides = [1, 1]} : vector<2x128xf32> to vector<2x96xf32>
    %230 = arith.negf %229 : vector<2x96xf32>
    %231 = math.exp %230 : vector<2x96xf32>
    %cst_76 = arith.constant 1.000000e+00 : f32
    %232 = vector.broadcast %cst_76 : f32 to vector<2x96xf32>
    %233 = arith.addf %232, %231 : vector<2x96xf32>
    %234 = arith.divf %232, %233 : vector<2x96xf32>
    %235 = vector.extract_strided_slice %234 {offsets = [0, 0], sizes = [2, 32], strides = [1, 1]} : vector<2x96xf32> to vector<2x32xf32>
    %236 = vector.extract_strided_slice %234 {offsets = [0, 32], sizes = [2, 32], strides = [1, 1]} : vector<2x96xf32> to vector<2x32xf32>
    %237 = vector.extract_strided_slice %234 {offsets = [0, 64], sizes = [2, 32], strides = [1, 1]} : vector<2x96xf32> to vector<2x32xf32>
    %238 = vector.extract_strided_slice %228 {offsets = [0, 96], sizes = [2, 32], strides = [1, 1]} : vector<2x128xf32> to vector<2x32xf32>
    %239 = math.tanh %238 : vector<2x32xf32>
    %240 = arith.mulf %236, %203 : vector<2x32xf32>
    %241 = arith.mulf %235, %239 : vector<2x32xf32>
    %242 = arith.addf %240, %241 : vector<2x32xf32>
    %243 = math.tanh %242 : vector<2x32xf32>
    %244 = arith.mulf %237, %243 : vector<2x32xf32>
    %245 = vector.extract_strided_slice %48 {offsets = [10, 0], sizes = [2, 128], strides = [1, 1]} : vector<16x128xf32> to vector<2x128xf32>
    %cst_77 = arith.constant dense<0.000000e+00> : vector<2x128xf32>
    %246 = tpu.matmul %224, %21, %cst_77 {dimension_numbers = #tpu.dot_dimension_numbers<[1], [0], [0], [1], [0, 0, 1, 1], [], []>} : vector<2x32xf32>, vector<32x128xf32>, vector<2x128xf32> -> vector<2x128xf32>
    %247 = arith.addf %245, %246 : vector<2x128xf32>
    %248 = vector.extract_strided_slice %247 {offsets = [0, 0], sizes = [2, 96], strides = [1, 1]} : vector<2x128xf32> to vector<2x96xf32>
    %249 = arith.negf %248 : vector<2x96xf32>
    %250 = math.exp %249 : vector<2x96xf32>
    %cst_78 = arith.constant 1.000000e+00 : f32
    %251 = vector.broadcast %cst_78 : f32 to vector<2x96xf32>
    %252 = arith.addf %251, %250 : vector<2x96xf32>
    %253 = arith.divf %251, %252 : vector<2x96xf32>
    %254 = vector.extract_strided_slice %253 {offsets = [0, 0], sizes = [2, 32], strides = [1, 1]} : vector<2x96xf32> to vector<2x32xf32>
    %255 = vector.extract_strided_slice %253 {offsets = [0, 32], sizes = [2, 32], strides = [1, 1]} : vector<2x96xf32> to vector<2x32xf32>
    %256 = vector.extract_strided_slice %253 {offsets = [0, 64], sizes = [2, 32], strides = [1, 1]} : vector<2x96xf32> to vector<2x32xf32>
    %257 = vector.extract_strided_slice %247 {offsets = [0, 96], sizes = [2, 32], strides = [1, 1]} : vector<2x128xf32> to vector<2x32xf32>
    %258 = math.tanh %257 : vector<2x32xf32>
    %259 = arith.mulf %255, %222 : vector<2x32xf32>
    %260 = arith.mulf %254, %258 : vector<2x32xf32>
    %261 = arith.addf %259, %260 : vector<2x32xf32>
    %262 = math.tanh %261 : vector<2x32xf32>
    %263 = arith.mulf %256, %262 : vector<2x32xf32>
    %cst_79 = arith.constant dense<0.000000e+00> : vector<2x128xf32>
    %264 = tpu.matmul %263, %19, %cst_79 {dimension_numbers = #tpu.dot_dimension_numbers<[1], [0], [0], [1], [0, 0, 1, 1], [], []>} : vector<2x32xf32>, vector<32x128xf32>, vector<2x128xf32> -> vector<2x128xf32>
    %cst_80 = arith.constant dense<0.000000e+00> : vector<2x128xf32>
    %265 = tpu.matmul %244, %23, %cst_80 {dimension_numbers = #tpu.dot_dimension_numbers<[1], [0], [0], [1], [0, 0, 1, 1], [], []>} : vector<2x32xf32>, vector<32x128xf32>, vector<2x128xf32> -> vector<2x128xf32>
    %266 = arith.addf %264, %265 : vector<2x128xf32>
    %267 = arith.addf %266, %35 : vector<2x128xf32>
    %268 = vector.extract_strided_slice %267 {offsets = [0, 0], sizes = [2, 96], strides = [1, 1]} : vector<2x128xf32> to vector<2x96xf32>
    %269 = arith.negf %268 : vector<2x96xf32>
    %270 = math.exp %269 : vector<2x96xf32>
    %cst_81 = arith.constant 1.000000e+00 : f32
    %271 = vector.broadcast %cst_81 : f32 to vector<2x96xf32>
    %272 = arith.addf %271, %270 : vector<2x96xf32>
    %273 = arith.divf %271, %272 : vector<2x96xf32>
    %274 = vector.extract_strided_slice %273 {offsets = [0, 0], sizes = [2, 32], strides = [1, 1]} : vector<2x96xf32> to vector<2x32xf32>
    %275 = vector.extract_strided_slice %273 {offsets = [0, 32], sizes = [2, 32], strides = [1, 1]} : vector<2x96xf32> to vector<2x32xf32>
    %276 = vector.extract_strided_slice %273 {offsets = [0, 64], sizes = [2, 32], strides = [1, 1]} : vector<2x96xf32> to vector<2x32xf32>
    %277 = vector.extract_strided_slice %267 {offsets = [0, 96], sizes = [2, 32], strides = [1, 1]} : vector<2x128xf32> to vector<2x32xf32>
    %278 = math.tanh %277 : vector<2x32xf32>
    %279 = arith.mulf %275, %242 : vector<2x32xf32>
    %280 = arith.mulf %274, %278 : vector<2x32xf32>
    %281 = arith.addf %279, %280 : vector<2x32xf32>
    %282 = math.tanh %281 : vector<2x32xf32>
    %283 = arith.mulf %276, %282 : vector<2x32xf32>
    %284 = vector.extract_strided_slice %48 {offsets = [12, 0], sizes = [2, 128], strides = [1, 1]} : vector<16x128xf32> to vector<2x128xf32>
    %cst_82 = arith.constant dense<0.000000e+00> : vector<2x128xf32>
    %285 = tpu.matmul %263, %21, %cst_82 {dimension_numbers = #tpu.dot_dimension_numbers<[1], [0], [0], [1], [0, 0, 1, 1], [], []>} : vector<2x32xf32>, vector<32x128xf32>, vector<2x128xf32> -> vector<2x128xf32>
    %286 = arith.addf %284, %285 : vector<2x128xf32>
    %287 = vector.extract_strided_slice %286 {offsets = [0, 0], sizes = [2, 96], strides = [1, 1]} : vector<2x128xf32> to vector<2x96xf32>
    %288 = arith.negf %287 : vector<2x96xf32>
    %289 = math.exp %288 : vector<2x96xf32>
    %cst_83 = arith.constant 1.000000e+00 : f32
    %290 = vector.broadcast %cst_83 : f32 to vector<2x96xf32>
    %291 = arith.addf %290, %289 : vector<2x96xf32>
    %292 = arith.divf %290, %291 : vector<2x96xf32>
    %293 = vector.extract_strided_slice %292 {offsets = [0, 0], sizes = [2, 32], strides = [1, 1]} : vector<2x96xf32> to vector<2x32xf32>
    %294 = vector.extract_strided_slice %292 {offsets = [0, 32], sizes = [2, 32], strides = [1, 1]} : vector<2x96xf32> to vector<2x32xf32>
    %295 = vector.extract_strided_slice %292 {offsets = [0, 64], sizes = [2, 32], strides = [1, 1]} : vector<2x96xf32> to vector<2x32xf32>
    %296 = vector.extract_strided_slice %286 {offsets = [0, 96], sizes = [2, 32], strides = [1, 1]} : vector<2x128xf32> to vector<2x32xf32>
    %297 = math.tanh %296 : vector<2x32xf32>
    %298 = arith.mulf %294, %261 : vector<2x32xf32>
    %299 = arith.mulf %293, %297 : vector<2x32xf32>
    %300 = arith.addf %298, %299 : vector<2x32xf32>
    %301 = math.tanh %300 : vector<2x32xf32>
    %302 = arith.mulf %295, %301 : vector<2x32xf32>
    %cst_84 = arith.constant dense<0.000000e+00> : vector<2x128xf32>
    %303 = tpu.matmul %302, %19, %cst_84 {dimension_numbers = #tpu.dot_dimension_numbers<[1], [0], [0], [1], [0, 0, 1, 1], [], []>} : vector<2x32xf32>, vector<32x128xf32>, vector<2x128xf32> -> vector<2x128xf32>
    %cst_85 = arith.constant dense<0.000000e+00> : vector<2x128xf32>
    %304 = tpu.matmul %283, %23, %cst_85 {dimension_numbers = #tpu.dot_dimension_numbers<[1], [0], [0], [1], [0, 0, 1, 1], [], []>} : vector<2x32xf32>, vector<32x128xf32>, vector<2x128xf32> -> vector<2x128xf32>
    %305 = arith.addf %303, %304 : vector<2x128xf32>
    %306 = arith.addf %305, %35 : vector<2x128xf32>
    %307 = vector.extract_strided_slice %306 {offsets = [0, 0], sizes = [2, 96], strides = [1, 1]} : vector<2x128xf32> to vector<2x96xf32>
    %308 = arith.negf %307 : vector<2x96xf32>
    %309 = math.exp %308 : vector<2x96xf32>
    %cst_86 = arith.constant 1.000000e+00 : f32
    %310 = vector.broadcast %cst_86 : f32 to vector<2x96xf32>
    %311 = arith.addf %310, %309 : vector<2x96xf32>
    %312 = arith.divf %310, %311 : vector<2x96xf32>
    %313 = vector.extract_strided_slice %312 {offsets = [0, 0], sizes = [2, 32], strides = [1, 1]} : vector<2x96xf32> to vector<2x32xf32>
    %314 = vector.extract_strided_slice %312 {offsets = [0, 32], sizes = [2, 32], strides = [1, 1]} : vector<2x96xf32> to vector<2x32xf32>
    %315 = vector.extract_strided_slice %312 {offsets = [0, 64], sizes = [2, 32], strides = [1, 1]} : vector<2x96xf32> to vector<2x32xf32>
    %316 = vector.extract_strided_slice %306 {offsets = [0, 96], sizes = [2, 32], strides = [1, 1]} : vector<2x128xf32> to vector<2x32xf32>
    %317 = math.tanh %316 : vector<2x32xf32>
    %318 = arith.mulf %314, %281 : vector<2x32xf32>
    %319 = arith.mulf %313, %317 : vector<2x32xf32>
    %320 = arith.addf %318, %319 : vector<2x32xf32>
    %321 = math.tanh %320 : vector<2x32xf32>
    %322 = arith.mulf %315, %321 : vector<2x32xf32>
    %323 = vector.extract_strided_slice %48 {offsets = [14, 0], sizes = [2, 128], strides = [1, 1]} : vector<16x128xf32> to vector<2x128xf32>
    %cst_87 = arith.constant dense<0.000000e+00> : vector<2x128xf32>
    %324 = tpu.matmul %302, %21, %cst_87 {dimension_numbers = #tpu.dot_dimension_numbers<[1], [0], [0], [1], [0, 0, 1, 1], [], []>} : vector<2x32xf32>, vector<32x128xf32>, vector<2x128xf32> -> vector<2x128xf32>
    %325 = arith.addf %323, %324 : vector<2x128xf32>
    %326 = vector.extract_strided_slice %325 {offsets = [0, 0], sizes = [2, 96], strides = [1, 1]} : vector<2x128xf32> to vector<2x96xf32>
    %327 = arith.negf %326 : vector<2x96xf32>
    %328 = math.exp %327 : vector<2x96xf32>
    %cst_88 = arith.constant 1.000000e+00 : f32
    %329 = vector.broadcast %cst_88 : f32 to vector<2x96xf32>
    %330 = arith.addf %329, %328 : vector<2x96xf32>
    %331 = arith.divf %329, %330 : vector<2x96xf32>
    %332 = vector.extract_strided_slice %331 {offsets = [0, 0], sizes = [2, 32], strides = [1, 1]} : vector<2x96xf32> to vector<2x32xf32>
    %333 = vector.extract_strided_slice %331 {offsets = [0, 32], sizes = [2, 32], strides = [1, 1]} : vector<2x96xf32> to vector<2x32xf32>
    %334 = vector.extract_strided_slice %331 {offsets = [0, 64], sizes = [2, 32], strides = [1, 1]} : vector<2x96xf32> to vector<2x32xf32>
    %335 = vector.extract_strided_slice %325 {offsets = [0, 96], sizes = [2, 32], strides = [1, 1]} : vector<2x128xf32> to vector<2x32xf32>
    %336 = math.tanh %335 : vector<2x32xf32>
    %337 = arith.mulf %333, %300 : vector<2x32xf32>
    %338 = arith.mulf %332, %336 : vector<2x32xf32>
    %339 = arith.addf %337, %338 : vector<2x32xf32>
    %340 = math.tanh %339 : vector<2x32xf32>
    %341 = arith.mulf %334, %340 : vector<2x32xf32>
    %cst_89 = arith.constant dense<0.000000e+00> : vector<2x128xf32>
    %342 = tpu.matmul %341, %19, %cst_89 {dimension_numbers = #tpu.dot_dimension_numbers<[1], [0], [0], [1], [0, 0, 1, 1], [], []>} : vector<2x32xf32>, vector<32x128xf32>, vector<2x128xf32> -> vector<2x128xf32>
    %cst_90 = arith.constant dense<0.000000e+00> : vector<2x128xf32>
    %343 = tpu.matmul %322, %23, %cst_90 {dimension_numbers = #tpu.dot_dimension_numbers<[1], [0], [0], [1], [0, 0, 1, 1], [], []>} : vector<2x32xf32>, vector<32x128xf32>, vector<2x128xf32> -> vector<2x128xf32>
    %344 = arith.addf %342, %343 : vector<2x128xf32>
    %345 = arith.addf %344, %35 : vector<2x128xf32>
    %346 = vector.extract_strided_slice %345 {offsets = [0, 0], sizes = [2, 96], strides = [1, 1]} : vector<2x128xf32> to vector<2x96xf32>
    %347 = arith.negf %346 : vector<2x96xf32>
    %348 = math.exp %347 : vector<2x96xf32>
    %cst_91 = arith.constant 1.000000e+00 : f32
    %349 = vector.broadcast %cst_91 : f32 to vector<2x96xf32>
    %350 = arith.addf %349, %348 : vector<2x96xf32>
    %351 = arith.divf %349, %350 : vector<2x96xf32>
    %352 = vector.extract_strided_slice %351 {offsets = [0, 0], sizes = [2, 32], strides = [1, 1]} : vector<2x96xf32> to vector<2x32xf32>
    %353 = vector.extract_strided_slice %351 {offsets = [0, 32], sizes = [2, 32], strides = [1, 1]} : vector<2x96xf32> to vector<2x32xf32>
    %354 = vector.extract_strided_slice %351 {offsets = [0, 64], sizes = [2, 32], strides = [1, 1]} : vector<2x96xf32> to vector<2x32xf32>
    %355 = vector.extract_strided_slice %345 {offsets = [0, 96], sizes = [2, 32], strides = [1, 1]} : vector<2x128xf32> to vector<2x32xf32>
    %356 = math.tanh %355 : vector<2x32xf32>
    %357 = arith.mulf %353, %320 : vector<2x32xf32>
    %358 = arith.mulf %352, %356 : vector<2x32xf32>
    %359 = arith.addf %357, %358 : vector<2x32xf32>
    %360 = math.tanh %359 : vector<2x32xf32>
    %361 = arith.mulf %354, %360 : vector<2x32xf32>
    %cst_92 = arith.constant dense<0.000000e+00> : vector<2x128xf32>
    %362 = tpu.matmul %49, %25, %cst_92 {dimension_numbers = #tpu.dot_dimension_numbers<[1], [0], [0], [1], [0, 0, 1, 1], [], []>} : vector<2x32xf32>, vector<32x128xf32>, vector<2x128xf32> -> vector<2x128xf32>
    %cst_93 = arith.constant dense<0.000000e+00> : vector<2x128xf32>
    %363 = tpu.matmul %341, %29, %cst_93 {dimension_numbers = #tpu.dot_dimension_numbers<[1], [0], [0], [1], [0, 0, 1, 1], [], []>} : vector<2x32xf32>, vector<32x128xf32>, vector<2x128xf32> -> vector<2x128xf32>
    %364 = arith.addf %362, %363 : vector<2x128xf32>
    %365 = arith.addf %364, %39 : vector<2x128xf32>
    %366 = vector.extract_strided_slice %365 {offsets = [0, 0], sizes = [2, 96], strides = [1, 1]} : vector<2x128xf32> to vector<2x96xf32>
    %367 = arith.negf %366 : vector<2x96xf32>
    %368 = math.exp %367 : vector<2x96xf32>
    %cst_94 = arith.constant 1.000000e+00 : f32
    %369 = vector.broadcast %cst_94 : f32 to vector<2x96xf32>
    %370 = arith.addf %369, %368 : vector<2x96xf32>
    %371 = arith.divf %369, %370 : vector<2x96xf32>
    %372 = vector.extract_strided_slice %371 {offsets = [0, 0], sizes = [2, 32], strides = [1, 1]} : vector<2x96xf32> to vector<2x32xf32>
    %373 = vector.extract_strided_slice %371 {offsets = [0, 32], sizes = [2, 32], strides = [1, 1]} : vector<2x96xf32> to vector<2x32xf32>
    %374 = vector.extract_strided_slice %371 {offsets = [0, 64], sizes = [2, 32], strides = [1, 1]} : vector<2x96xf32> to vector<2x32xf32>
    %375 = vector.extract_strided_slice %365 {offsets = [0, 96], sizes = [2, 32], strides = [1, 1]} : vector<2x128xf32> to vector<2x32xf32>
    %376 = math.tanh %375 : vector<2x32xf32>
    %377 = arith.mulf %373, %339 : vector<2x32xf32>
    %378 = arith.mulf %372, %376 : vector<2x32xf32>
    %379 = arith.addf %377, %378 : vector<2x32xf32>
    %380 = math.tanh %379 : vector<2x32xf32>
    %381 = arith.mulf %374, %380 : vector<2x32xf32>
    %cst_95 = arith.constant dense<0.000000e+00> : vector<2x128xf32>
    %382 = tpu.matmul %381, %27, %cst_95 {dimension_numbers = #tpu.dot_dimension_numbers<[1], [0], [0], [1], [0, 0, 1, 1], [], []>} : vector<2x32xf32>, vector<32x128xf32>, vector<2x128xf32> -> vector<2x128xf32>
    %cst_96 = arith.constant dense<0.000000e+00> : vector<2x128xf32>
    %383 = tpu.matmul %361, %31, %cst_96 {dimension_numbers = #tpu.dot_dimension_numbers<[1], [0], [0], [1], [0, 0, 1, 1], [], []>} : vector<2x32xf32>, vector<32x128xf32>, vector<2x128xf32> -> vector<2x128xf32>
    %384 = arith.addf %382, %383 : vector<2x128xf32>
    %385 = arith.addf %384, %43 : vector<2x128xf32>
    %386 = vector.extract_strided_slice %385 {offsets = [0, 0], sizes = [2, 96], strides = [1, 1]} : vector<2x128xf32> to vector<2x96xf32>
    %387 = arith.negf %386 : vector<2x96xf32>
    %388 = math.exp %387 : vector<2x96xf32>
    %cst_97 = arith.constant 1.000000e+00 : f32
    %389 = vector.broadcast %cst_97 : f32 to vector<2x96xf32>
    %390 = arith.addf %389, %388 : vector<2x96xf32>
    %391 = arith.divf %389, %390 : vector<2x96xf32>
    %392 = vector.extract_strided_slice %391 {offsets = [0, 0], sizes = [2, 32], strides = [1, 1]} : vector<2x96xf32> to vector<2x32xf32>
    %393 = vector.extract_strided_slice %391 {offsets = [0, 32], sizes = [2, 32], strides = [1, 1]} : vector<2x96xf32> to vector<2x32xf32>
    %394 = vector.extract_strided_slice %391 {offsets = [0, 64], sizes = [2, 32], strides = [1, 1]} : vector<2x96xf32> to vector<2x32xf32>
    %395 = vector.extract_strided_slice %385 {offsets = [0, 96], sizes = [2, 32], strides = [1, 1]} : vector<2x128xf32> to vector<2x32xf32>
    %396 = math.tanh %395 : vector<2x32xf32>
    %397 = arith.mulf %393, %359 : vector<2x32xf32>
    %398 = arith.mulf %392, %396 : vector<2x32xf32>
    %399 = arith.addf %397, %398 : vector<2x32xf32>
    %400 = math.tanh %399 : vector<2x32xf32>
    %401 = arith.mulf %394, %400 : vector<2x32xf32>
    %c0_98 = arith.constant 0 : index
    %c0_99 = arith.constant 0 : index
    %402 = vector.load %arg20[%c0_98, %c0_99] : memref<8x32xf32, #tpu.memory_space<vmem>>, vector<2x32xf32>
    tpu.vector_store %arg20[%c0_98, %c0_99], %401 {strides = array<i32>} : memref<8x32xf32, #tpu.memory_space<vmem>>, vector<2x32xf32>,
    %cst_100 = arith.constant dense<0.000000e+00> : vector<2x128xf32>
    %403 = tpu.matmul %401, %25, %cst_100 {dimension_numbers = #tpu.dot_dimension_numbers<[1], [0], [0], [1], [0, 0, 1, 1], [], []>} : vector<2x32xf32>, vector<32x128xf32>, vector<2x128xf32> -> vector<2x128xf32>
    %cst_101 = arith.constant dense<0.000000e+00> : vector<2x128xf32>
    %404 = tpu.matmul %381, %29, %cst_101 {dimension_numbers = #tpu.dot_dimension_numbers<[1], [0], [0], [1], [0, 0, 1, 1], [], []>} : vector<2x32xf32>, vector<32x128xf32>, vector<2x128xf32> -> vector<2x128xf32>
    %405 = arith.addf %403, %404 : vector<2x128xf32>
    %406 = arith.addf %405, %39 : vector<2x128xf32>
    %407 = vector.extract_strided_slice %406 {offsets = [0, 0], sizes = [2, 96], strides = [1, 1]} : vector<2x128xf32> to vector<2x96xf32>
    %408 = arith.negf %407 : vector<2x96xf32>
    %409 = math.exp %408 : vector<2x96xf32>
    %cst_102 = arith.constant 1.000000e+00 : f32
    %410 = vector.broadcast %cst_102 : f32 to vector<2x96xf32>
    %411 = arith.addf %410, %409 : vector<2x96xf32>
    %412 = arith.divf %410, %411 : vector<2x96xf32>
    %413 = vector.extract_strided_slice %412 {offsets = [0, 0], sizes = [2, 32], strides = [1, 1]} : vector<2x96xf32> to vector<2x32xf32>
    %414 = vector.extract_strided_slice %412 {offsets = [0, 32], sizes = [2, 32], strides = [1, 1]} : vector<2x96xf32> to vector<2x32xf32>
    %415 = vector.extract_strided_slice %412 {offsets = [0, 64], sizes = [2, 32], strides = [1, 1]} : vector<2x96xf32> to vector<2x32xf32>
    %416 = vector.extract_strided_slice %406 {offsets = [0, 96], sizes = [2, 32], strides = [1, 1]} : vector<2x128xf32> to vector<2x32xf32>
    %417 = math.tanh %416 : vector<2x32xf32>
    %418 = arith.mulf %414, %379 : vector<2x32xf32>
    %419 = arith.mulf %413, %417 : vector<2x32xf32>
    %420 = arith.addf %418, %419 : vector<2x32xf32>
    %421 = math.tanh %420 : vector<2x32xf32>
    %422 = arith.mulf %415, %421 : vector<2x32xf32>
    %cst_103 = arith.constant dense<0.000000e+00> : vector<2x128xf32>
    %423 = tpu.matmul %422, %27, %cst_103 {dimension_numbers = #tpu.dot_dimension_numbers<[1], [0], [0], [1], [0, 0, 1, 1], [], []>} : vector<2x32xf32>, vector<32x128xf32>, vector<2x128xf32> -> vector<2x128xf32>
    %cst_104 = arith.constant dense<0.000000e+00> : vector<2x128xf32>
    %424 = tpu.matmul %401, %31, %cst_104 {dimension_numbers = #tpu.dot_dimension_numbers<[1], [0], [0], [1], [0, 0, 1, 1], [], []>} : vector<2x32xf32>, vector<32x128xf32>, vector<2x128xf32> -> vector<2x128xf32>
    %425 = arith.addf %423, %424 : vector<2x128xf32>
    %426 = arith.addf %425, %43 : vector<2x128xf32>
    %427 = vector.extract_strided_slice %426 {offsets = [0, 0], sizes = [2, 96], strides = [1, 1]} : vector<2x128xf32> to vector<2x96xf32>
    %428 = arith.negf %427 : vector<2x96xf32>
    %429 = math.exp %428 : vector<2x96xf32>
    %cst_105 = arith.constant 1.000000e+00 : f32
    %430 = vector.broadcast %cst_105 : f32 to vector<2x96xf32>
    %431 = arith.addf %430, %429 : vector<2x96xf32>
    %432 = arith.divf %430, %431 : vector<2x96xf32>
    %433 = vector.extract_strided_slice %432 {offsets = [0, 0], sizes = [2, 32], strides = [1, 1]} : vector<2x96xf32> to vector<2x32xf32>
    %434 = vector.extract_strided_slice %432 {offsets = [0, 32], sizes = [2, 32], strides = [1, 1]} : vector<2x96xf32> to vector<2x32xf32>
    %435 = vector.extract_strided_slice %432 {offsets = [0, 64], sizes = [2, 32], strides = [1, 1]} : vector<2x96xf32> to vector<2x32xf32>
    %436 = vector.extract_strided_slice %426 {offsets = [0, 96], sizes = [2, 32], strides = [1, 1]} : vector<2x128xf32> to vector<2x32xf32>
    %437 = math.tanh %436 : vector<2x32xf32>
    %438 = arith.mulf %434, %399 : vector<2x32xf32>
    %439 = arith.mulf %433, %437 : vector<2x32xf32>
    %440 = arith.addf %438, %439 : vector<2x32xf32>
    %441 = math.tanh %440 : vector<2x32xf32>
    %442 = arith.mulf %435, %441 : vector<2x32xf32>
    %c2 = arith.constant 2 : index
    %c0_106 = arith.constant 0 : index
    %443 = vector.load %arg20[%c2, %c0_106] : memref<8x32xf32, #tpu.memory_space<vmem>>, vector<2x32xf32>
    tpu.vector_store %arg20[%c2, %c0_106], %442 {strides = array<i32>} : memref<8x32xf32, #tpu.memory_space<vmem>>, vector<2x32xf32>,
    %cst_107 = arith.constant dense<0.000000e+00> : vector<2x128xf32>
    %444 = tpu.matmul %442, %25, %cst_107 {dimension_numbers = #tpu.dot_dimension_numbers<[1], [0], [0], [1], [0, 0, 1, 1], [], []>} : vector<2x32xf32>, vector<32x128xf32>, vector<2x128xf32> -> vector<2x128xf32>
    %cst_108 = arith.constant dense<0.000000e+00> : vector<2x128xf32>
    %445 = tpu.matmul %422, %29, %cst_108 {dimension_numbers = #tpu.dot_dimension_numbers<[1], [0], [0], [1], [0, 0, 1, 1], [], []>} : vector<2x32xf32>, vector<32x128xf32>, vector<2x128xf32> -> vector<2x128xf32>
    %446 = arith.addf %444, %445 : vector<2x128xf32>
    %447 = arith.addf %446, %39 : vector<2x128xf32>
    %448 = vector.extract_strided_slice %447 {offsets = [0, 0], sizes = [2, 96], strides = [1, 1]} : vector<2x128xf32> to vector<2x96xf32>
    %449 = arith.negf %448 : vector<2x96xf32>
    %450 = math.exp %449 : vector<2x96xf32>
    %cst_109 = arith.constant 1.000000e+00 : f32
    %451 = vector.broadcast %cst_109 : f32 to vector<2x96xf32>
    %452 = arith.addf %451, %450 : vector<2x96xf32>
    %453 = arith.divf %451, %452 : vector<2x96xf32>
    %454 = vector.extract_strided_slice %453 {offsets = [0, 0], sizes = [2, 32], strides = [1, 1]} : vector<2x96xf32> to vector<2x32xf32>
    %455 = vector.extract_strided_slice %453 {offsets = [0, 32], sizes = [2, 32], strides = [1, 1]} : vector<2x96xf32> to vector<2x32xf32>
    %456 = vector.extract_strided_slice %453 {offsets = [0, 64], sizes = [2, 32], strides = [1, 1]} : vector<2x96xf32> to vector<2x32xf32>
    %457 = vector.extract_strided_slice %447 {offsets = [0, 96], sizes = [2, 32], strides = [1, 1]} : vector<2x128xf32> to vector<2x32xf32>
    %458 = math.tanh %457 : vector<2x32xf32>
    %459 = arith.mulf %455, %420 : vector<2x32xf32>
    %460 = arith.mulf %454, %458 : vector<2x32xf32>
    %461 = arith.addf %459, %460 : vector<2x32xf32>
    %462 = math.tanh %461 : vector<2x32xf32>
    %463 = arith.mulf %456, %462 : vector<2x32xf32>
    %cst_110 = arith.constant dense<0.000000e+00> : vector<2x128xf32>
    %464 = tpu.matmul %463, %27, %cst_110 {dimension_numbers = #tpu.dot_dimension_numbers<[1], [0], [0], [1], [0, 0, 1, 1], [], []>} : vector<2x32xf32>, vector<32x128xf32>, vector<2x128xf32> -> vector<2x128xf32>
    %cst_111 = arith.constant dense<0.000000e+00> : vector<2x128xf32>
    %465 = tpu.matmul %442, %31, %cst_111 {dimension_numbers = #tpu.dot_dimension_numbers<[1], [0], [0], [1], [0, 0, 1, 1], [], []>} : vector<2x32xf32>, vector<32x128xf32>, vector<2x128xf32> -> vector<2x128xf32>
    %466 = arith.addf %464, %465 : vector<2x128xf32>
    %467 = arith.addf %466, %43 : vector<2x128xf32>
    %468 = vector.extract_strided_slice %467 {offsets = [0, 0], sizes = [2, 96], strides = [1, 1]} : vector<2x128xf32> to vector<2x96xf32>
    %469 = arith.negf %468 : vector<2x96xf32>
    %470 = math.exp %469 : vector<2x96xf32>
    %cst_112 = arith.constant 1.000000e+00 : f32
    %471 = vector.broadcast %cst_112 : f32 to vector<2x96xf32>
    %472 = arith.addf %471, %470 : vector<2x96xf32>
    %473 = arith.divf %471, %472 : vector<2x96xf32>
    %474 = vector.extract_strided_slice %473 {offsets = [0, 0], sizes = [2, 32], strides = [1, 1]} : vector<2x96xf32> to vector<2x32xf32>
    %475 = vector.extract_strided_slice %473 {offsets = [0, 32], sizes = [2, 32], strides = [1, 1]} : vector<2x96xf32> to vector<2x32xf32>
    %476 = vector.extract_strided_slice %473 {offsets = [0, 64], sizes = [2, 32], strides = [1, 1]} : vector<2x96xf32> to vector<2x32xf32>
    %477 = vector.extract_strided_slice %467 {offsets = [0, 96], sizes = [2, 32], strides = [1, 1]} : vector<2x128xf32> to vector<2x32xf32>
    %478 = math.tanh %477 : vector<2x32xf32>
    %479 = arith.mulf %475, %440 : vector<2x32xf32>
    %480 = arith.mulf %474, %478 : vector<2x32xf32>
    %481 = arith.addf %479, %480 : vector<2x32xf32>
    %482 = math.tanh %481 : vector<2x32xf32>
    %483 = arith.mulf %476, %482 : vector<2x32xf32>
    %c4 = arith.constant 4 : index
    %c0_113 = arith.constant 0 : index
    %484 = vector.load %arg20[%c4, %c0_113] : memref<8x32xf32, #tpu.memory_space<vmem>>, vector<2x32xf32>
    tpu.vector_store %arg20[%c4, %c0_113], %483 {strides = array<i32>} : memref<8x32xf32, #tpu.memory_space<vmem>>, vector<2x32xf32>,
    %cst_114 = arith.constant dense<0.000000e+00> : vector<2x128xf32>
    %485 = tpu.matmul %483, %25, %cst_114 {dimension_numbers = #tpu.dot_dimension_numbers<[1], [0], [0], [1], [0, 0, 1, 1], [], []>} : vector<2x32xf32>, vector<32x128xf32>, vector<2x128xf32> -> vector<2x128xf32>
    %cst_115 = arith.constant dense<0.000000e+00> : vector<2x128xf32>
    %486 = tpu.matmul %463, %29, %cst_115 {dimension_numbers = #tpu.dot_dimension_numbers<[1], [0], [0], [1], [0, 0, 1, 1], [], []>} : vector<2x32xf32>, vector<32x128xf32>, vector<2x128xf32> -> vector<2x128xf32>
    %487 = arith.addf %485, %486 : vector<2x128xf32>
    %488 = arith.addf %487, %39 : vector<2x128xf32>
    %489 = vector.extract_strided_slice %488 {offsets = [0, 0], sizes = [2, 96], strides = [1, 1]} : vector<2x128xf32> to vector<2x96xf32>
    %490 = arith.negf %489 : vector<2x96xf32>
    %491 = math.exp %490 : vector<2x96xf32>
    %cst_116 = arith.constant 1.000000e+00 : f32
    %492 = vector.broadcast %cst_116 : f32 to vector<2x96xf32>
    %493 = arith.addf %492, %491 : vector<2x96xf32>
    %494 = arith.divf %492, %493 : vector<2x96xf32>
    %495 = vector.extract_strided_slice %494 {offsets = [0, 0], sizes = [2, 32], strides = [1, 1]} : vector<2x96xf32> to vector<2x32xf32>
    %496 = vector.extract_strided_slice %494 {offsets = [0, 32], sizes = [2, 32], strides = [1, 1]} : vector<2x96xf32> to vector<2x32xf32>
    %497 = vector.extract_strided_slice %494 {offsets = [0, 64], sizes = [2, 32], strides = [1, 1]} : vector<2x96xf32> to vector<2x32xf32>
    %498 = vector.extract_strided_slice %488 {offsets = [0, 96], sizes = [2, 32], strides = [1, 1]} : vector<2x128xf32> to vector<2x32xf32>
    %499 = math.tanh %498 : vector<2x32xf32>
    %500 = arith.mulf %496, %461 : vector<2x32xf32>
    %501 = arith.mulf %495, %499 : vector<2x32xf32>
    %502 = arith.addf %500, %501 : vector<2x32xf32>
    %503 = math.tanh %502 : vector<2x32xf32>
    %504 = arith.mulf %497, %503 : vector<2x32xf32>
    %cst_117 = arith.constant dense<0.000000e+00> : vector<2x128xf32>
    %505 = tpu.matmul %504, %27, %cst_117 {dimension_numbers = #tpu.dot_dimension_numbers<[1], [0], [0], [1], [0, 0, 1, 1], [], []>} : vector<2x32xf32>, vector<32x128xf32>, vector<2x128xf32> -> vector<2x128xf32>
    %cst_118 = arith.constant dense<0.000000e+00> : vector<2x128xf32>
    %506 = tpu.matmul %483, %31, %cst_118 {dimension_numbers = #tpu.dot_dimension_numbers<[1], [0], [0], [1], [0, 0, 1, 1], [], []>} : vector<2x32xf32>, vector<32x128xf32>, vector<2x128xf32> -> vector<2x128xf32>
    %507 = arith.addf %505, %506 : vector<2x128xf32>
    %508 = arith.addf %507, %43 : vector<2x128xf32>
    %509 = vector.extract_strided_slice %508 {offsets = [0, 0], sizes = [2, 96], strides = [1, 1]} : vector<2x128xf32> to vector<2x96xf32>
    %510 = arith.negf %509 : vector<2x96xf32>
    %511 = math.exp %510 : vector<2x96xf32>
    %cst_119 = arith.constant 1.000000e+00 : f32
    %512 = vector.broadcast %cst_119 : f32 to vector<2x96xf32>
    %513 = arith.addf %512, %511 : vector<2x96xf32>
    %514 = arith.divf %512, %513 : vector<2x96xf32>
    %515 = vector.extract_strided_slice %514 {offsets = [0, 0], sizes = [2, 32], strides = [1, 1]} : vector<2x96xf32> to vector<2x32xf32>
    %516 = vector.extract_strided_slice %514 {offsets = [0, 32], sizes = [2, 32], strides = [1, 1]} : vector<2x96xf32> to vector<2x32xf32>
    %517 = vector.extract_strided_slice %514 {offsets = [0, 64], sizes = [2, 32], strides = [1, 1]} : vector<2x96xf32> to vector<2x32xf32>
    %518 = vector.extract_strided_slice %508 {offsets = [0, 96], sizes = [2, 32], strides = [1, 1]} : vector<2x128xf32> to vector<2x32xf32>
    %519 = math.tanh %518 : vector<2x32xf32>
    %520 = arith.mulf %516, %481 : vector<2x32xf32>
    %521 = arith.mulf %515, %519 : vector<2x32xf32>
    %522 = arith.addf %520, %521 : vector<2x32xf32>
    %523 = math.tanh %522 : vector<2x32xf32>
    %524 = arith.mulf %517, %523 : vector<2x32xf32>
    %c6 = arith.constant 6 : index
    %c0_120 = arith.constant 0 : index
    %525 = vector.load %arg20[%c6, %c0_120] : memref<8x32xf32, #tpu.memory_space<vmem>>, vector<2x32xf32>
    tpu.vector_store %arg20[%c6, %c0_120], %524 {strides = array<i32>} : memref<8x32xf32, #tpu.memory_space<vmem>>, vector<2x32xf32>,
    %c0_121 = arith.constant 0 : index
    %c0_122 = arith.constant 0 : index
    %526 = vector.load %arg20[%c0_121, %c0_122] : memref<8x32xf32, #tpu.memory_space<vmem>>, vector<8x32xf32>
    %c0_123 = arith.constant 0 : index
    %c0_124 = arith.constant 0 : index
    %527 = vector.load %arg13[%c0_123, %c0_124] : memref<32x48xf32, #tpu.memory_space<vmem>>, vector<32x48xf32>
    %cst_125 = arith.constant dense<0.000000e+00> : vector<8x48xf32>
    %528 = tpu.matmul %526, %527, %cst_125 {dimension_numbers = #tpu.dot_dimension_numbers<[1], [0], [0], [1], [0, 0, 1, 1], [], []>} : vector<8x32xf32>, vector<32x48xf32>, vector<8x48xf32> -> vector<8x48xf32>
    %c0_126 = arith.constant 0 : index
    %c0_127 = arith.constant 0 : index
    %529 = vector.load %arg14[%c0_126, %c0_127] : memref<1x48xf32, #tpu.memory_space<vmem>>, vector<1x48xf32>
    %530 = vector.broadcast %529 : vector<1x48xf32> to vector<8x48xf32>
    %531 = arith.addf %528, %530 : vector<8x48xf32>
    %c0_128 = arith.constant 0 : index
    %c0_129 = arith.constant 0 : index
    %532 = vector.load %arg15[%c0_128, %c0_129] : memref<48x64xf32, #tpu.memory_space<vmem>>, vector<48x64xf32>
    %cst_130 = arith.constant dense<0.000000e+00> : vector<8x64xf32>
    %533 = tpu.matmul %531, %532, %cst_130 {dimension_numbers = #tpu.dot_dimension_numbers<[1], [0], [0], [1], [0, 0, 1, 1], [], []>} : vector<8x48xf32>, vector<48x64xf32>, vector<8x64xf32> -> vector<8x64xf32>
    %c0_131 = arith.constant 0 : index
    %c0_132 = arith.constant 0 : index
    %534 = vector.load %arg16[%c0_131, %c0_132] : memref<1x64xf32, #tpu.memory_space<vmem>>, vector<1x64xf32>
    %535 = vector.broadcast %534 : vector<1x64xf32> to vector<8x64xf32>
    %536 = arith.addf %533, %535 : vector<8x64xf32>
    %c0_133 = arith.constant 0 : index
    %c0_134 = arith.constant 0 : index
    %537 = vector.load %arg17[%c0_133, %c0_134] : memref<64x8xf32, #tpu.memory_space<vmem>>, vector<64x8xf32>
    %cst_135 = arith.constant dense<0.000000e+00> : vector<8x8xf32>
    %538 = tpu.matmul %536, %537, %cst_135 {dimension_numbers = #tpu.dot_dimension_numbers<[1], [0], [0], [1], [0, 0, 1, 1], [], []>} : vector<8x64xf32>, vector<64x8xf32>, vector<8x8xf32> -> vector<8x8xf32>
    %c0_136 = arith.constant 0 : index
    %c0_137 = arith.constant 0 : index
    %539 = vector.load %arg18[%c0_136, %c0_137] : memref<1x8xf32, #tpu.memory_space<vmem>>, vector<1x8xf32>
    %540 = vector.broadcast %539 : vector<1x8xf32> to vector<8x8xf32>
    %541 = arith.addf %538, %540 : vector<8x8xf32>
    %c0_138 = arith.constant 0 : index
    %c0_139 = arith.constant 0 : index
    %542 = vector.load %arg19[%c0_138, %c0_139] : memref<8x8xf32, #tpu.memory_space<vmem>>, vector<8x8xf32>
    tpu.vector_store %arg19[%c0_138, %c0_139], %541 {strides = array<i32>} : memref<8x8xf32, #tpu.memory_space<vmem>>, vector<8x8xf32>,
    return
  }
}

</mosaic_0001>

<llo_original>
// kernel: fclstm_bnode_forward.1
$region0: #{fclstm_bnode_forward.1}
  #allocation0 [shape = 'u32[]', space=smem, size = 0x4, offset = 0x4, fixed_abs, tag = 'smem constant byte address 0x4 - core index']
  #allocation1 [shape = 'u32[144,128]{1,0:T(1,128)}', space=vmem, size = 0x12000, scoped, tag = 'internal scratch']
  #allocation2 [shape = 'f32[8,32]{1,0:T(8,128)}', space=vmem, size = 0x1000, scoped, tag = 'scratch operand']
  %s0 = inlined_call_operand.vmem [shape: f32[16,8], index: 0, kind: input, shape index: {}]
  %s1 = inlined_call_operand.vmem [shape: f32[8,64], index: 1, kind: input, shape index: {}]
  %s2 = inlined_call_operand.vmem [shape: f32[1,64], index: 2, kind: input, shape index: {}]
  %s3 = inlined_call_operand.vmem [shape: f32[64,48], index: 3, kind: input, shape index: {}]
  %s4 = inlined_call_operand.vmem [shape: f32[1,48], index: 4, kind: input, shape index: {}]
  %s5 = inlined_call_operand.vmem [shape: f32[48,32], index: 5, kind: input, shape index: {}]
  %s6 = inlined_call_operand.vmem [shape: f32[1,32], index: 6, kind: input, shape index: {}]
  %s7 = inlined_call_operand.vmem [shape: f32[2,32,128], index: 7, kind: input, shape index: {}]
  %s8 = inlined_call_operand.vmem [shape: f32[2,32,128], index: 8, kind: input, shape index: {}]
  %s9 = inlined_call_operand.vmem [shape: f32[2,1,128], index: 9, kind: input, shape index: {}]
  %s10 = inlined_call_operand.vmem [shape: f32[2,32,128], index: 10, kind: input, shape index: {}]
  %s11 = inlined_call_operand.vmem [shape: f32[2,32,128], index: 11, kind: input, shape index: {}]
  %s12 = inlined_call_operand.vmem [shape: f32[2,1,128], index: 12, kind: input, shape index: {}]
  %s13 = inlined_call_operand.vmem [shape: f32[32,48], index: 13, kind: input, shape index: {}]
  %s14 = inlined_call_operand.vmem [shape: f32[1,48], index: 14, kind: input, shape index: {}]
  %s15 = inlined_call_operand.vmem [shape: f32[48,64], index: 15, kind: input, shape index: {}]
  %s16 = inlined_call_operand.hbm [shape: f32[1,64], index: 16, kind: input, shape index: {}]
  %s17 = inlined_call_operand.vmem [shape: f32[64,8], index: 17, kind: input, shape index: {}]
  %s18 = inlined_call_operand.hbm [shape: f32[1,8], index: 18, kind: input, shape index: {}]
  %s19 = inlined_call_operand.vmem [shape: f32[8,8], index: 19, kind: output, shape index: {}]
  %s20 = sld [smem:[#allocation0]]
  $region94: #{fclstm_bnode_forward.1} parent=0
    _
  %s22 = ssub.s32 1, %s20
  %s23 = scalar_select 0, %s22, %s20
  $region1: #{fclstm_bnode_forward.1} parent=0
    #allocation3 [shape = 'u8[512]{0}', space=vmem, size = 0x400, scoped, tag = 'input window, operand 16, single buffered']
    #allocation4 [shape = 's32[1]{0}', space=sflag, size = 0x4, scoped, tag = 'scoped memory for fclstm_bnode_forward.1']
    #allocation5 [shape = 'u8[512]{0}', space=vmem, size = 0x400, scoped, tag = 'input window, operand 18, single buffered']
    #allocation6 [shape = 's32[1]{0}', space=sflag, size = 0x4, scoped, tag = 'scoped memory for fclstm_bnode_forward.1']
    %24 = vsyncpa [#allocation4], 0
    %25 = vsyncpa [#allocation6], 0
    // Predicated region
    $region2: #{fclstm_bnode_forward.1} parent=1 // pred_check
      _
    $region3: #{fclstm_bnode_forward.1} parent=1 // pred_check_branch
      %27 = sbr.rel (0) target = $region5
    $region4: #{fclstm_bnode_forward.1} parent=1 // pred_region
      _
    $region5: #{fclstm_bnode_forward.1} parent=1 // pred_fallthru
      _
    // Predicated region
    $region6: #{fclstm_bnode_forward.1} parent=1 // pred_check
      _
    $region7: #{fclstm_bnode_forward.1} parent=1 // pred_check_branch
      %29 = sbr.rel (0) target = $region9
    $region8: #{fclstm_bnode_forward.1} parent=1 // pred_region
      _
    $region9: #{fclstm_bnode_forward.1} parent=1 // pred_fallthru
      _
    // Predicated region
    $region10: #{fclstm_bnode_forward.1} parent=1 // pred_check
      _
    $region11: #{fclstm_bnode_forward.1} parent=1 // pred_check_branch
      %31 = sbr.rel (0) target = $region13
    $region12: #{fclstm_bnode_forward.1} parent=1 // pred_region
      _
    $region13: #{fclstm_bnode_forward.1} parent=1 // pred_fallthru
      _
    // Predicated region
    $region14: #{fclstm_bnode_forward.1} parent=1 // pred_check
      _
    $region15: #{fclstm_bnode_forward.1} parent=1 // pred_check_branch
      %33 = sbr.rel (0) target = $region17
    $region16: #{fclstm_bnode_forward.1} parent=1 // pred_region
      _
    $region17: #{fclstm_bnode_forward.1} parent=1 // pred_fallthru
      _
    // Predicated region
    $region18: #{fclstm_bnode_forward.1} parent=1 // pred_check
      _
    $region19: #{fclstm_bnode_forward.1} parent=1 // pred_check_branch
      %35 = sbr.rel (0) target = $region21
    $region20: #{fclstm_bnode_forward.1} parent=1 // pred_region
      _
    $region21: #{fclstm_bnode_forward.1} parent=1 // pred_fallthru
      _
    // Predicated region
    $region22: #{fclstm_bnode_forward.1} parent=1 // pred_check
      _
    $region23: #{fclstm_bnode_forward.1} parent=1 // pred_check_branch
      %37 = sbr.rel (0) target = $region25
    $region24: #{fclstm_bnode_forward.1} parent=1 // pred_region
      _
    $region25: #{fclstm_bnode_forward.1} parent=1 // pred_fallthru
      _
    // Predicated region
    $region26: #{fclstm_bnode_forward.1} parent=1 // pred_check
      _
    $region27: #{fclstm_bnode_forward.1} parent=1 // pred_check_branch
      %39 = sbr.rel (0) target = $region29
    $region28: #{fclstm_bnode_forward.1} parent=1 // pred_region
      _
    $region29: #{fclstm_bnode_forward.1} parent=1 // pred_fallthru
      _
    // Predicated region
    $region30: #{fclstm_bnode_forward.1} parent=1 // pred_check
      _
    $region31: #{fclstm_bnode_forward.1} parent=1 // pred_check_branch
      %41 = sbr.rel (0) target = $region33
    $region32: #{fclstm_bnode_forward.1} parent=1 // pred_region
      _
    $region33: #{fclstm_bnode_forward.1} parent=1 // pred_fallthru
      _
    // Predicated region
    $region34: #{fclstm_bnode_forward.1} parent=1 // pred_check
      _
    $region35: #{fclstm_bnode_forward.1} parent=1 // pred_check_branch
      %43 = sbr.rel (0) target = $region37
    $region36: #{fclstm_bnode_forward.1} parent=1 // pred_region
      _
    $region37: #{fclstm_bnode_forward.1} parent=1 // pred_fallthru
      _
    // Predicated region
    $region38: #{fclstm_bnode_forward.1} parent=1 // pred_check
      _
    $region39: #{fclstm_bnode_forward.1} parent=1 // pred_check_branch
      %45 = sbr.rel (0) target = $region41
    $region40: #{fclstm_bnode_forward.1} parent=1 // pred_region
      _
    $region41: #{fclstm_bnode_forward.1} parent=1 // pred_fallthru
      _
    // Predicated region
    $region42: #{fclstm_bnode_forward.1} parent=1 // pred_check
      _
    $region43: #{fclstm_bnode_forward.1} parent=1 // pred_check_branch
      %47 = sbr.rel (0) target = $region45
    $region44: #{fclstm_bnode_forward.1} parent=1 // pred_region
      _
    $region45: #{fclstm_bnode_forward.1} parent=1 // pred_fallthru
      _
    // Predicated region
    $region46: #{fclstm_bnode_forward.1} parent=1 // pred_check
      _
    $region47: #{fclstm_bnode_forward.1} parent=1 // pred_check_branch
      %49 = sbr.rel (0) target = $region49
    $region48: #{fclstm_bnode_forward.1} parent=1 // pred_region
      _
    $region49: #{fclstm_bnode_forward.1} parent=1 // pred_fallthru
      _
    // Predicated region
    $region50: #{fclstm_bnode_forward.1} parent=1 // pred_check
      _
    $region51: #{fclstm_bnode_forward.1} parent=1 // pred_check_branch
      %51 = sbr.rel (0) target = $region53
    $region52: #{fclstm_bnode_forward.1} parent=1 // pred_region
      _
    $region53: #{fclstm_bnode_forward.1} parent=1 // pred_fallthru
      _
    // Predicated region
    $region54: #{fclstm_bnode_forward.1} parent=1 // pred_check
      _
    $region55: #{fclstm_bnode_forward.1} parent=1 // pred_check_branch
      %53 = sbr.rel (0) target = $region57
    $region56: #{fclstm_bnode_forward.1} parent=1 // pred_region
      _
    $region57: #{fclstm_bnode_forward.1} parent=1 // pred_fallthru
      _
    // Predicated region
    $region58: #{fclstm_bnode_forward.1} parent=1 // pred_check
      _
    $region59: #{fclstm_bnode_forward.1} parent=1 // pred_check_branch
      %55 = sbr.rel (0) target = $region61
    $region60: #{fclstm_bnode_forward.1} parent=1 // pred_region
      _
    $region61: #{fclstm_bnode_forward.1} parent=1 // pred_fallthru
      _
    // Predicated region
    $region62: #{fclstm_bnode_forward.1} parent=1 // pred_check
      _
    $region63: #{fclstm_bnode_forward.1} parent=1 // pred_check_branch
      %57 = sbr.rel (0) target = $region65
    $region64: #{fclstm_bnode_forward.1} parent=1 // pred_region
      _
    $region65: #{fclstm_bnode_forward.1} parent=1 // pred_fallthru
      _
    // Predicated region
    $region66: #{fclstm_bnode_forward.1} parent=1 // pred_check
      _
    $region67: #{fclstm_bnode_forward.1} parent=1 // pred_check_branch
      %59 = sbr.rel (0) target = $region69
    $region68: #{fclstm_bnode_forward.1} parent=1 // pred_region
      %s61 = ssub.s32 16, 16
      %62 = vsyncadd [#allocation4], %s61
      %s64 = sshll.u32 [#allocation3], 4
      %s65 = int_to_ptr.vmem [resolvable:$true] %s64
      %67 = dma.hbm_to_vmem [thread:$0]  %s16, 16, %s65, [#allocation4]
    $region69: #{fclstm_bnode_forward.1} parent=1 // pred_fallthru
      _
    // Predicated region
    $region70: #{fclstm_bnode_forward.1} parent=1 // pred_check
      _
    $region71: #{fclstm_bnode_forward.1} parent=1 // pred_check_branch
      %69 = sbr.rel (0) target = $region73
    $region72: #{fclstm_bnode_forward.1} parent=1 // pred_region
      _
    $region73: #{fclstm_bnode_forward.1} parent=1 // pred_fallthru
      _
    // Predicated region
    $region74: #{fclstm_bnode_forward.1} parent=1 // pred_check
      _
    $region75: #{fclstm_bnode_forward.1} parent=1 // pred_check_branch
      %71 = sbr.rel (0) target = $region77
    $region76: #{fclstm_bnode_forward.1} parent=1 // pred_region
      %s73 = ssub.s32 16, 16
      %74 = vsyncadd [#allocation6], %s73
      %s76 = sshll.u32 [#allocation5], 4
      %s77 = int_to_ptr.vmem [resolvable:$true] %s76
      %79 = dma.hbm_to_vmem [thread:$0]  %s18, 16, %s77, [#allocation6]
    $region77: #{fclstm_bnode_forward.1} parent=1 // pred_fallthru
      _
    // Predicated region
    $region78: #{fclstm_bnode_forward.1} parent=1 // pred_check
      _
    $region79: #{fclstm_bnode_forward.1} parent=1 // pred_check_branch
      %81 = sbr.rel (0) target = $region81
    $region80: #{fclstm_bnode_forward.1} parent=1 // pred_region
      %82 = dma.done [#allocation4], 16
    $region81: #{fclstm_bnode_forward.1} parent=1 // pred_fallthru
      _
    // Predicated region
    $region82: #{fclstm_bnode_forward.1} parent=1 // pred_check
      _
    $region83: #{fclstm_bnode_forward.1} parent=1 // pred_check_branch
      %84 = sbr.rel (0) target = $region85
    $region84: #{fclstm_bnode_forward.1} parent=1 // pred_region
      %85 = dma.done [#allocation6], 16
    $region85: #{fclstm_bnode_forward.1} parent=1 // pred_fallthru
      _
    %v86 = vld [vmem:[%s0] sm:$0xff]
    %v87 = vld [vmem:[%s0 + $0x8] sm:$0xff]
    %v88 = vld [vmem:[%s1] sm:$0xff]
    %v89 = vld [vmem:[%s2] sm:$0x1]
    %v91 = vlaneseq
    %v92 = vshrl.u32 %v91, 7
    %v93 = vsub.s32 0, %v92
    %v94 = vrot.slane %v89, %v93
    %vm96 = vcmask 64512
    %v98 = vsel %vm96, %v86, 0
    %v101 = vsel %vm96, %v87, 0
    %103 = vmatprep.subr.mxu0 0.0
    %104 = vmatpush1.msra.mxu0 0.0
    %105 = vmatprep.subr.mxu0 0.0
    %106 = vmatpush1.msra.mxu0 0.0
    %107 = vmatprep.subr.mxu0 0.0
    %108 = vmatpush1.msra.mxu0 0.0
    %109 = vmatprep.subr.mxu0 0.0
    %110 = vmatpush1.msra.mxu0 0.0
    %111 = vmatprep.subr.mxu0 0.0
    %112 = vmatpush1.msra.mxu0 0.0
    %113 = vmatprep.subr.mxu0 0.0
    %114 = vmatpush1.msra.mxu0 0.0
    %115 = vmatprep.subr.mxu0 0.0
    %116 = vmatpush1.msra.mxu0 0.0
    %117 = vmatprep.subr.mxu0 0.0
    %118 = vmatpush1.msra.mxu0 0.0
    %119 = vmatprep.subr.mxu0 0.0
    %120 = vmatpush1.msra.mxu0 0.0
    %121 = vmatprep.subr.mxu0 0.0
    %122 = vmatpush1.msra.mxu0 0.0
    %123 = vmatprep.subr.mxu0 0.0
    %124 = vmatpush1.msra.mxu0 0.0
    %125 = vmatprep.subr.mxu0 0.0
    %126 = vmatpush1.msra.mxu0 0.0
    %127 = vmatprep.subr.mxu0 0.0
    %128 = vmatpush1.msra.mxu0 0.0
    %129 = vmatprep.subr.mxu0 0.0
    %130 = vmatpush1.msra.mxu0 0.0
    %131 = vmatprep.subr.mxu0 0.0
    %132 = vmatpush1.msra.mxu0 0.0
    %133 = vmatprep.subr.mxu0 0.0
    %134 = vmatpush1.msra.mxu0 %v88
    %135 = vmatprep.subr.mxu0 0.0
    %136 = vmatpush2.msra.mxu0 0.0
    %137 = vmatprep.subr.mxu0 0.0
    %138 = vmatpush2.msra.mxu0 0.0
    %139 = vmatprep.subr.mxu0 0.0
    %140 = vmatpush2.msra.mxu0 0.0
    %141 = vmatprep.subr.mxu0 0.0
    %142 = vmatpush2.msra.mxu0 0.0
    %143 = vmatprep.subr.mxu0 0.0
    %144 = vmatpush2.msra.mxu0 0.0
    %145 = vmatprep.subr.mxu0 0.0
    %146 = vmatpush2.msra.mxu0 0.0
    %147 = vmatprep.subr.mxu0 0.0
    %148 = vmatpush2.msra.mxu0 0.0
    %149 = vmatprep.subr.mxu0 0.0
    %150 = vmatpush2.msra.mxu0 0.0
    %151 = vmatprep.subr.mxu0 0.0
    %152 = vmatpush2.msra.mxu0 0.0
    %153 = vmatprep.subr.mxu0 0.0
    %154 = vmatpush2.msra.mxu0 0.0
    %155 = vmatprep.subr.mxu0 0.0
    %156 = vmatpush2.msra.mxu0 0.0
    %157 = vmatprep.subr.mxu0 0.0
    %158 = vmatpush2.msra.mxu0 0.0
    %159 = vmatprep.subr.mxu0 0.0
    %160 = vmatpush2.msra.mxu0 0.0
    %161 = vmatprep.subr.mxu0 0.0
    %162 = vmatpush2.msra.mxu0 0.0
    %163 = vmatprep.subr.mxu0 0.0
    %164 = vmatpush2.msra.mxu0 0.0
    %165 = vmatprep.subr.mxu0 0.0
    %166 = vmatpush2.msra.mxu0 0.0
    %167 = vmatprep.mubr.f32.mxu0 0.0
    %168 = vmatmul.mubr.f32.gmra.mxu0 %v98
    %v169 = vpop.f32.mrf.mxu0
    %v170 = vadd.f32 %v94, %v169
    %v171 = vpop.f32.mrf.mxu0
    %172 = vmatprep.mubr.f32.mxu0 0.0
    %173 = vmatmul.mubr.f32.gmra.mxu0 %v101
    %v174 = vpop.f32.mrf.mxu0
    %v175 = vadd.f32 %v94, %v174
    %v176 = vpop.f32.mrf.mxu0
    %177 = vdwg.mxu0
    %v178 = vld [vmem:[%s3] sm:$0xff]
    %v179 = vld [vmem:[%s3 + $0x8] sm:$0xff]
    %v180 = vld [vmem:[%s3 + $0x10] sm:$0xff]
    %v181 = vld [vmem:[%s3 + $0x18] sm:$0xff]
    %v182 = vld [vmem:[%s3 + $0x20] sm:$0xff]
    %v183 = vld [vmem:[%s3 + $0x28] sm:$0xff]
    %v184 = vld [vmem:[%s3 + $0x30] sm:$0xff]
    %v185 = vld [vmem:[%s3 + $0x38] sm:$0xff]
    %v186 = vld [vmem:[%s4] sm:$0x1]
    %v188 = vlaneseq
    %v189 = vshrl.u32 %v188, 7
    %v190 = vsub.s32 0, %v189
    %v191 = vrot.slane %v186, %v190
    %vm193 = vcmask 523264
    %v195 = vsel %vm193, %v170, 0
    %v198 = vsel %vm193, %v175, 0
    %200 = vmatprep.subr.mxu0 0.0
    %201 = vmatpush1.msra.mxu0 0.0
    %202 = vmatprep.subr.mxu0 0.0
    %203 = vmatpush1.msra.mxu0 0.0
    %204 = vmatprep.subr.mxu0 0.0
    %205 = vmatpush1.msra.mxu0 0.0
    %206 = vmatprep.subr.mxu0 0.0
    %207 = vmatpush1.msra.mxu0 0.0
    %208 = vmatprep.subr.mxu0 0.0
    %209 = vmatpush1.msra.mxu0 0.0
    %210 = vmatprep.subr.mxu0 0.0
    %211 = vmatpush1.msra.mxu0 0.0
    %212 = vmatprep.subr.mxu0 0.0
    %213 = vmatpush1.msra.mxu0 0.0
    %214 = vmatprep.subr.mxu0 0.0
    %215 = vmatpush1.msra.mxu0 0.0
    %216 = vmatprep.subr.mxu0 0.0
    %217 = vmatpush1.msra.mxu0 %v185
    %218 = vmatprep.subr.mxu0 0.0
    %219 = vmatpush1.msra.mxu0 %v184
    %220 = vmatprep.subr.mxu0 0.0
    %221 = vmatpush1.msra.mxu0 %v183
    %222 = vmatprep.subr.mxu0 0.0
    %223 = vmatpush1.msra.mxu0 %v182
    %224 = vmatprep.subr.mxu0 0.0
    %225 = vmatpush1.msra.mxu0 %v181
    %226 = vmatprep.subr.mxu0 0.0
    %227 = vmatpush1.msra.mxu0 %v180
    %228 = vmatprep.subr.mxu0 0.0
    %229 = vmatpush1.msra.mxu0 %v179
    %230 = vmatprep.subr.mxu0 0.0
    %231 = vmatpush1.msra.mxu0 %v178
    %232 = vmatprep.subr.mxu0 0.0
    %233 = vmatpush2.msra.mxu0 0.0
    %234 = vmatprep.subr.mxu0 0.0
    %235 = vmatpush2.msra.mxu0 0.0
    %236 = vmatprep.subr.mxu0 0.0
    %237 = vmatpush2.msra.mxu0 0.0
    %238 = vmatprep.subr.mxu0 0.0
    %239 = vmatpush2.msra.mxu0 0.0
    %240 = vmatprep.subr.mxu0 0.0
    %241 = vmatpush2.msra.mxu0 0.0
    %242 = vmatprep.subr.mxu0 0.0
    %243 = vmatpush2.msra.mxu0 0.0
    %244 = vmatprep.subr.mxu0 0.0
    %245 = vmatpush2.msra.mxu0 0.0
    %246 = vmatprep.subr.mxu0 0.0
    %247 = vmatpush2.msra.mxu0 0.0
    %248 = vmatprep.subr.mxu0 0.0
    %249 = vmatpush2.msra.mxu0 0.0
    %250 = vmatprep.subr.mxu0 0.0
    %251 = vmatpush2.msra.mxu0 0.0
    %252 = vmatprep.subr.mxu0 0.0
    %253 = vmatpush2.msra.mxu0 0.0
    %254 = vmatprep.subr.mxu0 0.0
    %255 = vmatpush2.msra.mxu0 0.0
    %256 = vmatprep.subr.mxu0 0.0
    %257 = vmatpush2.msra.mxu0 0.0
    %258 = vmatprep.subr.mxu0 0.0
    %259 = vmatpush2.msra.mxu0 0.0
    %260 = vmatprep.subr.mxu0 0.0
    %261 = vmatpush2.msra.mxu0 0.0
    %262 = vmatprep.subr.mxu0 0.0
    %263 = vmatpush2.msra.mxu0 0.0
    %264 = vmatprep.mubr.f32.mxu0 0.0
    %265 = vmatmul.mubr.f32.gmra.mxu0 %v195
    %v266 = vpop.f32.mrf.mxu0
    %v267 = vadd.f32 %v191, %v266
    %v268 = vpop.f32.mrf.mxu0
    %269 = vmatprep.mubr.f32.mxu0 0.0
    %270 = vmatmul.mubr.f32.gmra.mxu0 %v198
    %v271 = vpop.f32.mrf.mxu0
    %v272 = vadd.f32 %v191, %v271
    %v273 = vpop.f32.mrf.mxu0
    %274 = vdwg.mxu0
    %v275 = vld [vmem:[%s5] sm:$0xff]
    %v276 = vld [vmem:[%s5 + $0x8] sm:$0xff]
    %v277 = vld [vmem:[%s5 + $0x10] sm:$0xff]
    %v278 = vld [vmem:[%s5 + $0x18] sm:$0xff]
    %v279 = vld [vmem:[%s5 + $0x20] sm:$0xff]
    %v280 = vld [vmem:[%s5 + $0x28] sm:$0xff]
    %v281 = vld [vmem:[%s6] sm:$0x1]
    %v283 = vlaneseq
    %v284 = vshrl.u32 %v283, 7
    %v285 = vsub.s32 0, %v284
    %v286 = vrot.slane %v281, %v285
    %vm288 = vcmask 392192
    %v290 = vsel %vm288, %v267, 0
    %v293 = vsel %vm288, %v272, 0
    %295 = vmatprep.subr.mxu0 0.0
    %296 = vmatpush1.msra.mxu0 0.0
    %297 = vmatprep.subr.mxu0 0.0
    %298 = vmatpush1.msra.mxu0 0.0
    %299 = vmatprep.subr.mxu0 0.0
    %300 = vmatpush1.msra.mxu0 0.0
    %301 = vmatprep.subr.mxu0 0.0
    %302 = vmatpush1.msra.mxu0 0.0
    %303 = vmatprep.subr.mxu0 0.0
    %304 = vmatpush1.msra.mxu0 0.0
    %305 = vmatprep.subr.mxu0 0.0
    %306 = vmatpush1.msra.mxu0 0.0
    %307 = vmatprep.subr.mxu0 0.0
    %308 = vmatpush1.msra.mxu0 0.0
    %309 = vmatprep.subr.mxu0 0.0
    %310 = vmatpush1.msra.mxu0 0.0
    %311 = vmatprep.subr.mxu0 0.0
    %312 = vmatpush1.msra.mxu0 0.0
    %313 = vmatprep.subr.mxu0 0.0
    %314 = vmatpush1.msra.mxu0 0.0
    %315 = vmatprep.subr.mxu0 0.0
    %316 = vmatpush1.msra.mxu0 %v280
    %317 = vmatprep.subr.mxu0 0.0
    %318 = vmatpush1.msra.mxu0 %v279
    %319 = vmatprep.subr.mxu0 0.0
    %320 = vmatpush1.msra.mxu0 %v278
    %321 = vmatprep.subr.mxu0 0.0
    %322 = vmatpush1.msra.mxu0 %v277
    %323 = vmatprep.subr.mxu0 0.0
    %324 = vmatpush1.msra.mxu0 %v276
    %325 = vmatprep.subr.mxu0 0.0
    %326 = vmatpush1.msra.mxu0 %v275
    %327 = vmatprep.subr.mxu0 0.0
    %328 = vmatpush2.msra.mxu0 0.0
    %329 = vmatprep.subr.mxu0 0.0
    %330 = vmatpush2.msra.mxu0 0.0
    %331 = vmatprep.subr.mxu0 0.0
    %332 = vmatpush2.msra.mxu0 0.0
    %333 = vmatprep.subr.mxu0 0.0
    %334 = vmatpush2.msra.mxu0 0.0
    %335 = vmatprep.subr.mxu0 0.0
    %336 = vmatpush2.msra.mxu0 0.0
    %337 = vmatprep.subr.mxu0 0.0
    %338 = vmatpush2.msra.mxu0 0.0
    %339 = vmatprep.subr.mxu0 0.0
    %340 = vmatpush2.msra.mxu0 0.0
    %341 = vmatprep.subr.mxu0 0.0
    %342 = vmatpush2.msra.mxu0 0.0
    %343 = vmatprep.subr.mxu0 0.0
    %344 = vmatpush2.msra.mxu0 0.0
    %345 = vmatprep.subr.mxu0 0.0
    %346 = vmatpush2.msra.mxu0 0.0
    %347 = vmatprep.subr.mxu0 0.0
    %348 = vmatpush2.msra.mxu0 0.0
    %349 = vmatprep.subr.mxu0 0.0
    %350 = vmatpush2.msra.mxu0 0.0
    %351 = vmatprep.subr.mxu0 0.0
    %352 = vmatpush2.msra.mxu0 0.0
    %353 = vmatprep.subr.mxu0 0.0
    %354 = vmatpush2.msra.mxu0 0.0
    %355 = vmatprep.subr.mxu0 0.0
    %356 = vmatpush2.msra.mxu0 0.0
    %357 = vmatprep.subr.mxu0 0.0
    %358 = vmatpush2.msra.mxu0 0.0
    %359 = vmatprep.mubr.f32.mxu0 0.0
    %360 = vmatmul.mubr.f32.gmra.mxu0 %v290
    %v361 = vpop.f32.mrf.mxu0
    %v362 = vadd.f32 %v286, %v361
    %v363 = vpop.f32.mrf.mxu0
    %364 = vmatprep.mubr.f32.mxu0 0.0
    %365 = vmatmul.mubr.f32.gmra.mxu0 %v293
    %v366 = vpop.f32.mrf.mxu0
    %v367 = vadd.f32 %v286, %v366
    %v368 = vpop.f32.mrf.mxu0
    %369 = vdwg.mxu0
    %v370 = vld [vmem:[%s7] sm:$0xff]
    %v371 = vld [vmem:[%s7 + $0x8] sm:$0xff]
    %v372 = vld [vmem:[%s7 + $0x10] sm:$0xff]
    %v373 = vld [vmem:[%s7 + $0x18] sm:$0xff]
    %s374 = scalar_lea.vmem %s7, 32
    %v375 = vld [vmem:[%s374] sm:$0xff]
    %v376 = vld [vmem:[%s374 + $0x8] sm:$0xff]
    %v377 = vld [vmem:[%s374 + $0x10] sm:$0xff]
    %v378 = vld [vmem:[%s374 + $0x18] sm:$0xff]
    %v379 = vld [vmem:[%s8] sm:$0xff]
    %v380 = vld [vmem:[%s8 + $0x8] sm:$0xff]
    %v381 = vld [vmem:[%s8 + $0x10] sm:$0xff]
    %v382 = vld [vmem:[%s8 + $0x18] sm:$0xff]
    %s383 = scalar_lea.vmem %s8, 32
    %v384 = vld [vmem:[%s383] sm:$0xff]
    %v385 = vld [vmem:[%s383 + $0x8] sm:$0xff]
    %v386 = vld [vmem:[%s383 + $0x10] sm:$0xff]
    %v387 = vld [vmem:[%s383 + $0x18] sm:$0xff]
    %v388 = vld [vmem:[%s10] sm:$0xff]
    %v389 = vld [vmem:[%s10 + $0x8] sm:$0xff]
    %v390 = vld [vmem:[%s10 + $0x10] sm:$0xff]
    %v391 = vld [vmem:[%s10 + $0x18] sm:$0xff]
    %s392 = scalar_lea.vmem %s10, 32
    %v393 = vld [vmem:[%s392] sm:$0xff]
    %v394 = vld [vmem:[%s392 + $0x8] sm:$0xff]
    %v395 = vld [vmem:[%s392 + $0x10] sm:$0xff]
    %v396 = vld [vmem:[%s392 + $0x18] sm:$0xff]
    %v397 = vld [vmem:[%s11] sm:$0xff]
    %v398 = vld [vmem:[%s11 + $0x8] sm:$0xff]
    %v399 = vld [vmem:[%s11 + $0x10] sm:$0xff]
    %v400 = vld [vmem:[%s11 + $0x18] sm:$0xff]
    %s401 = scalar_lea.vmem %s11, 32
    %v402 = vld [vmem:[%s401] sm:$0xff]
    %v403 = vld [vmem:[%s401 + $0x8] sm:$0xff]
    %v404 = vld [vmem:[%s401 + $0x10] sm:$0xff]
    %v405 = vld [vmem:[%s401 + $0x18] sm:$0xff]
    %s406 = scalar_lea.vmem %s9, 1
    %v407 = vld [vmem:[%s406] sm:$0x1]
    %v409 = vlaneseq
    %v410 = vshrl.u32 %v409, 7
    %v411 = vsub.s32 0, %v410
    %v412 = vrot.slane %v407, %v411
    %v414 = vld [vmem:[%s12] sm:$0x1]
    %v416 = vlaneseq
    %v417 = vshrl.u32 %v416, 7
    %v418 = vsub.s32 0, %v417
    %v419 = vrot.slane %v414, %v418
    %s421 = scalar_lea.vmem %s12, 1
    %v422 = vld [vmem:[%s421] sm:$0x1]
    %v424 = vlaneseq
    %v425 = vshrl.u32 %v424, 7
    %v426 = vsub.s32 0, %v425
    %v427 = vrot.slane %v422, %v426
    %v429 = vld [vmem:[%s9] sm:$0x1]
    %v431 = vlaneseq
    %v432 = vshrl.u32 %v431, 7
    %v433 = vsub.s32 0, %v432
    %v434 = vrot.slane %v429, %v433
    %vm436 = vcmask 261120
    %v438 = vsel %vm436, %v362, 0
    %v441 = vsel %vm436, %v367, 0
    %443 = vmatprep.subr.mxu0 0.0
    %444 = vmatpush1.msra.mxu0 0.0
    %445 = vmatprep.subr.mxu0 0.0
    %446 = vmatpush1.msra.mxu0 0.0
    %447 = vmatprep.subr.mxu0 0.0
    %448 = vmatpush1.msra.mxu0 0.0
    %449 = vmatprep.subr.mxu0 0.0
    %450 = vmatpush1.msra.mxu0 0.0
    %451 = vmatprep.subr.mxu0 0.0
    %452 = vmatpush1.msra.mxu0 0.0
    %453 = vmatprep.subr.mxu0 0.0
    %454 = vmatpush1.msra.mxu0 0.0
    %455 = vmatprep.subr.mxu0 0.0
    %456 = vmatpush1.msra.mxu0 0.0
    %457 = vmatprep.subr.mxu0 0.0
    %458 = vmatpush1.msra.mxu0 0.0
    %459 = vmatprep.subr.mxu0 0.0
    %460 = vmatpush1.msra.mxu0 0.0
    %461 = vmatprep.subr.mxu0 0.0
    %462 = vmatpush1.msra.mxu0 0.0
    %463 = vmatprep.subr.mxu0 0.0
    %464 = vmatpush1.msra.mxu0 0.0
    %465 = vmatprep.subr.mxu0 0.0
    %466 = vmatpush1.msra.mxu0 0.0
    %467 = vmatprep.subr.mxu0 0.0
    %468 = vmatpush1.msra.mxu0 %v373
    %469 = vmatprep.subr.mxu0 0.0
    %470 = vmatpush1.msra.mxu0 %v372
    %471 = vmatprep.subr.mxu0 0.0
    %472 = vmatpush1.msra.mxu0 %v371
    %473 = vmatprep.subr.mxu0 0.0
    %474 = vmatpush1.msra.mxu0 %v370
    %475 = vmatprep.subr.mxu0 0.0
    %476 = vmatpush2.msra.mxu0 0.0
    %477 = vmatprep.subr.mxu0 0.0
    %478 = vmatpush2.msra.mxu0 0.0
    %479 = vmatprep.subr.mxu0 0.0
    %480 = vmatpush2.msra.mxu0 0.0
    %481 = vmatprep.subr.mxu0 0.0
    %482 = vmatpush2.msra.mxu0 0.0
    %483 = vmatprep.subr.mxu0 0.0
    %484 = vmatpush2.msra.mxu0 0.0
    %485 = vmatprep.subr.mxu0 0.0
    %486 = vmatpush2.msra.mxu0 0.0
    %487 = vmatprep.subr.mxu0 0.0
    %488 = vmatpush2.msra.mxu0 0.0
    %489 = vmatprep.subr.mxu0 0.0
    %490 = vmatpush2.msra.mxu0 0.0
    %491 = vmatprep.subr.mxu0 0.0
    %492 = vmatpush2.msra.mxu0 0.0
    %493 = vmatprep.subr.mxu0 0.0
    %494 = vmatpush2.msra.mxu0 0.0
    %495 = vmatprep.subr.mxu0 0.0
    %496 = vmatpush2.msra.mxu0 0.0
    %497 = vmatprep.subr.mxu0 0.0
    %498 = vmatpush2.msra.mxu0 0.0
    %499 = vmatprep.subr.mxu0 0.0
    %500 = vmatpush2.msra.mxu0 0.0
    %501 = vmatprep.subr.mxu0 0.0
    %502 = vmatpush2.msra.mxu0 0.0
    %503 = vmatprep.subr.mxu0 0.0
    %504 = vmatpush2.msra.mxu0 0.0
    %505 = vmatprep.subr.mxu0 0.0
    %506 = vmatpush2.msra.mxu0 0.0
    %507 = vmatprep.mubr.f32.mxu0 0.0
    %508 = vmatmul.mubr.f32.gmra.mxu0 %v438
    %v509 = vpop.f32.mrf.mxu0
    %v510 = vadd.f32 %v434, %v509
    %v511 = vpop.f32.mrf.mxu0
    %512 = vmatprep.mubr.f32.mxu0 0.0
    %513 = vmatmul.mubr.f32.gmra.mxu0 %v441
    %v514 = vpop.f32.mrf.mxu0
    %v515 = vadd.f32 %v434, %v514
    %v516 = vpop.f32.mrf.mxu0
    %517 = vdwg.mxu0
    %v519 = vsel %vm436, 0.0, 0
    %521 = vmatprep.subr.mxu0 0.0
    %522 = vmatpush1.msra.mxu0 0.0
    %523 = vmatprep.subr.mxu0 0.0
    %524 = vmatpush1.msra.mxu0 0.0
    %525 = vmatprep.subr.mxu0 0.0
    %526 = vmatpush1.msra.mxu0 0.0
    %527 = vmatprep.subr.mxu0 0.0
    %528 = vmatpush1.msra.mxu0 0.0
    %529 = vmatprep.subr.mxu0 0.0
    %530 = vmatpush1.msra.mxu0 0.0
    %531 = vmatprep.subr.mxu0 0.0
    %532 = vmatpush1.msra.mxu0 0.0
    %533 = vmatprep.subr.mxu0 0.0
    %534 = vmatpush1.msra.mxu0 0.0
    %535 = vmatprep.subr.mxu0 0.0
    %536 = vmatpush1.msra.mxu0 0.0
    %537 = vmatprep.subr.mxu0 0.0
    %538 = vmatpush1.msra.mxu0 0.0
    %539 = vmatprep.subr.mxu0 0.0
    %540 = vmatpush1.msra.mxu0 0.0
    %541 = vmatprep.subr.mxu0 0.0
    %542 = vmatpush1.msra.mxu0 0.0
    %543 = vmatprep.subr.mxu0 0.0
    %544 = vmatpush1.msra.mxu0 0.0
    %545 = vmatprep.subr.mxu0 0.0
    %546 = vmatpush1.msra.mxu0 %v382
    %547 = vmatprep.subr.mxu0 0.0
    %548 = vmatpush1.msra.mxu0 %v381
    %549 = vmatprep.subr.mxu0 0.0
    %550 = vmatpush1.msra.mxu0 %v380
    %551 = vmatprep.subr.mxu0 0.0
    %552 = vmatpush1.msra.mxu0 %v379
    %553 = vmatprep.subr.mxu0 0.0
    %554 = vmatpush2.msra.mxu0 0.0
    %555 = vmatprep.subr.mxu0 0.0
    %556 = vmatpush2.msra.mxu0 0.0
    %557 = vmatprep.subr.mxu0 0.0
    %558 = vmatpush2.msra.mxu0 0.0
    %559 = vmatprep.subr.mxu0 0.0
    %560 = vmatpush2.msra.mxu0 0.0
    %561 = vmatprep.subr.mxu0 0.0
    %562 = vmatpush2.msra.mxu0 0.0
    %563 = vmatprep.subr.mxu0 0.0
    %564 = vmatpush2.msra.mxu0 0.0
    %565 = vmatprep.subr.mxu0 0.0
    %566 = vmatpush2.msra.mxu0 0.0
    %567 = vmatprep.subr.mxu0 0.0
    %568 = vmatpush2.msra.mxu0 0.0
    %569 = vmatprep.subr.mxu0 0.0
    %570 = vmatpush2.msra.mxu0 0.0
    %571 = vmatprep.subr.mxu0 0.0
    %572 = vmatpush2.msra.mxu0 0.0
    %573 = vmatprep.subr.mxu0 0.0
    %574 = vmatpush2.msra.mxu0 0.0
    %575 = vmatprep.subr.mxu0 0.0
    %576 = vmatpush2.msra.mxu0 0.0
    %577 = vmatprep.subr.mxu0 0.0
    %578 = vmatpush2.msra.mxu0 0.0
    %579 = vmatprep.subr.mxu0 0.0
    %580 = vmatpush2.msra.mxu0 0.0
    %581 = vmatprep.subr.mxu0 0.0
    %582 = vmatpush2.msra.mxu0 0.0
    %583 = vmatprep.subr.mxu0 0.0
    %584 = vmatpush2.msra.mxu0 0.0
    %585 = vmatprep.mubr.f32.mxu0 0.0
    %586 = vmatmul.mubr.f32.gmra.mxu0 %v519
    %v587 = vpop.f32.mrf.mxu0
    %v588 = vadd.f32 0.0, %v587
    %v589 = vpop.f32.mrf.mxu0
    %590 = vdwg.mxu0
    %v591 = vadd.f32 %v510, %v588
    %v592 = vxor.u32 %v591, 2147483648
    %v593 = vmul.f32 %v592, 1.442695
    %v594 = vpow.pop %v593
    %v595 = vadd.f32 %v594, 1.0
    %v596 = vrcp.pop %v595
    %v597 = vmul.f32 1.0, %v596
    %v598 = vtanh.pop %v591
    %v599 = vmul.f32 %v597, 0.0
    %601 = vrot.lane.b32.xlu0 %v598, 32
    %v602 = vpop.permute.xlu0 %601
    %v604 = vmul.f32 %v597, %v602
    %606 = vrot.lane.b32.xlu0 %v604, 32
    %v607 = vpop.permute.xlu0 %606
    %v609 = vadd.f32 %v599, %v607
    %v610 = vtanh.pop %v609
    %612 = vrot.lane.b32.xlu0 %v610, 32
    %v613 = vpop.permute.xlu0 %612
    %v615 = vmul.f32 %v597, %v613
    %616 = vmatprep.subr.mxu0 0.0
    %617 = vmatpush1.msra.mxu0 0.0
    %618 = vmatprep.subr.mxu0 0.0
    %619 = vmatpush1.msra.mxu0 0.0
    %620 = vmatprep.subr.mxu0 0.0
    %621 = vmatpush1.msra.mxu0 0.0
    %622 = vmatprep.subr.mxu0 0.0
    %623 = vmatpush1.msra.mxu0 0.0
    %624 = vmatprep.subr.mxu0 0.0
    %625 = vmatpush1.msra.mxu0 0.0
    %626 = vmatprep.subr.mxu0 0.0
    %627 = vmatpush1.msra.mxu0 0.0
    %628 = vmatprep.subr.mxu0 0.0
    %629 = vmatpush1.msra.mxu0 0.0
    %630 = vmatprep.subr.mxu0 0.0
    %631 = vmatpush1.msra.mxu0 0.0
    %632 = vmatprep.subr.mxu0 0.0
    %633 = vmatpush1.msra.mxu0 0.0
    %634 = vmatprep.subr.mxu0 0.0
    %635 = vmatpush1.msra.mxu0 0.0
    %636 = vmatprep.subr.mxu0 0.0
    %637 = vmatpush1.msra.mxu0 0.0
    %638 = vmatprep.subr.mxu0 0.0
    %639 = vmatpush1.msra.mxu0 0.0
    %640 = vmatprep.subr.mxu0 0.0
    %641 = vmatpush1.msra.mxu0 %v387
    %642 = vmatprep.subr.mxu0 0.0
    %643 = vmatpush1.msra.mxu0 %v386
    %644 = vmatprep.subr.mxu0 0.0
    %645 = vmatpush1.msra.mxu0 %v385
    %646 = vmatprep.subr.mxu0 0.0
    %647 = vmatpush1.msra.mxu0 %v384
    %648 = vmatprep.subr.mxu0 0.0
    %649 = vmatpush2.msra.mxu0 0.0
    %650 = vmatprep.subr.mxu0 0.0
    %651 = vmatpush2.msra.mxu0 0.0
    %652 = vmatprep.subr.mxu0 0.0
    %653 = vmatpush2.msra.mxu0 0.0
    %654 = vmatprep.subr.mxu0 0.0
    %655 = vmatpush2.msra.mxu0 0.0
    %656 = vmatprep.subr.mxu0 0.0
    %657 = vmatpush2.msra.mxu0 0.0
    %658 = vmatprep.subr.mxu0 0.0
    %659 = vmatpush2.msra.mxu0 0.0
    %660 = vmatprep.subr.mxu0 0.0
    %661 = vmatpush2.msra.mxu0 0.0
    %662 = vmatprep.subr.mxu0 0.0
    %663 = vmatpush2.msra.mxu0 0.0
    %664 = vmatprep.subr.mxu0 0.0
    %665 = vmatpush2.msra.mxu0 0.0
    %666 = vmatprep.subr.mxu0 0.0
    %667 = vmatpush2.msra.mxu0 0.0
    %668 = vmatprep.subr.mxu0 0.0
    %669 = vmatpush2.msra.mxu0 0.0
    %670 = vmatprep.subr.mxu0 0.0
    %671 = vmatpush2.msra.mxu0 0.0
    %672 = vmatprep.subr.mxu0 0.0
    %673 = vmatpush2.msra.mxu0 0.0
    %674 = vmatprep.subr.mxu0 0.0
    %675 = vmatpush2.msra.mxu0 0.0
    %676 = vmatprep.subr.mxu0 0.0
    %677 = vmatpush2.msra.mxu0 0.0
    %678 = vmatprep.subr.mxu0 0.0
    %679 = vmatpush2.msra.mxu0 0.0
    %680 = vmatprep.mubr.f32.mxu0 0.0
    %681 = vmatmul.mubr.f32.gmra.mxu0 %v519
    %v682 = vpop.f32.mrf.mxu0
    %v683 = vadd.f32 0.0, %v682
    %v684 = vpop.f32.mrf.mxu0
    %685 = vdwg.mxu0
    %687 = vrot.lane.b32.xlu0 %v615, 64
    %v688 = vpop.permute.xlu0 %687
    %v689 = vsel %vm436, %v688, 0
    %691 = vmatprep.subr.mxu0 0.0
    %692 = vmatpush1.msra.mxu0 0.0
    %693 = vmatprep.subr.mxu0 0.0
    %694 = vmatpush1.msra.mxu0 0.0
    %695 = vmatprep.subr.mxu0 0.0
    %696 = vmatpush1.msra.mxu0 0.0
    %697 = vmatprep.subr.mxu0 0.0
    %698 = vmatpush1.msra.mxu0 0.0
    %699 = vmatprep.subr.mxu0 0.0
    %700 = vmatpush1.msra.mxu0 0.0
    %701 = vmatprep.subr.mxu0 0.0
    %702 = vmatpush1.msra.mxu0 0.0
    %703 = vmatprep.subr.mxu0 0.0
    %704 = vmatpush1.msra.mxu0 0.0
    %705 = vmatprep.subr.mxu0 0.0
    %706 = vmatpush1.msra.mxu0 0.0
    %707 = vmatprep.subr.mxu0 0.0
    %708 = vmatpush1.msra.mxu0 0.0
    %709 = vmatprep.subr.mxu0 0.0
    %710 = vmatpush1.msra.mxu0 0.0
    %711 = vmatprep.subr.mxu0 0.0
    %712 = vmatpush1.msra.mxu0 0.0
    %713 = vmatprep.subr.mxu0 0.0
    %714 = vmatpush1.msra.mxu0 0.0
    %715 = vmatprep.subr.mxu0 0.0
    %716 = vmatpush1.msra.mxu0 %v378
    %717 = vmatprep.subr.mxu0 0.0
    %718 = vmatpush1.msra.mxu0 %v377
    %719 = vmatprep.subr.mxu0 0.0
    %720 = vmatpush1.msra.mxu0 %v376
    %721 = vmatprep.subr.mxu0 0.0
    %722 = vmatpush1.msra.mxu0 %v375
    %723 = vmatprep.subr.mxu0 0.0
    %724 = vmatpush2.msra.mxu0 0.0
    %725 = vmatprep.subr.mxu0 0.0
    %726 = vmatpush2.msra.mxu0 0.0
    %727 = vmatprep.subr.mxu0 0.0
    %728 = vmatpush2.msra.mxu0 0.0
    %729 = vmatprep.subr.mxu0 0.0
    %730 = vmatpush2.msra.mxu0 0.0
    %731 = vmatprep.subr.mxu0 0.0
    %732 = vmatpush2.msra.mxu0 0.0
    %733 = vmatprep.subr.mxu0 0.0
    %734 = vmatpush2.msra.mxu0 0.0
    %735 = vmatprep.subr.mxu0 0.0
    %736 = vmatpush2.msra.mxu0 0.0
    %737 = vmatprep.subr.mxu0 0.0
    %738 = vmatpush2.msra.mxu0 0.0
    %739 = vmatprep.subr.mxu0 0.0
    %740 = vmatpush2.msra.mxu0 0.0
    %741 = vmatprep.subr.mxu0 0.0
    %742 = vmatpush2.msra.mxu0 0.0
    %743 = vmatprep.subr.mxu0 0.0
    %744 = vmatpush2.msra.mxu0 0.0
    %745 = vmatprep.subr.mxu0 0.0
    %746 = vmatpush2.msra.mxu0 0.0
    %747 = vmatprep.subr.mxu0 0.0
    %748 = vmatpush2.msra.mxu0 0.0
    %749 = vmatprep.subr.mxu0 0.0
    %750 = vmatpush2.msra.mxu0 0.0
    %751 = vmatprep.subr.mxu0 0.0
    %752 = vmatpush2.msra.mxu0 0.0
    %753 = vmatprep.subr.mxu0 0.0
    %754 = vmatpush2.msra.mxu0 0.0
    %755 = vmatprep.mubr.f32.mxu0 0.0
    %756 = vmatmul.mubr.f32.gmra.mxu0 %v689
    %v757 = vpop.f32.mrf.mxu0
    %v758 = vadd.f32 %v683, %v757
    %v759 = vpop.f32.mrf.mxu0
    %760 = vdwg.mxu0
    %v761 = vadd.f32 %v758, %v412
    %v762 = vxor.u32 %v761, 2147483648
    %v763 = vmul.f32 %v762, 1.442695
    %v764 = vpow.pop %v763
    %v765 = vadd.f32 %v764, 1.0
    %v766 = vrcp.pop %v765
    %v767 = vmul.f32 1.0, %v766
    %v768 = vtanh.pop %v761
    %v769 = vmul.f32 %v767, 0.0
    %771 = vrot.lane.b32.xlu0 %v768, 32
    %v772 = vpop.permute.xlu0 %771
    %v774 = vmul.f32 %v767, %v772
    %776 = vrot.lane.b32.xlu0 %v774, 32
    %v777 = vpop.permute.xlu0 %776
    %v779 = vadd.f32 %v769, %v777
    %v780 = vtanh.pop %v779
    %782 = vrot.lane.b32.xlu0 %v780, 32
    %v783 = vpop.permute.xlu0 %782
    %v785 = vmul.f32 %v767, %v783
    %786 = vmatprep.subr.mxu0 0.0
    %787 = vmatpush1.msra.mxu0 0.0
    %788 = vmatprep.subr.mxu0 0.0
    %789 = vmatpush1.msra.mxu0 0.0
    %790 = vmatprep.subr.mxu0 0.0
    %791 = vmatpush1.msra.mxu0 0.0
    %792 = vmatprep.subr.mxu0 0.0
    %793 = vmatpush1.msra.mxu0 0.0
    %794 = vmatprep.subr.mxu0 0.0
    %795 = vmatpush1.msra.mxu0 0.0
    %796 = vmatprep.subr.mxu0 0.0
    %797 = vmatpush1.msra.mxu0 0.0
    %798 = vmatprep.subr.mxu0 0.0
    %799 = vmatpush1.msra.mxu0 0.0
    %800 = vmatprep.subr.mxu0 0.0
    %801 = vmatpush1.msra.mxu0 0.0
    %802 = vmatprep.subr.mxu0 0.0
    %803 = vmatpush1.msra.mxu0 0.0
    %804 = vmatprep.subr.mxu0 0.0
    %805 = vmatpush1.msra.mxu0 0.0
    %806 = vmatprep.subr.mxu0 0.0
    %807 = vmatpush1.msra.mxu0 0.0
    %808 = vmatprep.subr.mxu0 0.0
    %809 = vmatpush1.msra.mxu0 0.0
    %810 = vmatprep.subr.mxu0 0.0
    %811 = vmatpush1.msra.mxu0 %v382
    %812 = vmatprep.subr.mxu0 0.0
    %813 = vmatpush1.msra.mxu0 %v381
    %814 = vmatprep.subr.mxu0 0.0
    %815 = vmatpush1.msra.mxu0 %v380
    %816 = vmatprep.subr.mxu0 0.0
    %817 = vmatpush1.msra.mxu0 %v379
    %818 = vmatprep.subr.mxu0 0.0
    %819 = vmatpush2.msra.mxu0 0.0
    %820 = vmatprep.subr.mxu0 0.0
    %821 = vmatpush2.msra.mxu0 0.0
    %822 = vmatprep.subr.mxu0 0.0
    %823 = vmatpush2.msra.mxu0 0.0
    %824 = vmatprep.subr.mxu0 0.0
    %825 = vmatpush2.msra.mxu0 0.0
    %826 = vmatprep.subr.mxu0 0.0
    %827 = vmatpush2.msra.mxu0 0.0
    %828 = vmatprep.subr.mxu0 0.0
    %829 = vmatpush2.msra.mxu0 0.0
    %830 = vmatprep.subr.mxu0 0.0
    %831 = vmatpush2.msra.mxu0 0.0
    %832 = vmatprep.subr.mxu0 0.0
    %833 = vmatpush2.msra.mxu0 0.0
    %834 = vmatprep.subr.mxu0 0.0
    %835 = vmatpush2.msra.mxu0 0.0
    %836 = vmatprep.subr.mxu0 0.0
    %837 = vmatpush2.msra.mxu0 0.0
    %838 = vmatprep.subr.mxu0 0.0
    %839 = vmatpush2.msra.mxu0 0.0
    %840 = vmatprep.subr.mxu0 0.0
    %841 = vmatpush2.msra.mxu0 0.0
    %842 = vmatprep.subr.mxu0 0.0
    %843 = vmatpush2.msra.mxu0 0.0
    %844 = vmatprep.subr.mxu0 0.0
    %845 = vmatpush2.msra.mxu0 0.0
    %846 = vmatprep.subr.mxu0 0.0
    %847 = vmatpush2.msra.mxu0 0.0
    %848 = vmatprep.subr.mxu0 0.0
    %849 = vmatpush2.msra.mxu0 0.0
    %850 = vmatprep.mubr.f32.mxu0 0.0
    %851 = vmatmul.mubr.f32.gmra.mxu0 %v689
    %v852 = vpop.f32.mrf.mxu0
    %v853 = vadd.f32 0.0, %v852
    %v854 = vpop.f32.mrf.mxu0
    %855 = vdwg.mxu0
    %v857 = vrot.slane %v853, 6
    %v859 = vadd.f32 %v510, %v857
    %v860 = vxor.u32 %v859, 2147483648
    %v861 = vmul.f32 %v860, 1.442695
    %v862 = vpow.pop %v861
    %v863 = vadd.f32 %v862, 1.0
    %v864 = vrcp.pop %v863
    %v865 = vmul.f32 1.0, %v864
    %v866 = vtanh.pop %v859
    %v868 = vrot.slane %v609, 6
    %v870 = vmul.f32 %v865, %v868
    %872 = vrot.lane.b32.xlu0 %v866, 32
    %v873 = vpop.permute.xlu0 %872
    %v875 = vmul.f32 %v865, %v873
    %877 = vrot.lane.b32.xlu0 %v875, 32
    %v878 = vpop.permute.xlu0 %877
    %v880 = vadd.f32 %v870, %v878
    %v881 = vtanh.pop %v880
    %883 = vrot.lane.b32.xlu0 %v881, 32
    %v884 = vpop.permute.xlu0 %883
    %v886 = vmul.f32 %v865, %v884
    %888 = vrot.lane.b32.xlu0 %v785, 64
    %v889 = vpop.permute.xlu0 %888
    %v890 = vsel %vm436, %v889, 0
    %892 = vmatprep.subr.mxu0 0.0
    %893 = vmatpush1.msra.mxu0 0.0
    %894 = vmatprep.subr.mxu0 0.0
    %895 = vmatpush1.msra.mxu0 0.0
    %896 = vmatprep.subr.mxu0 0.0
    %897 = vmatpush1.msra.mxu0 0.0
    %898 = vmatprep.subr.mxu0 0.0
    %899 = vmatpush1.msra.mxu0 0.0
    %900 = vmatprep.subr.mxu0 0.0
    %901 = vmatpush1.msra.mxu0 0.0
    %902 = vmatprep.subr.mxu0 0.0
    %903 = vmatpush1.msra.mxu0 0.0
    %904 = vmatprep.subr.mxu0 0.0
    %905 = vmatpush1.msra.mxu0 0.0
    %906 = vmatprep.subr.mxu0 0.0
    %907 = vmatpush1.msra.mxu0 0.0
    %908 = vmatprep.subr.mxu0 0.0
    %909 = vmatpush1.msra.mxu0 0.0
    %910 = vmatprep.subr.mxu0 0.0
    %911 = vmatpush1.msra.mxu0 0.0
    %912 = vmatprep.subr.mxu0 0.0
    %913 = vmatpush1.msra.mxu0 0.0
    %914 = vmatprep.subr.mxu0 0.0
    %915 = vmatpush1.msra.mxu0 0.0
    %916 = vmatprep.subr.mxu0 0.0
    %917 = vmatpush1.msra.mxu0 %v387
    %918 = vmatprep.subr.mxu0 0.0
    %919 = vmatpush1.msra.mxu0 %v386
    %920 = vmatprep.subr.mxu0 0.0
    %921 = vmatpush1.msra.mxu0 %v385
    %922 = vmatprep.subr.mxu0 0.0
    %923 = vmatpush1.msra.mxu0 %v384
    %924 = vmatprep.subr.mxu0 0.0
    %925 = vmatpush2.msra.mxu0 0.0
    %926 = vmatprep.subr.mxu0 0.0
    %927 = vmatpush2.msra.mxu0 0.0
    %928 = vmatprep.subr.mxu0 0.0
    %929 = vmatpush2.msra.mxu0 0.0
    %930 = vmatprep.subr.mxu0 0.0
    %931 = vmatpush2.msra.mxu0 0.0
    %932 = vmatprep.subr.mxu0 0.0
    %933 = vmatpush2.msra.mxu0 0.0
    %934 = vmatprep.subr.mxu0 0.0
    %935 = vmatpush2.msra.mxu0 0.0
    %936 = vmatprep.subr.mxu0 0.0
    %937 = vmatpush2.msra.mxu0 0.0
    %938 = vmatprep.subr.mxu0 0.0
    %939 = vmatpush2.msra.mxu0 0.0
    %940 = vmatprep.subr.mxu0 0.0
    %941 = vmatpush2.msra.mxu0 0.0
    %942 = vmatprep.subr.mxu0 0.0
    %943 = vmatpush2.msra.mxu0 0.0
    %944 = vmatprep.subr.mxu0 0.0
    %945 = vmatpush2.msra.mxu0 0.0
    %946 = vmatprep.subr.mxu0 0.0
    %947 = vmatpush2.msra.mxu0 0.0
    %948 = vmatprep.subr.mxu0 0.0
    %949 = vmatpush2.msra.mxu0 0.0
    %950 = vmatprep.subr.mxu0 0.0
    %951 = vmatpush2.msra.mxu0 0.0
    %952 = vmatprep.subr.mxu0 0.0
    %953 = vmatpush2.msra.mxu0 0.0
    %954 = vmatprep.subr.mxu0 0.0
    %955 = vmatpush2.msra.mxu0 0.0
    %956 = vmatprep.mubr.f32.mxu0 0.0
    %957 = vmatmul.mubr.f32.gmra.mxu0 %v890
    %v958 = vpop.f32.mrf.mxu0
    %v959 = vadd.f32 0.0, %v958
    %v960 = vpop.f32.mrf.mxu0
    %961 = vdwg.mxu0
    %v963 = vrot.slane %v886, 2
    %964 = vrot.lane.b32.xlu0 %v963, 64
    %v965 = vpop.permute.xlu0 %964
    %v966 = vsel %vm436, %v965, 0
    %968 = vmatprep.subr.mxu0 0.0
    %969 = vmatpush1.msra.mxu0 0.0
    %970 = vmatprep.subr.mxu0 0.0
    %971 = vmatpush1.msra.mxu0 0.0
    %972 = vmatprep.subr.mxu0 0.0
    %973 = vmatpush1.msra.mxu0 0.0
    %974 = vmatprep.subr.mxu0 0.0
    %975 = vmatpush1.msra.mxu0 0.0
    %976 = vmatprep.subr.mxu0 0.0
    %977 = vmatpush1.msra.mxu0 0.0
    %978 = vmatprep.subr.mxu0 0.0
    %979 = vmatpush1.msra.mxu0 0.0
    %980 = vmatprep.subr.mxu0 0.0
    %981 = vmatpush1.msra.mxu0 0.0
    %982 = vmatprep.subr.mxu0 0.0
    %983 = vmatpush1.msra.mxu0 0.0
    %984 = vmatprep.subr.mxu0 0.0
    %985 = vmatpush1.msra.mxu0 0.0
    %986 = vmatprep.subr.mxu0 0.0
    %987 = vmatpush1.msra.mxu0 0.0
    %988 = vmatprep.subr.mxu0 0.0
    %989 = vmatpush1.msra.mxu0 0.0
    %990 = vmatprep.subr.mxu0 0.0
    %991 = vmatpush1.msra.mxu0 0.0
    %992 = vmatprep.subr.mxu0 0.0
    %993 = vmatpush1.msra.mxu0 %v378
    %994 = vmatprep.subr.mxu0 0.0
    %995 = vmatpush1.msra.mxu0 %v377
    %996 = vmatprep.subr.mxu0 0.0
    %997 = vmatpush1.msra.mxu0 %v376
    %998 = vmatprep.subr.mxu0 0.0
    %999 = vmatpush1.msra.mxu0 %v375
    %1000 = vmatprep.subr.mxu0 0.0
    %1001 = vmatpush2.msra.mxu0 0.0
    %1002 = vmatprep.subr.mxu0 0.0
    %1003 = vmatpush2.msra.mxu0 0.0
    %1004 = vmatprep.subr.mxu0 0.0
    %1005 = vmatpush2.msra.mxu0 0.0
    %1006 = vmatprep.subr.mxu0 0.0
    %1007 = vmatpush2.msra.mxu0 0.0
    %1008 = vmatprep.subr.mxu0 0.0
    %1009 = vmatpush2.msra.mxu0 0.0
    %1010 = vmatprep.subr.mxu0 0.0
    %1011 = vmatpush2.msra.mxu0 0.0
    %1012 = vmatprep.subr.mxu0 0.0
    %1013 = vmatpush2.msra.mxu0 0.0
    %1014 = vmatprep.subr.mxu0 0.0
    %1015 = vmatpush2.msra.mxu0 0.0
    %1016 = vmatprep.subr.mxu0 0.0
    %1017 = vmatpush2.msra.mxu0 0.0
    %1018 = vmatprep.subr.mxu0 0.0
    %1019 = vmatpush2.msra.mxu0 0.0
    %1020 = vmatprep.subr.mxu0 0.0
    %1021 = vmatpush2.msra.mxu0 0.0
    %1022 = vmatprep.subr.mxu0 0.0
    %1023 = vmatpush2.msra.mxu0 0.0
    %1024 = vmatprep.subr.mxu0 0.0
    %1025 = vmatpush2.msra.mxu0 0.0
    %1026 = vmatprep.subr.mxu0 0.0
    %1027 = vmatpush2.msra.mxu0 0.0
    %1028 = vmatprep.subr.mxu0 0.0
    %1029 = vmatpush2.msra.mxu0 0.0
    %1030 = vmatprep.subr.mxu0 0.0
    %1031 = vmatpush2.msra.mxu0 0.0
    %1032 = vmatprep.mubr.f32.mxu0 0.0
    %1033 = vmatmul.mubr.f32.gmra.mxu0 %v966
    %v1034 = vpop.f32.mrf.mxu0
    %v1035 = vadd.f32 %v959, %v1034
    %v1036 = vpop.f32.mrf.mxu0
    %1037 = vdwg.mxu0
    %v1038 = vadd.f32 %v1035, %v412
    %v1039 = vxor.u32 %v1038, 2147483648
    %v1040 = vmul.f32 %v1039, 1.442695
    %v1041 = vpow.pop %v1040
    %v1042 = vadd.f32 %v1041, 1.0
    %v1043 = vrcp.pop %v1042
    %v1044 = vmul.f32 1.0, %v1043
    %v1045 = vtanh.pop %v1038
    %v1046 = vmul.f32 %v1044, %v779
    %1048 = vrot.lane.b32.xlu0 %v1045, 32
    %v1049 = vpop.permute.xlu0 %1048
    %v1051 = vmul.f32 %v1044, %v1049
    %1053 = vrot.lane.b32.xlu0 %v1051, 32
    %v1054 = vpop.permute.xlu0 %1053
    %v1056 = vadd.f32 %v1046, %v1054
    %v1057 = vtanh.pop %v1056
    %1059 = vrot.lane.b32.xlu0 %v1057, 32
    %v1060 = vpop.permute.xlu0 %1059
    %v1062 = vmul.f32 %v1044, %v1060
    %1063 = vmatprep.subr.mxu0 0.0
    %1064 = vmatpush1.msra.mxu0 0.0
    %1065 = vmatprep.subr.mxu0 0.0
    %1066 = vmatpush1.msra.mxu0 0.0
    %1067 = vmatprep.subr.mxu0 0.0
    %1068 = vmatpush1.msra.mxu0 0.0
    %1069 = vmatprep.subr.mxu0 0.0
    %1070 = vmatpush1.msra.mxu0 0.0
    %1071 = vmatprep.subr.mxu0 0.0
    %1072 = vmatpush1.msra.mxu0 0.0
    %1073 = vmatprep.subr.mxu0 0.0
    %1074 = vmatpush1.msra.mxu0 0.0
    %1075 = vmatprep.subr.mxu0 0.0
    %1076 = vmatpush1.msra.mxu0 0.0
    %1077 = vmatprep.subr.mxu0 0.0
    %1078 = vmatpush1.msra.mxu0 0.0
    %1079 = vmatprep.subr.mxu0 0.0
    %1080 = vmatpush1.msra.mxu0 0.0
    %1081 = vmatprep.subr.mxu0 0.0
    %1082 = vmatpush1.msra.mxu0 0.0
    %1083 = vmatprep.subr.mxu0 0.0
    %1084 = vmatpush1.msra.mxu0 0.0
    %1085 = vmatprep.subr.mxu0 0.0
    %1086 = vmatpush1.msra.mxu0 0.0
    %1087 = vmatprep.subr.mxu0 0.0
    %1088 = vmatpush1.msra.mxu0 %v382
    %1089 = vmatprep.subr.mxu0 0.0
    %1090 = vmatpush1.msra.mxu0 %v381
    %1091 = vmatprep.subr.mxu0 0.0
    %1092 = vmatpush1.msra.mxu0 %v380
    %1093 = vmatprep.subr.mxu0 0.0
    %1094 = vmatpush1.msra.mxu0 %v379
    %1095 = vmatprep.subr.mxu0 0.0
    %1096 = vmatpush2.msra.mxu0 0.0
    %1097 = vmatprep.subr.mxu0 0.0
    %1098 = vmatpush2.msra.mxu0 0.0
    %1099 = vmatprep.subr.mxu0 0.0
    %1100 = vmatpush2.msra.mxu0 0.0
    %1101 = vmatprep.subr.mxu0 0.0
    %1102 = vmatpush2.msra.mxu0 0.0
    %1103 = vmatprep.subr.mxu0 0.0
    %1104 = vmatpush2.msra.mxu0 0.0
    %1105 = vmatprep.subr.mxu0 0.0
    %1106 = vmatpush2.msra.mxu0 0.0
    %1107 = vmatprep.subr.mxu0 0.0
    %1108 = vmatpush2.msra.mxu0 0.0
    %1109 = vmatprep.subr.mxu0 0.0
    %1110 = vmatpush2.msra.mxu0 0.0
    %1111 = vmatprep.subr.mxu0 0.0
    %1112 = vmatpush2.msra.mxu0 0.0
    %1113 = vmatprep.subr.mxu0 0.0
    %1114 = vmatpush2.msra.mxu0 0.0
    %1115 = vmatprep.subr.mxu0 0.0
    %1116 = vmatpush2.msra.mxu0 0.0
    %1117 = vmatprep.subr.mxu0 0.0
    %1118 = vmatpush2.msra.mxu0 0.0
    %1119 = vmatprep.subr.mxu0 0.0
    %1120 = vmatpush2.msra.mxu0 0.0
    %1121 = vmatprep.subr.mxu0 0.0
    %1122 = vmatpush2.msra.mxu0 0.0
    %1123 = vmatprep.subr.mxu0 0.0
    %1124 = vmatpush2.msra.mxu0 0.0
    %1125 = vmatprep.subr.mxu0 0.0
    %1126 = vmatpush2.msra.mxu0 0.0
    %1127 = vmatprep.mubr.f32.mxu0 0.0
    %1128 = vmatmul.mubr.f32.gmra.mxu0 %v966
    %v1129 = vpop.f32.mrf.mxu0
    %v1130 = vadd.f32 0.0, %v1129
    %v1131 = vpop.f32.mrf.mxu0
    %1132 = vdwg.mxu0
    %v1134 = vrot.slane %v1130, 4
    %v1136 = vadd.f32 %v510, %v1134
    %v1137 = vxor.u32 %v1136, 2147483648
    %v1138 = vmul.f32 %v1137, 1.442695
    %v1139 = vpow.pop %v1138
    %v1140 = vadd.f32 %v1139, 1.0
    %v1141 = vrcp.pop %v1140
    %v1142 = vmul.f32 1.0, %v1141
    %v1143 = vtanh.pop %v1136
    %v1145 = vrot.slane %v880, 6
    %v1147 = vmul.f32 %v1142, %v1145
    %1149 = vrot.lane.b32.xlu0 %v1143, 32
    %v1150 = vpop.permute.xlu0 %1149
    %v1152 = vmul.f32 %v1142, %v1150
    %1154 = vrot.lane.b32.xlu0 %v1152, 32
    %v1155 = vpop.permute.xlu0 %1154
    %v1157 = vadd.f32 %v1147, %v1155
    %v1158 = vtanh.pop %v1157
    %1160 = vrot.lane.b32.xlu0 %v1158, 32
    %v1161 = vpop.permute.xlu0 %1160
    %v1163 = vmul.f32 %v1142, %v1161
    %1165 = vrot.lane.b32.xlu0 %v1062, 64
    %v1166 = vpop.permute.xlu0 %1165
    %v1167 = vsel %vm436, %v1166, 0
    %1169 = vmatprep.subr.mxu0 0.0
    %1170 = vmatpush1.msra.mxu0 0.0
    %1171 = vmatprep.subr.mxu0 0.0
    %1172 = vmatpush1.msra.mxu0 0.0
    %1173 = vmatprep.subr.mxu0 0.0
    %1174 = vmatpush1.msra.mxu0 0.0
    %1175 = vmatprep.subr.mxu0 0.0
    %1176 = vmatpush1.msra.mxu0 0.0
    %1177 = vmatprep.subr.mxu0 0.0
    %1178 = vmatpush1.msra.mxu0 0.0
    %1179 = vmatprep.subr.mxu0 0.0
    %1180 = vmatpush1.msra.mxu0 0.0
    %1181 = vmatprep.subr.mxu0 0.0
    %1182 = vmatpush1.msra.mxu0 0.0
    %1183 = vmatprep.subr.mxu0 0.0
    %1184 = vmatpush1.msra.mxu0 0.0
    %1185 = vmatprep.subr.mxu0 0.0
    %1186 = vmatpush1.msra.mxu0 0.0
    %1187 = vmatprep.subr.mxu0 0.0
    %1188 = vmatpush1.msra.mxu0 0.0
    %1189 = vmatprep.subr.mxu0 0.0
    %1190 = vmatpush1.msra.mxu0 0.0
    %1191 = vmatprep.subr.mxu0 0.0
    %1192 = vmatpush1.msra.mxu0 0.0
    %1193 = vmatprep.subr.mxu0 0.0
    %1194 = vmatpush1.msra.mxu0 %v387
    %1195 = vmatprep.subr.mxu0 0.0
    %1196 = vmatpush1.msra.mxu0 %v386
    %1197 = vmatprep.subr.mxu0 0.0
    %1198 = vmatpush1.msra.mxu0 %v385
    %1199 = vmatprep.subr.mxu0 0.0
    %1200 = vmatpush1.msra.mxu0 %v384
    %1201 = vmatprep.subr.mxu0 0.0
    %1202 = vmatpush2.msra.mxu0 0.0
    %1203 = vmatprep.subr.mxu0 0.0
    %1204 = vmatpush2.msra.mxu0 0.0
    %1205 = vmatprep.subr.mxu0 0.0
    %1206 = vmatpush2.msra.mxu0 0.0
    %1207 = vmatprep.subr.mxu0 0.0
    %1208 = vmatpush2.msra.mxu0 0.0
    %1209 = vmatprep.subr.mxu0 0.0
    %1210 = vmatpush2.msra.mxu0 0.0
    %1211 = vmatprep.subr.mxu0 0.0
    %1212 = vmatpush2.msra.mxu0 0.0
    %1213 = vmatprep.subr.mxu0 0.0
    %1214 = vmatpush2.msra.mxu0 0.0
    %1215 = vmatprep.subr.mxu0 0.0
    %1216 = vmatpush2.msra.mxu0 0.0
    %1217 = vmatprep.subr.mxu0 0.0
    %1218 = vmatpush2.msra.mxu0 0.0
    %1219 = vmatprep.subr.mxu0 0.0
    %1220 = vmatpush2.msra.mxu0 0.0
    %1221 = vmatprep.subr.mxu0 0.0
    %1222 = vmatpush2.msra.mxu0 0.0
    %1223 = vmatprep.subr.mxu0 0.0
    %1224 = vmatpush2.msra.mxu0 0.0
    %1225 = vmatprep.subr.mxu0 0.0
    %1226 = vmatpush2.msra.mxu0 0.0
    %1227 = vmatprep.subr.mxu0 0.0
    %1228 = vmatpush2.msra.mxu0 0.0
    %1229 = vmatprep.subr.mxu0 0.0
    %1230 = vmatpush2.msra.mxu0 0.0
    %1231 = vmatprep.subr.mxu0 0.0
    %1232 = vmatpush2.msra.mxu0 0.0
    %1233 = vmatprep.mubr.f32.mxu0 0.0
    %1234 = vmatmul.mubr.f32.gmra.mxu0 %v1167
    %v1235 = vpop.f32.mrf.mxu0
    %v1236 = vadd.f32 0.0, %v1235
    %v1237 = vpop.f32.mrf.mxu0
    %1238 = vdwg.mxu0
    %v1240 = vrot.slane %v1163, 4
    %1241 = vrot.lane.b32.xlu0 %v1240, 64
    %v1242 = vpop.permute.xlu0 %1241
    %v1243 = vsel %vm436, %v1242, 0
    %1245 = vmatprep.subr.mxu0 0.0
    %1246 = vmatpush1.msra.mxu0 0.0
    %1247 = vmatprep.subr.mxu0 0.0
    %1248 = vmatpush1.msra.mxu0 0.0
    %1249 = vmatprep.subr.mxu0 0.0
    %1250 = vmatpush1.msra.mxu0 0.0
    %1251 = vmatprep.subr.mxu0 0.0
    %1252 = vmatpush1.msra.mxu0 0.0
    %1253 = vmatprep.subr.mxu0 0.0
    %1254 = vmatpush1.msra.mxu0 0.0
    %1255 = vmatprep.subr.mxu0 0.0
    %1256 = vmatpush1.msra.mxu0 0.0
    %1257 = vmatprep.subr.mxu0 0.0
    %1258 = vmatpush1.msra.mxu0 0.0
    %1259 = vmatprep.subr.mxu0 0.0
    %1260 = vmatpush1.msra.mxu0 0.0
    %1261 = vmatprep.subr.mxu0 0.0
    %1262 = vmatpush1.msra.mxu0 0.0
    %1263 = vmatprep.subr.mxu0 0.0
    %1264 = vmatpush1.msra.mxu0 0.0
    %1265 = vmatprep.subr.mxu0 0.0
    %1266 = vmatpush1.msra.mxu0 0.0
    %1267 = vmatprep.subr.mxu0 0.0
    %1268 = vmatpush1.msra.mxu0 0.0
    %1269 = vmatprep.subr.mxu0 0.0
    %1270 = vmatpush1.msra.mxu0 %v378
    %1271 = vmatprep.subr.mxu0 0.0
    %1272 = vmatpush1.msra.mxu0 %v377
    %1273 = vmatprep.subr.mxu0 0.0
    %1274 = vmatpush1.msra.mxu0 %v376
    %1275 = vmatprep.subr.mxu0 0.0
    %1276 = vmatpush1.msra.mxu0 %v375
    %1277 = vmatprep.subr.mxu0 0.0
    %1278 = vmatpush2.msra.mxu0 0.0
    %1279 = vmatprep.subr.mxu0 0.0
    %1280 = vmatpush2.msra.mxu0 0.0
    %1281 = vmatprep.subr.mxu0 0.0
    %1282 = vmatpush2.msra.mxu0 0.0
    %1283 = vmatprep.subr.mxu0 0.0
    %1284 = vmatpush2.msra.mxu0 0.0
    %1285 = vmatprep.subr.mxu0 0.0
    %1286 = vmatpush2.msra.mxu0 0.0
    %1287 = vmatprep.subr.mxu0 0.0
    %1288 = vmatpush2.msra.mxu0 0.0
    %1289 = vmatprep.subr.mxu0 0.0
    %1290 = vmatpush2.msra.mxu0 0.0
    %1291 = vmatprep.subr.mxu0 0.0
    %1292 = vmatpush2.msra.mxu0 0.0
    %1293 = vmatprep.subr.mxu0 0.0
    %1294 = vmatpush2.msra.mxu0 0.0
    %1295 = vmatprep.subr.mxu0 0.0
    %1296 = vmatpush2.msra.mxu0 0.0
    %1297 = vmatprep.subr.mxu0 0.0
    %1298 = vmatpush2.msra.mxu0 0.0
    %1299 = vmatprep.subr.mxu0 0.0
    %1300 = vmatpush2.msra.mxu0 0.0
    %1301 = vmatprep.subr.mxu0 0.0
    %1302 = vmatpush2.msra.mxu0 0.0
    %1303 = vmatprep.subr.mxu0 0.0
    %1304 = vmatpush2.msra.mxu0 0.0
    %1305 = vmatprep.subr.mxu0 0.0
    %1306 = vmatpush2.msra.mxu0 0.0
    %1307 = vmatprep.subr.mxu0 0.0
    %1308 = vmatpush2.msra.mxu0 0.0
    %1309 = vmatprep.mubr.f32.mxu0 0.0
    %1310 = vmatmul.mubr.f32.gmra.mxu0 %v1243
    %v1311 = vpop.f32.mrf.mxu0
    %v1312 = vadd.f32 %v1236, %v1311
    %v1313 = vpop.f32.mrf.mxu0
    %1314 = vdwg.mxu0
    %v1315 = vadd.f32 %v1312, %v412
    %v1316 = vxor.u32 %v1315, 2147483648
    %v1317 = vmul.f32 %v1316, 1.442695
    %v1318 = vpow.pop %v1317
    %v1319 = vadd.f32 %v1318, 1.0
    %v1320 = vrcp.pop %v1319
    %v1321 = vmul.f32 1.0, %v1320
    %v1322 = vtanh.pop %v1315
    %v1323 = vmul.f32 %v1321, %v1056
    %1325 = vrot.lane.b32.xlu0 %v1322, 32
    %v1326 = vpop.permute.xlu0 %1325
    %v1328 = vmul.f32 %v1321, %v1326
    %1330 = vrot.lane.b32.xlu0 %v1328, 32
    %v1331 = vpop.permute.xlu0 %1330
    %v1333 = vadd.f32 %v1323, %v1331
    %v1334 = vtanh.pop %v1333
    %1336 = vrot.lane.b32.xlu0 %v1334, 32
    %v1337 = vpop.permute.xlu0 %1336
    %v1339 = vmul.f32 %v1321, %v1337
    %1340 = vmatprep.subr.mxu0 0.0
    %1341 = vmatpush1.msra.mxu0 0.0
    %1342 = vmatprep.subr.mxu0 0.0
    %1343 = vmatpush1.msra.mxu0 0.0
    %1344 = vmatprep.subr.mxu0 0.0
    %1345 = vmatpush1.msra.mxu0 0.0
    %1346 = vmatprep.subr.mxu0 0.0
    %1347 = vmatpush1.msra.mxu0 0.0
    %1348 = vmatprep.subr.mxu0 0.0
    %1349 = vmatpush1.msra.mxu0 0.0
    %1350 = vmatprep.subr.mxu0 0.0
    %1351 = vmatpush1.msra.mxu0 0.0
    %1352 = vmatprep.subr.mxu0 0.0
    %1353 = vmatpush1.msra.mxu0 0.0
    %1354 = vmatprep.subr.mxu0 0.0
    %1355 = vmatpush1.msra.mxu0 0.0
    %1356 = vmatprep.subr.mxu0 0.0
    %1357 = vmatpush1.msra.mxu0 0.0
    %1358 = vmatprep.subr.mxu0 0.0
    %1359 = vmatpush1.msra.mxu0 0.0
    %1360 = vmatprep.subr.mxu0 0.0
    %1361 = vmatpush1.msra.mxu0 0.0
    %1362 = vmatprep.subr.mxu0 0.0
    %1363 = vmatpush1.msra.mxu0 0.0
    %1364 = vmatprep.subr.mxu0 0.0
    %1365 = vmatpush1.msra.mxu0 %v382
    %1366 = vmatprep.subr.mxu0 0.0
    %1367 = vmatpush1.msra.mxu0 %v381
    %1368 = vmatprep.subr.mxu0 0.0
    %1369 = vmatpush1.msra.mxu0 %v380
    %1370 = vmatprep.subr.mxu0 0.0
    %1371 = vmatpush1.msra.mxu0 %v379
    %1372 = vmatprep.subr.mxu0 0.0
    %1373 = vmatpush2.msra.mxu0 0.0
    %1374 = vmatprep.subr.mxu0 0.0
    %1375 = vmatpush2.msra.mxu0 0.0
    %1376 = vmatprep.subr.mxu0 0.0
    %1377 = vmatpush2.msra.mxu0 0.0
    %1378 = vmatprep.subr.mxu0 0.0
    %1379 = vmatpush2.msra.mxu0 0.0
    %1380 = vmatprep.subr.mxu0 0.0
    %1381 = vmatpush2.msra.mxu0 0.0
    %1382 = vmatprep.subr.mxu0 0.0
    %1383 = vmatpush2.msra.mxu0 0.0
    %1384 = vmatprep.subr.mxu0 0.0
    %1385 = vmatpush2.msra.mxu0 0.0
    %1386 = vmatprep.subr.mxu0 0.0
    %1387 = vmatpush2.msra.mxu0 0.0
    %1388 = vmatprep.subr.mxu0 0.0
    %1389 = vmatpush2.msra.mxu0 0.0
    %1390 = vmatprep.subr.mxu0 0.0
    %1391 = vmatpush2.msra.mxu0 0.0
    %1392 = vmatprep.subr.mxu0 0.0
    %1393 = vmatpush2.msra.mxu0 0.0
    %1394 = vmatprep.subr.mxu0 0.0
    %1395 = vmatpush2.msra.mxu0 0.0
    %1396 = vmatprep.subr.mxu0 0.0
    %1397 = vmatpush2.msra.mxu0 0.0
    %1398 = vmatprep.subr.mxu0 0.0
    %1399 = vmatpush2.msra.mxu0 0.0
    %1400 = vmatprep.subr.mxu0 0.0
    %1401 = vmatpush2.msra.mxu0 0.0
    %1402 = vmatprep.subr.mxu0 0.0
    %1403 = vmatpush2.msra.mxu0 0.0
    %1404 = vmatprep.mubr.f32.mxu0 0.0
    %1405 = vmatmul.mubr.f32.gmra.mxu0 %v1243
    %v1406 = vpop.f32.mrf.mxu0
    %v1407 = vadd.f32 0.0, %v1406
    %v1408 = vpop.f32.mrf.mxu0
    %1409 = vdwg.mxu0
    %v1411 = vrot.slane %v1407, 2
    %v1413 = vadd.f32 %v510, %v1411
    %v1414 = vxor.u32 %v1413, 2147483648
    %v1415 = vmul.f32 %v1414, 1.442695
    %v1416 = vpow.pop %v1415
    %v1417 = vadd.f32 %v1416, 1.0
    %v1418 = vrcp.pop %v1417
    %v1419 = vmul.f32 1.0, %v1418
    %v1420 = vtanh.pop %v1413
    %v1422 = vrot.slane %v1157, 6
    %v1424 = vmul.f32 %v1419, %v1422
    %1426 = vrot.lane.b32.xlu0 %v1420, 32
    %v1427 = vpop.permute.xlu0 %1426
    %v1429 = vmul.f32 %v1419, %v1427
    %1431 = vrot.lane.b32.xlu0 %v1429, 32
    %v1432 = vpop.permute.xlu0 %1431
    %v1434 = vadd.f32 %v1424, %v1432
    %v1435 = vtanh.pop %v1434
    %1437 = vrot.lane.b32.xlu0 %v1435, 32
    %v1438 = vpop.permute.xlu0 %1437
    %v1440 = vmul.f32 %v1419, %v1438
    %1442 = vrot.lane.b32.xlu0 %v1339, 64
    %v1443 = vpop.permute.xlu0 %1442
    %v1444 = vsel %vm436, %v1443, 0
    %1446 = vmatprep.subr.mxu0 0.0
    %1447 = vmatpush1.msra.mxu0 0.0
    %1448 = vmatprep.subr.mxu0 0.0
    %1449 = vmatpush1.msra.mxu0 0.0
    %1450 = vmatprep.subr.mxu0 0.0
    %1451 = vmatpush1.msra.mxu0 0.0
    %1452 = vmatprep.subr.mxu0 0.0
    %1453 = vmatpush1.msra.mxu0 0.0
    %1454 = vmatprep.subr.mxu0 0.0
    %1455 = vmatpush1.msra.mxu0 0.0
    %1456 = vmatprep.subr.mxu0 0.0
    %1457 = vmatpush1.msra.mxu0 0.0
    %1458 = vmatprep.subr.mxu0 0.0
    %1459 = vmatpush1.msra.mxu0 0.0
    %1460 = vmatprep.subr.mxu0 0.0
    %1461 = vmatpush1.msra.mxu0 0.0
    %1462 = vmatprep.subr.mxu0 0.0
    %1463 = vmatpush1.msra.mxu0 0.0
    %1464 = vmatprep.subr.mxu0 0.0
    %1465 = vmatpush1.msra.mxu0 0.0
    %1466 = vmatprep.subr.mxu0 0.0
    %1467 = vmatpush1.msra.mxu0 0.0
    %1468 = vmatprep.subr.mxu0 0.0
    %1469 = vmatpush1.msra.mxu0 0.0
    %1470 = vmatprep.subr.mxu0 0.0
    %1471 = vmatpush1.msra.mxu0 %v387
    %1472 = vmatprep.subr.mxu0 0.0
    %1473 = vmatpush1.msra.mxu0 %v386
    %1474 = vmatprep.subr.mxu0 0.0
    %1475 = vmatpush1.msra.mxu0 %v385
    %1476 = vmatprep.subr.mxu0 0.0
    %1477 = vmatpush1.msra.mxu0 %v384
    %1478 = vmatprep.subr.mxu0 0.0
    %1479 = vmatpush2.msra.mxu0 0.0
    %1480 = vmatprep.subr.mxu0 0.0
    %1481 = vmatpush2.msra.mxu0 0.0
    %1482 = vmatprep.subr.mxu0 0.0
    %1483 = vmatpush2.msra.mxu0 0.0
    %1484 = vmatprep.subr.mxu0 0.0
    %1485 = vmatpush2.msra.mxu0 0.0
    %1486 = vmatprep.subr.mxu0 0.0
    %1487 = vmatpush2.msra.mxu0 0.0
    %1488 = vmatprep.subr.mxu0 0.0
    %1489 = vmatpush2.msra.mxu0 0.0
    %1490 = vmatprep.subr.mxu0 0.0
    %1491 = vmatpush2.msra.mxu0 0.0
    %1492 = vmatprep.subr.mxu0 0.0
    %1493 = vmatpush2.msra.mxu0 0.0
    %1494 = vmatprep.subr.mxu0 0.0
    %1495 = vmatpush2.msra.mxu0 0.0
    %1496 = vmatprep.subr.mxu0 0.0
    %1497 = vmatpush2.msra.mxu0 0.0
    %1498 = vmatprep.subr.mxu0 0.0
    %1499 = vmatpush2.msra.mxu0 0.0
    %1500 = vmatprep.subr.mxu0 0.0
    %1501 = vmatpush2.msra.mxu0 0.0
    %1502 = vmatprep.subr.mxu0 0.0
    %1503 = vmatpush2.msra.mxu0 0.0
    %1504 = vmatprep.subr.mxu0 0.0
    %1505 = vmatpush2.msra.mxu0 0.0
    %1506 = vmatprep.subr.mxu0 0.0
    %1507 = vmatpush2.msra.mxu0 0.0
    %1508 = vmatprep.subr.mxu0 0.0
    %1509 = vmatpush2.msra.mxu0 0.0
    %1510 = vmatprep.mubr.f32.mxu0 0.0
    %1511 = vmatmul.mubr.f32.gmra.mxu0 %v1444
    %v1512 = vpop.f32.mrf.mxu0
    %v1513 = vadd.f32 0.0, %v1512
    %v1514 = vpop.f32.mrf.mxu0
    %1515 = vdwg.mxu0
    %v1517 = vrot.slane %v1440, 6
    %1518 = vrot.lane.b32.xlu0 %v1517, 64
    %v1519 = vpop.permute.xlu0 %1518
    %v1520 = vsel %vm436, %v1519, 0
    %1522 = vmatprep.subr.mxu0 0.0
    %1523 = vmatpush1.msra.mxu0 0.0
    %1524 = vmatprep.subr.mxu0 0.0
    %1525 = vmatpush1.msra.mxu0 0.0
    %1526 = vmatprep.subr.mxu0 0.0
    %1527 = vmatpush1.msra.mxu0 0.0
    %1528 = vmatprep.subr.mxu0 0.0
    %1529 = vmatpush1.msra.mxu0 0.0
    %1530 = vmatprep.subr.mxu0 0.0
    %1531 = vmatpush1.msra.mxu0 0.0
    %1532 = vmatprep.subr.mxu0 0.0
    %1533 = vmatpush1.msra.mxu0 0.0
    %1534 = vmatprep.subr.mxu0 0.0
    %1535 = vmatpush1.msra.mxu0 0.0
    %1536 = vmatprep.subr.mxu0 0.0
    %1537 = vmatpush1.msra.mxu0 0.0
    %1538 = vmatprep.subr.mxu0 0.0
    %1539 = vmatpush1.msra.mxu0 0.0
    %1540 = vmatprep.subr.mxu0 0.0
    %1541 = vmatpush1.msra.mxu0 0.0
    %1542 = vmatprep.subr.mxu0 0.0
    %1543 = vmatpush1.msra.mxu0 0.0
    %1544 = vmatprep.subr.mxu0 0.0
    %1545 = vmatpush1.msra.mxu0 0.0
    %1546 = vmatprep.subr.mxu0 0.0
    %1547 = vmatpush1.msra.mxu0 %v378
    %1548 = vmatprep.subr.mxu0 0.0
    %1549 = vmatpush1.msra.mxu0 %v377
    %1550 = vmatprep.subr.mxu0 0.0
    %1551 = vmatpush1.msra.mxu0 %v376
    %1552 = vmatprep.subr.mxu0 0.0
    %1553 = vmatpush1.msra.mxu0 %v375
    %1554 = vmatprep.subr.mxu0 0.0
    %1555 = vmatpush2.msra.mxu0 0.0
    %1556 = vmatprep.subr.mxu0 0.0
    %1557 = vmatpush2.msra.mxu0 0.0
    %1558 = vmatprep.subr.mxu0 0.0
    %1559 = vmatpush2.msra.mxu0 0.0
    %1560 = vmatprep.subr.mxu0 0.0
    %1561 = vmatpush2.msra.mxu0 0.0
    %1562 = vmatprep.subr.mxu0 0.0
    %1563 = vmatpush2.msra.mxu0 0.0
    %1564 = vmatprep.subr.mxu0 0.0
    %1565 = vmatpush2.msra.mxu0 0.0
    %1566 = vmatprep.subr.mxu0 0.0
    %1567 = vmatpush2.msra.mxu0 0.0
    %1568 = vmatprep.subr.mxu0 0.0
    %1569 = vmatpush2.msra.mxu0 0.0
    %1570 = vmatprep.subr.mxu0 0.0
    %1571 = vmatpush2.msra.mxu0 0.0
    %1572 = vmatprep.subr.mxu0 0.0
    %1573 = vmatpush2.msra.mxu0 0.0
    %1574 = vmatprep.subr.mxu0 0.0
    %1575 = vmatpush2.msra.mxu0 0.0
    %1576 = vmatprep.subr.mxu0 0.0
    %1577 = vmatpush2.msra.mxu0 0.0
    %1578 = vmatprep.subr.mxu0 0.0
    %1579 = vmatpush2.msra.mxu0 0.0
    %1580 = vmatprep.subr.mxu0 0.0
    %1581 = vmatpush2.msra.mxu0 0.0
    %1582 = vmatprep.subr.mxu0 0.0
    %1583 = vmatpush2.msra.mxu0 0.0
    %1584 = vmatprep.subr.mxu0 0.0
    %1585 = vmatpush2.msra.mxu0 0.0
    %1586 = vmatprep.mubr.f32.mxu0 0.0
    %1587 = vmatmul.mubr.f32.gmra.mxu0 %v1520
    %v1588 = vpop.f32.mrf.mxu0
    %v1589 = vadd.f32 %v1513, %v1588
    %v1590 = vpop.f32.mrf.mxu0
    %1591 = vdwg.mxu0
    %v1592 = vadd.f32 %v1589, %v412
    %v1593 = vxor.u32 %v1592, 2147483648
    %v1594 = vmul.f32 %v1593, 1.442695
    %v1595 = vpow.pop %v1594
    %v1596 = vadd.f32 %v1595, 1.0
    %v1597 = vrcp.pop %v1596
    %v1598 = vmul.f32 1.0, %v1597
    %v1599 = vtanh.pop %v1592
    %v1600 = vmul.f32 %v1598, %v1333
    %1602 = vrot.lane.b32.xlu0 %v1599, 32
    %v1603 = vpop.permute.xlu0 %1602
    %v1605 = vmul.f32 %v1598, %v1603
    %1607 = vrot.lane.b32.xlu0 %v1605, 32
    %v1608 = vpop.permute.xlu0 %1607
    %v1610 = vadd.f32 %v1600, %v1608
    %v1611 = vtanh.pop %v1610
    %1613 = vrot.lane.b32.xlu0 %v1611, 32
    %v1614 = vpop.permute.xlu0 %1613
    %v1616 = vmul.f32 %v1598, %v1614
    %1617 = vmatprep.subr.mxu0 0.0
    %1618 = vmatpush1.msra.mxu0 0.0
    %1619 = vmatprep.subr.mxu0 0.0
    %1620 = vmatpush1.msra.mxu0 0.0
    %1621 = vmatprep.subr.mxu0 0.0
    %1622 = vmatpush1.msra.mxu0 0.0
    %1623 = vmatprep.subr.mxu0 0.0
    %1624 = vmatpush1.msra.mxu0 0.0
    %1625 = vmatprep.subr.mxu0 0.0
    %1626 = vmatpush1.msra.mxu0 0.0
    %1627 = vmatprep.subr.mxu0 0.0
    %1628 = vmatpush1.msra.mxu0 0.0
    %1629 = vmatprep.subr.mxu0 0.0
    %1630 = vmatpush1.msra.mxu0 0.0
    %1631 = vmatprep.subr.mxu0 0.0
    %1632 = vmatpush1.msra.mxu0 0.0
    %1633 = vmatprep.subr.mxu0 0.0
    %1634 = vmatpush1.msra.mxu0 0.0
    %1635 = vmatprep.subr.mxu0 0.0
    %1636 = vmatpush1.msra.mxu0 0.0
    %1637 = vmatprep.subr.mxu0 0.0
    %1638 = vmatpush1.msra.mxu0 0.0
    %1639 = vmatprep.subr.mxu0 0.0
    %1640 = vmatpush1.msra.mxu0 0.0
    %1641 = vmatprep.subr.mxu0 0.0
    %1642 = vmatpush1.msra.mxu0 %v382
    %1643 = vmatprep.subr.mxu0 0.0
    %1644 = vmatpush1.msra.mxu0 %v381
    %1645 = vmatprep.subr.mxu0 0.0
    %1646 = vmatpush1.msra.mxu0 %v380
    %1647 = vmatprep.subr.mxu0 0.0
    %1648 = vmatpush1.msra.mxu0 %v379
    %1649 = vmatprep.subr.mxu0 0.0
    %1650 = vmatpush2.msra.mxu0 0.0
    %1651 = vmatprep.subr.mxu0 0.0
    %1652 = vmatpush2.msra.mxu0 0.0
    %1653 = vmatprep.subr.mxu0 0.0
    %1654 = vmatpush2.msra.mxu0 0.0
    %1655 = vmatprep.subr.mxu0 0.0
    %1656 = vmatpush2.msra.mxu0 0.0
    %1657 = vmatprep.subr.mxu0 0.0
    %1658 = vmatpush2.msra.mxu0 0.0
    %1659 = vmatprep.subr.mxu0 0.0
    %1660 = vmatpush2.msra.mxu0 0.0
    %1661 = vmatprep.subr.mxu0 0.0
    %1662 = vmatpush2.msra.mxu0 0.0
    %1663 = vmatprep.subr.mxu0 0.0
    %1664 = vmatpush2.msra.mxu0 0.0
    %1665 = vmatprep.subr.mxu0 0.0
    %1666 = vmatpush2.msra.mxu0 0.0
    %1667 = vmatprep.subr.mxu0 0.0
    %1668 = vmatpush2.msra.mxu0 0.0
    %1669 = vmatprep.subr.mxu0 0.0
    %1670 = vmatpush2.msra.mxu0 0.0
    %1671 = vmatprep.subr.mxu0 0.0
    %1672 = vmatpush2.msra.mxu0 0.0
    %1673 = vmatprep.subr.mxu0 0.0
    %1674 = vmatpush2.msra.mxu0 0.0
    %1675 = vmatprep.subr.mxu0 0.0
    %1676 = vmatpush2.msra.mxu0 0.0
    %1677 = vmatprep.subr.mxu0 0.0
    %1678 = vmatpush2.msra.mxu0 0.0
    %1679 = vmatprep.subr.mxu0 0.0
    %1680 = vmatpush2.msra.mxu0 0.0
    %1681 = vmatprep.mubr.f32.mxu0 0.0
    %1682 = vmatmul.mubr.f32.gmra.mxu0 %v1520
    %v1683 = vpop.f32.mrf.mxu0
    %v1684 = vadd.f32 0.0, %v1683
    %v1685 = vpop.f32.mrf.mxu0
    %1686 = vdwg.mxu0
    %v1687 = vadd.f32 %v515, %v1684
    %v1688 = vxor.u32 %v1687, 2147483648
    %v1689 = vmul.f32 %v1688, 1.442695
    %v1690 = vpow.pop %v1689
    %v1691 = vadd.f32 %v1690, 1.0
    %v1692 = vrcp.pop %v1691
    %v1693 = vmul.f32 1.0, %v1692
    %v1694 = vtanh.pop %v1687
    %v1696 = vrot.slane %v1434, 6
    %v1698 = vmul.f32 %v1693, %v1696
    %1700 = vrot.lane.b32.xlu0 %v1694, 32
    %v1701 = vpop.permute.xlu0 %1700
    %v1703 = vmul.f32 %v1693, %v1701
    %1705 = vrot.lane.b32.xlu0 %v1703, 32
    %v1706 = vpop.permute.xlu0 %1705
    %v1708 = vadd.f32 %v1698, %v1706
    %v1709 = vtanh.pop %v1708
    %1711 = vrot.lane.b32.xlu0 %v1709, 32
    %v1712 = vpop.permute.xlu0 %1711
    %v1714 = vmul.f32 %v1693, %v1712
    %1716 = vrot.lane.b32.xlu0 %v1616, 64
    %v1717 = vpop.permute.xlu0 %1716
    %v1718 = vsel %vm436, %v1717, 0
    %1720 = vmatprep.subr.mxu0 0.0
    %1721 = vmatpush1.msra.mxu0 0.0
    %1722 = vmatprep.subr.mxu0 0.0
    %1723 = vmatpush1.msra.mxu0 0.0
    %1724 = vmatprep.subr.mxu0 0.0
    %1725 = vmatpush1.msra.mxu0 0.0
    %1726 = vmatprep.subr.mxu0 0.0
    %1727 = vmatpush1.msra.mxu0 0.0
    %1728 = vmatprep.subr.mxu0 0.0
    %1729 = vmatpush1.msra.mxu0 0.0
    %1730 = vmatprep.subr.mxu0 0.0
    %1731 = vmatpush1.msra.mxu0 0.0
    %1732 = vmatprep.subr.mxu0 0.0
    %1733 = vmatpush1.msra.mxu0 0.0
    %1734 = vmatprep.subr.mxu0 0.0
    %1735 = vmatpush1.msra.mxu0 0.0
    %1736 = vmatprep.subr.mxu0 0.0
    %1737 = vmatpush1.msra.mxu0 0.0
    %1738 = vmatprep.subr.mxu0 0.0
    %1739 = vmatpush1.msra.mxu0 0.0
    %1740 = vmatprep.subr.mxu0 0.0
    %1741 = vmatpush1.msra.mxu0 0.0
    %1742 = vmatprep.subr.mxu0 0.0
    %1743 = vmatpush1.msra.mxu0 0.0
    %1744 = vmatprep.subr.mxu0 0.0
    %1745 = vmatpush1.msra.mxu0 %v387
    %1746 = vmatprep.subr.mxu0 0.0
    %1747 = vmatpush1.msra.mxu0 %v386
    %1748 = vmatprep.subr.mxu0 0.0
    %1749 = vmatpush1.msra.mxu0 %v385
    %1750 = vmatprep.subr.mxu0 0.0
    %1751 = vmatpush1.msra.mxu0 %v384
    %1752 = vmatprep.subr.mxu0 0.0
    %1753 = vmatpush2.msra.mxu0 0.0
    %1754 = vmatprep.subr.mxu0 0.0
    %1755 = vmatpush2.msra.mxu0 0.0
    %1756 = vmatprep.subr.mxu0 0.0
    %1757 = vmatpush2.msra.mxu0 0.0
    %1758 = vmatprep.subr.mxu0 0.0
    %1759 = vmatpush2.msra.mxu0 0.0
    %1760 = vmatprep.subr.mxu0 0.0
    %1761 = vmatpush2.msra.mxu0 0.0
    %1762 = vmatprep.subr.mxu0 0.0
    %1763 = vmatpush2.msra.mxu0 0.0
    %1764 = vmatprep.subr.mxu0 0.0
    %1765 = vmatpush2.msra.mxu0 0.0
    %1766 = vmatprep.subr.mxu0 0.0
    %1767 = vmatpush2.msra.mxu0 0.0
    %1768 = vmatprep.subr.mxu0 0.0
    %1769 = vmatpush2.msra.mxu0 0.0
    %1770 = vmatprep.subr.mxu0 0.0
    %1771 = vmatpush2.msra.mxu0 0.0
    %1772 = vmatprep.subr.mxu0 0.0
    %1773 = vmatpush2.msra.mxu0 0.0
    %1774 = vmatprep.subr.mxu0 0.0
    %1775 = vmatpush2.msra.mxu0 0.0
    %1776 = vmatprep.subr.mxu0 0.0
    %1777 = vmatpush2.msra.mxu0 0.0
    %1778 = vmatprep.subr.mxu0 0.0
    %1779 = vmatpush2.msra.mxu0 0.0
    %1780 = vmatprep.subr.mxu0 0.0
    %1781 = vmatpush2.msra.mxu0 0.0
    %1782 = vmatprep.subr.mxu0 0.0
    %1783 = vmatpush2.msra.mxu0 0.0
    %1784 = vmatprep.mubr.f32.mxu0 0.0
    %1785 = vmatmul.mubr.f32.gmra.mxu0 %v1718
    %v1786 = vpop.f32.mrf.mxu0
    %v1787 = vadd.f32 0.0, %v1786
    %v1788 = vpop.f32.mrf.mxu0
    %1789 = vdwg.mxu0
    %1791 = vrot.lane.b32.xlu0 %v1714, 64
    %v1792 = vpop.permute.xlu0 %1791
    %v1793 = vsel %vm436, %v1792, 0
    %1795 = vmatprep.subr.mxu0 0.0
    %1796 = vmatpush1.msra.mxu0 0.0
    %1797 = vmatprep.subr.mxu0 0.0
    %1798 = vmatpush1.msra.mxu0 0.0
    %1799 = vmatprep.subr.mxu0 0.0
    %1800 = vmatpush1.msra.mxu0 0.0
    %1801 = vmatprep.subr.mxu0 0.0
    %1802 = vmatpush1.msra.mxu0 0.0
    %1803 = vmatprep.subr.mxu0 0.0
    %1804 = vmatpush1.msra.mxu0 0.0
    %1805 = vmatprep.subr.mxu0 0.0
    %1806 = vmatpush1.msra.mxu0 0.0
    %1807 = vmatprep.subr.mxu0 0.0
    %1808 = vmatpush1.msra.mxu0 0.0
    %1809 = vmatprep.subr.mxu0 0.0
    %1810 = vmatpush1.msra.mxu0 0.0
    %1811 = vmatprep.subr.mxu0 0.0
    %1812 = vmatpush1.msra.mxu0 0.0
    %1813 = vmatprep.subr.mxu0 0.0
    %1814 = vmatpush1.msra.mxu0 0.0
    %1815 = vmatprep.subr.mxu0 0.0
    %1816 = vmatpush1.msra.mxu0 0.0
    %1817 = vmatprep.subr.mxu0 0.0
    %1818 = vmatpush1.msra.mxu0 0.0
    %1819 = vmatprep.subr.mxu0 0.0
    %1820 = vmatpush1.msra.mxu0 %v378
    %1821 = vmatprep.subr.mxu0 0.0
    %1822 = vmatpush1.msra.mxu0 %v377
    %1823 = vmatprep.subr.mxu0 0.0
    %1824 = vmatpush1.msra.mxu0 %v376
    %1825 = vmatprep.subr.mxu0 0.0
    %1826 = vmatpush1.msra.mxu0 %v375
    %1827 = vmatprep.subr.mxu0 0.0
    %1828 = vmatpush2.msra.mxu0 0.0
    %1829 = vmatprep.subr.mxu0 0.0
    %1830 = vmatpush2.msra.mxu0 0.0
    %1831 = vmatprep.subr.mxu0 0.0
    %1832 = vmatpush2.msra.mxu0 0.0
    %1833 = vmatprep.subr.mxu0 0.0
    %1834 = vmatpush2.msra.mxu0 0.0
    %1835 = vmatprep.subr.mxu0 0.0
    %1836 = vmatpush2.msra.mxu0 0.0
    %1837 = vmatprep.subr.mxu0 0.0
    %1838 = vmatpush2.msra.mxu0 0.0
    %1839 = vmatprep.subr.mxu0 0.0
    %1840 = vmatpush2.msra.mxu0 0.0
    %1841 = vmatprep.subr.mxu0 0.0
    %1842 = vmatpush2.msra.mxu0 0.0
    %1843 = vmatprep.subr.mxu0 0.0
    %1844 = vmatpush2.msra.mxu0 0.0
    %1845 = vmatprep.subr.mxu0 0.0
    %1846 = vmatpush2.msra.mxu0 0.0
    %1847 = vmatprep.subr.mxu0 0.0
    %1848 = vmatpush2.msra.mxu0 0.0
    %1849 = vmatprep.subr.mxu0 0.0
    %1850 = vmatpush2.msra.mxu0 0.0
    %1851 = vmatprep.subr.mxu0 0.0
    %1852 = vmatpush2.msra.mxu0 0.0
    %1853 = vmatprep.subr.mxu0 0.0
    %1854 = vmatpush2.msra.mxu0 0.0
    %1855 = vmatprep.subr.mxu0 0.0
    %1856 = vmatpush2.msra.mxu0 0.0
    %1857 = vmatprep.subr.mxu0 0.0
    %1858 = vmatpush2.msra.mxu0 0.0
    %1859 = vmatprep.mubr.f32.mxu0 0.0
    %1860 = vmatmul.mubr.f32.gmra.mxu0 %v1793
    %v1861 = vpop.f32.mrf.mxu0
    %v1862 = vadd.f32 %v1787, %v1861
    %v1863 = vpop.f32.mrf.mxu0
    %1864 = vdwg.mxu0
    %v1865 = vadd.f32 %v1862, %v412
    %v1866 = vxor.u32 %v1865, 2147483648
    %v1867 = vmul.f32 %v1866, 1.442695
    %v1868 = vpow.pop %v1867
    %v1869 = vadd.f32 %v1868, 1.0
    %v1870 = vrcp.pop %v1869
    %v1871 = vmul.f32 1.0, %v1870
    %v1872 = vtanh.pop %v1865
    %v1873 = vmul.f32 %v1871, %v1610
    %1875 = vrot.lane.b32.xlu0 %v1872, 32
    %v1876 = vpop.permute.xlu0 %1875
    %v1878 = vmul.f32 %v1871, %v1876
    %1880 = vrot.lane.b32.xlu0 %v1878, 32
    %v1881 = vpop.permute.xlu0 %1880
    %v1883 = vadd.f32 %v1873, %v1881
    %v1884 = vtanh.pop %v1883
    %1886 = vrot.lane.b32.xlu0 %v1884, 32
    %v1887 = vpop.permute.xlu0 %1886
    %v1889 = vmul.f32 %v1871, %v1887
    %1890 = vmatprep.subr.mxu0 0.0
    %1891 = vmatpush1.msra.mxu0 0.0
    %1892 = vmatprep.subr.mxu0 0.0
    %1893 = vmatpush1.msra.mxu0 0.0
    %1894 = vmatprep.subr.mxu0 0.0
    %1895 = vmatpush1.msra.mxu0 0.0
    %1896 = vmatprep.subr.mxu0 0.0
    %1897 = vmatpush1.msra.mxu0 0.0
    %1898 = vmatprep.subr.mxu0 0.0
    %1899 = vmatpush1.msra.mxu0 0.0
    %1900 = vmatprep.subr.mxu0 0.0
    %1901 = vmatpush1.msra.mxu0 0.0
    %1902 = vmatprep.subr.mxu0 0.0
    %1903 = vmatpush1.msra.mxu0 0.0
    %1904 = vmatprep.subr.mxu0 0.0
    %1905 = vmatpush1.msra.mxu0 0.0
    %1906 = vmatprep.subr.mxu0 0.0
    %1907 = vmatpush1.msra.mxu0 0.0
    %1908 = vmatprep.subr.mxu0 0.0
    %1909 = vmatpush1.msra.mxu0 0.0
    %1910 = vmatprep.subr.mxu0 0.0
    %1911 = vmatpush1.msra.mxu0 0.0
    %1912 = vmatprep.subr.mxu0 0.0
    %1913 = vmatpush1.msra.mxu0 0.0
    %1914 = vmatprep.subr.mxu0 0.0
    %1915 = vmatpush1.msra.mxu0 %v382
    %1916 = vmatprep.subr.mxu0 0.0
    %1917 = vmatpush1.msra.mxu0 %v381
    %1918 = vmatprep.subr.mxu0 0.0
    %1919 = vmatpush1.msra.mxu0 %v380
    %1920 = vmatprep.subr.mxu0 0.0
    %1921 = vmatpush1.msra.mxu0 %v379
    %1922 = vmatprep.subr.mxu0 0.0
    %1923 = vmatpush2.msra.mxu0 0.0
    %1924 = vmatprep.subr.mxu0 0.0
    %1925 = vmatpush2.msra.mxu0 0.0
    %1926 = vmatprep.subr.mxu0 0.0
    %1927 = vmatpush2.msra.mxu0 0.0
    %1928 = vmatprep.subr.mxu0 0.0
    %1929 = vmatpush2.msra.mxu0 0.0
    %1930 = vmatprep.subr.mxu0 0.0
    %1931 = vmatpush2.msra.mxu0 0.0
    %1932 = vmatprep.subr.mxu0 0.0
    %1933 = vmatpush2.msra.mxu0 0.0
    %1934 = vmatprep.subr.mxu0 0.0
    %1935 = vmatpush2.msra.mxu0 0.0
    %1936 = vmatprep.subr.mxu0 0.0
    %1937 = vmatpush2.msra.mxu0 0.0
    %1938 = vmatprep.subr.mxu0 0.0
    %1939 = vmatpush2.msra.mxu0 0.0
    %1940 = vmatprep.subr.mxu0 0.0
    %1941 = vmatpush2.msra.mxu0 0.0
    %1942 = vmatprep.subr.mxu0 0.0
    %1943 = vmatpush2.msra.mxu0 0.0
    %1944 = vmatprep.subr.mxu0 0.0
    %1945 = vmatpush2.msra.mxu0 0.0
    %1946 = vmatprep.subr.mxu0 0.0
    %1947 = vmatpush2.msra.mxu0 0.0
    %1948 = vmatprep.subr.mxu0 0.0
    %1949 = vmatpush2.msra.mxu0 0.0
    %1950 = vmatprep.subr.mxu0 0.0
    %1951 = vmatpush2.msra.mxu0 0.0
    %1952 = vmatprep.subr.mxu0 0.0
    %1953 = vmatpush2.msra.mxu0 0.0
    %1954 = vmatprep.mubr.f32.mxu0 0.0
    %1955 = vmatmul.mubr.f32.gmra.mxu0 %v1793
    %v1956 = vpop.f32.mrf.mxu0
    %v1957 = vadd.f32 0.0, %v1956
    %v1958 = vpop.f32.mrf.mxu0
    %1959 = vdwg.mxu0
    %v1961 = vrot.slane %v1957, 6
    %v1963 = vadd.f32 %v515, %v1961
    %v1964 = vxor.u32 %v1963, 2147483648
    %v1965 = vmul.f32 %v1964, 1.442695
    %v1966 = vpow.pop %v1965
    %v1967 = vadd.f32 %v1966, 1.0
    %v1968 = vrcp.pop %v1967
    %v1969 = vmul.f32 1.0, %v1968
    %v1970 = vtanh.pop %v1963
    %v1972 = vrot.slane %v1708, 6
    %v1974 = vmul.f32 %v1969, %v1972
    %1976 = vrot.lane.b32.xlu0 %v1970, 32
    %v1977 = vpop.permute.xlu0 %1976
    %v1979 = vmul.f32 %v1969, %v1977
    %1981 = vrot.lane.b32.xlu0 %v1979, 32
    %v1982 = vpop.permute.xlu0 %1981
    %v1984 = vadd.f32 %v1974, %v1982
    %v1985 = vtanh.pop %v1984
    %1987 = vrot.lane.b32.xlu0 %v1985, 32
    %v1988 = vpop.permute.xlu0 %1987
    %v1990 = vmul.f32 %v1969, %v1988
    %1992 = vrot.lane.b32.xlu0 %v1889, 64
    %v1993 = vpop.permute.xlu0 %1992
    %v1994 = vsel %vm436, %v1993, 0
    %1996 = vmatprep.subr.mxu0 0.0
    %1997 = vmatpush1.msra.mxu0 0.0
    %1998 = vmatprep.subr.mxu0 0.0
    %1999 = vmatpush1.msra.mxu0 0.0
    %2000 = vmatprep.subr.mxu0 0.0
    %2001 = vmatpush1.msra.mxu0 0.0
    %2002 = vmatprep.subr.mxu0 0.0
    %2003 = vmatpush1.msra.mxu0 0.0
    %2004 = vmatprep.subr.mxu0 0.0
    %2005 = vmatpush1.msra.mxu0 0.0
    %2006 = vmatprep.subr.mxu0 0.0
    %2007 = vmatpush1.msra.mxu0 0.0
    %2008 = vmatprep.subr.mxu0 0.0
    %2009 = vmatpush1.msra.mxu0 0.0
    %2010 = vmatprep.subr.mxu0 0.0
    %2011 = vmatpush1.msra.mxu0 0.0
    %2012 = vmatprep.subr.mxu0 0.0
    %2013 = vmatpush1.msra.mxu0 0.0
    %2014 = vmatprep.subr.mxu0 0.0
    %2015 = vmatpush1.msra.mxu0 0.0
    %2016 = vmatprep.subr.mxu0 0.0
    %2017 = vmatpush1.msra.mxu0 0.0
    %2018 = vmatprep.subr.mxu0 0.0
    %2019 = vmatpush1.msra.mxu0 0.0
    %2020 = vmatprep.subr.mxu0 0.0
    %2021 = vmatpush1.msra.mxu0 %v387
    %2022 = vmatprep.subr.mxu0 0.0
    %2023 = vmatpush1.msra.mxu0 %v386
    %2024 = vmatprep.subr.mxu0 0.0
    %2025 = vmatpush1.msra.mxu0 %v385
    %2026 = vmatprep.subr.mxu0 0.0
    %2027 = vmatpush1.msra.mxu0 %v384
    %2028 = vmatprep.subr.mxu0 0.0
    %2029 = vmatpush2.msra.mxu0 0.0
    %2030 = vmatprep.subr.mxu0 0.0
    %2031 = vmatpush2.msra.mxu0 0.0
    %2032 = vmatprep.subr.mxu0 0.0
    %2033 = vmatpush2.msra.mxu0 0.0
    %2034 = vmatprep.subr.mxu0 0.0
    %2035 = vmatpush2.msra.mxu0 0.0
    %2036 = vmatprep.subr.mxu0 0.0
    %2037 = vmatpush2.msra.mxu0 0.0
    %2038 = vmatprep.subr.mxu0 0.0
    %2039 = vmatpush2.msra.mxu0 0.0
    %2040 = vmatprep.subr.mxu0 0.0
    %2041 = vmatpush2.msra.mxu0 0.0
    %2042 = vmatprep.subr.mxu0 0.0
    %2043 = vmatpush2.msra.mxu0 0.0
    %2044 = vmatprep.subr.mxu0 0.0
    %2045 = vmatpush2.msra.mxu0 0.0
    %2046 = vmatprep.subr.mxu0 0.0
    %2047 = vmatpush2.msra.mxu0 0.0
    %2048 = vmatprep.subr.mxu0 0.0
    %2049 = vmatpush2.msra.mxu0 0.0
    %2050 = vmatprep.subr.mxu0 0.0
    %2051 = vmatpush2.msra.mxu0 0.0
    %2052 = vmatprep.subr.mxu0 0.0
    %2053 = vmatpush2.msra.mxu0 0.0
    %2054 = vmatprep.subr.mxu0 0.0
    %2055 = vmatpush2.msra.mxu0 0.0
    %2056 = vmatprep.subr.mxu0 0.0
    %2057 = vmatpush2.msra.mxu0 0.0
    %2058 = vmatprep.subr.mxu0 0.0
    %2059 = vmatpush2.msra.mxu0 0.0
    %2060 = vmatprep.mubr.f32.mxu0 0.0
    %2061 = vmatmul.mubr.f32.gmra.mxu0 %v1994
    %v2062 = vpop.f32.mrf.mxu0
    %v2063 = vadd.f32 0.0, %v2062
    %v2064 = vpop.f32.mrf.mxu0
    %2065 = vdwg.mxu0
    %v2067 = vrot.slane %v1990, 2
    %2068 = vrot.lane.b32.xlu0 %v2067, 64
    %v2069 = vpop.permute.xlu0 %2068
    %v2070 = vsel %vm436, %v2069, 0
    %2072 = vmatprep.subr.mxu0 0.0
    %2073 = vmatpush1.msra.mxu0 0.0
    %2074 = vmatprep.subr.mxu0 0.0
    %2075 = vmatpush1.msra.mxu0 0.0
    %2076 = vmatprep.subr.mxu0 0.0
    %2077 = vmatpush1.msra.mxu0 0.0
    %2078 = vmatprep.subr.mxu0 0.0
    %2079 = vmatpush1.msra.mxu0 0.0
    %2080 = vmatprep.subr.mxu0 0.0
    %2081 = vmatpush1.msra.mxu0 0.0
    %2082 = vmatprep.subr.mxu0 0.0
    %2083 = vmatpush1.msra.mxu0 0.0
    %2084 = vmatprep.subr.mxu0 0.0
    %2085 = vmatpush1.msra.mxu0 0.0
    %2086 = vmatprep.subr.mxu0 0.0
    %2087 = vmatpush1.msra.mxu0 0.0
    %2088 = vmatprep.subr.mxu0 0.0
    %2089 = vmatpush1.msra.mxu0 0.0
    %2090 = vmatprep.subr.mxu0 0.0
    %2091 = vmatpush1.msra.mxu0 0.0
    %2092 = vmatprep.subr.mxu0 0.0
    %2093 = vmatpush1.msra.mxu0 0.0
    %2094 = vmatprep.subr.mxu0 0.0
    %2095 = vmatpush1.msra.mxu0 0.0
    %2096 = vmatprep.subr.mxu0 0.0
    %2097 = vmatpush1.msra.mxu0 %v378
    %2098 = vmatprep.subr.mxu0 0.0
    %2099 = vmatpush1.msra.mxu0 %v377
    %2100 = vmatprep.subr.mxu0 0.0
    %2101 = vmatpush1.msra.mxu0 %v376
    %2102 = vmatprep.subr.mxu0 0.0
    %2103 = vmatpush1.msra.mxu0 %v375
    %2104 = vmatprep.subr.mxu0 0.0
    %2105 = vmatpush2.msra.mxu0 0.0
    %2106 = vmatprep.subr.mxu0 0.0
    %2107 = vmatpush2.msra.mxu0 0.0
    %2108 = vmatprep.subr.mxu0 0.0
    %2109 = vmatpush2.msra.mxu0 0.0
    %2110 = vmatprep.subr.mxu0 0.0
    %2111 = vmatpush2.msra.mxu0 0.0
    %2112 = vmatprep.subr.mxu0 0.0
    %2113 = vmatpush2.msra.mxu0 0.0
    %2114 = vmatprep.subr.mxu0 0.0
    %2115 = vmatpush2.msra.mxu0 0.0
    %2116 = vmatprep.subr.mxu0 0.0
    %2117 = vmatpush2.msra.mxu0 0.0
    %2118 = vmatprep.subr.mxu0 0.0
    %2119 = vmatpush2.msra.mxu0 0.0
    %2120 = vmatprep.subr.mxu0 0.0
    %2121 = vmatpush2.msra.mxu0 0.0
    %2122 = vmatprep.subr.mxu0 0.0
    %2123 = vmatpush2.msra.mxu0 0.0
    %2124 = vmatprep.subr.mxu0 0.0
    %2125 = vmatpush2.msra.mxu0 0.0
    %2126 = vmatprep.subr.mxu0 0.0
    %2127 = vmatpush2.msra.mxu0 0.0
    %2128 = vmatprep.subr.mxu0 0.0
    %2129 = vmatpush2.msra.mxu0 0.0
    %2130 = vmatprep.subr.mxu0 0.0
    %2131 = vmatpush2.msra.mxu0 0.0
    %2132 = vmatprep.subr.mxu0 0.0
    %2133 = vmatpush2.msra.mxu0 0.0
    %2134 = vmatprep.subr.mxu0 0.0
    %2135 = vmatpush2.msra.mxu0 0.0
    %2136 = vmatprep.mubr.f32.mxu0 0.0
    %2137 = vmatmul.mubr.f32.gmra.mxu0 %v2070
    %v2138 = vpop.f32.mrf.mxu0
    %v2139 = vadd.f32 %v2063, %v2138
    %v2140 = vpop.f32.mrf.mxu0
    %2141 = vdwg.mxu0
    %v2142 = vadd.f32 %v2139, %v412
    %v2143 = vxor.u32 %v2142, 2147483648
    %v2144 = vmul.f32 %v2143, 1.442695
    %v2145 = vpow.pop %v2144
    %v2146 = vadd.f32 %v2145, 1.0
    %v2147 = vrcp.pop %v2146
    %v2148 = vmul.f32 1.0, %v2147
    %v2149 = vtanh.pop %v2142
    %v2150 = vmul.f32 %v2148, %v1883
    %2152 = vrot.lane.b32.xlu0 %v2149, 32
    %v2153 = vpop.permute.xlu0 %2152
    %v2155 = vmul.f32 %v2148, %v2153
    %2157 = vrot.lane.b32.xlu0 %v2155, 32
    %v2158 = vpop.permute.xlu0 %2157
    %v2160 = vadd.f32 %v2150, %v2158
    %v2161 = vtanh.pop %v2160
    %2163 = vrot.lane.b32.xlu0 %v2161, 32
    %v2164 = vpop.permute.xlu0 %2163
    %v2166 = vmul.f32 %v2148, %v2164
    %2167 = vmatprep.subr.mxu0 0.0
    %2168 = vmatpush1.msra.mxu0 0.0
    %2169 = vmatprep.subr.mxu0 0.0
    %2170 = vmatpush1.msra.mxu0 0.0
    %2171 = vmatprep.subr.mxu0 0.0
    %2172 = vmatpush1.msra.mxu0 0.0
    %2173 = vmatprep.subr.mxu0 0.0
    %2174 = vmatpush1.msra.mxu0 0.0
    %2175 = vmatprep.subr.mxu0 0.0
    %2176 = vmatpush1.msra.mxu0 0.0
    %2177 = vmatprep.subr.mxu0 0.0
    %2178 = vmatpush1.msra.mxu0 0.0
    %2179 = vmatprep.subr.mxu0 0.0
    %2180 = vmatpush1.msra.mxu0 0.0
    %2181 = vmatprep.subr.mxu0 0.0
    %2182 = vmatpush1.msra.mxu0 0.0
    %2183 = vmatprep.subr.mxu0 0.0
    %2184 = vmatpush1.msra.mxu0 0.0
    %2185 = vmatprep.subr.mxu0 0.0
    %2186 = vmatpush1.msra.mxu0 0.0
    %2187 = vmatprep.subr.mxu0 0.0
    %2188 = vmatpush1.msra.mxu0 0.0
    %2189 = vmatprep.subr.mxu0 0.0
    %2190 = vmatpush1.msra.mxu0 0.0
    %2191 = vmatprep.subr.mxu0 0.0
    %2192 = vmatpush1.msra.mxu0 %v382
    %2193 = vmatprep.subr.mxu0 0.0
    %2194 = vmatpush1.msra.mxu0 %v381
    %2195 = vmatprep.subr.mxu0 0.0
    %2196 = vmatpush1.msra.mxu0 %v380
    %2197 = vmatprep.subr.mxu0 0.0
    %2198 = vmatpush1.msra.mxu0 %v379
    %2199 = vmatprep.subr.mxu0 0.0
    %2200 = vmatpush2.msra.mxu0 0.0
    %2201 = vmatprep.subr.mxu0 0.0
    %2202 = vmatpush2.msra.mxu0 0.0
    %2203 = vmatprep.subr.mxu0 0.0
    %2204 = vmatpush2.msra.mxu0 0.0
    %2205 = vmatprep.subr.mxu0 0.0
    %2206 = vmatpush2.msra.mxu0 0.0
    %2207 = vmatprep.subr.mxu0 0.0
    %2208 = vmatpush2.msra.mxu0 0.0
    %2209 = vmatprep.subr.mxu0 0.0
    %2210 = vmatpush2.msra.mxu0 0.0
    %2211 = vmatprep.subr.mxu0 0.0
    %2212 = vmatpush2.msra.mxu0 0.0
    %2213 = vmatprep.subr.mxu0 0.0
    %2214 = vmatpush2.msra.mxu0 0.0
    %2215 = vmatprep.subr.mxu0 0.0
    %2216 = vmatpush2.msra.mxu0 0.0
    %2217 = vmatprep.subr.mxu0 0.0
    %2218 = vmatpush2.msra.mxu0 0.0
    %2219 = vmatprep.subr.mxu0 0.0
    %2220 = vmatpush2.msra.mxu0 0.0
    %2221 = vmatprep.subr.mxu0 0.0
    %2222 = vmatpush2.msra.mxu0 0.0
    %2223 = vmatprep.subr.mxu0 0.0
    %2224 = vmatpush2.msra.mxu0 0.0
    %2225 = vmatprep.subr.mxu0 0.0
    %2226 = vmatpush2.msra.mxu0 0.0
    %2227 = vmatprep.subr.mxu0 0.0
    %2228 = vmatpush2.msra.mxu0 0.0
    %2229 = vmatprep.subr.mxu0 0.0
    %2230 = vmatpush2.msra.mxu0 0.0
    %2231 = vmatprep.mubr.f32.mxu0 0.0
    %2232 = vmatmul.mubr.f32.gmra.mxu0 %v2070
    %v2233 = vpop.f32.mrf.mxu0
    %v2234 = vadd.f32 0.0, %v2233
    %v2235 = vpop.f32.mrf.mxu0
    %2236 = vdwg.mxu0
    %v2238 = vrot.slane %v2234, 4
    %v2240 = vadd.f32 %v515, %v2238
    %v2241 = vxor.u32 %v2240, 2147483648
    %v2242 = vmul.f32 %v2241, 1.442695
    %v2243 = vpow.pop %v2242
    %v2244 = vadd.f32 %v2243, 1.0
    %v2245 = vrcp.pop %v2244
    %v2246 = vmul.f32 1.0, %v2245
    %v2247 = vtanh.pop %v2240
    %v2249 = vrot.slane %v1984, 6
    %v2251 = vmul.f32 %v2246, %v2249
    %2253 = vrot.lane.b32.xlu0 %v2247, 32
    %v2254 = vpop.permute.xlu0 %2253
    %v2256 = vmul.f32 %v2246, %v2254
    %2258 = vrot.lane.b32.xlu0 %v2256, 32
    %v2259 = vpop.permute.xlu0 %2258
    %v2261 = vadd.f32 %v2251, %v2259
    %v2262 = vtanh.pop %v2261
    %2264 = vrot.lane.b32.xlu0 %v2262, 32
    %v2265 = vpop.permute.xlu0 %2264
    %v2267 = vmul.f32 %v2246, %v2265
    %2269 = vrot.lane.b32.xlu0 %v2166, 64
    %v2270 = vpop.permute.xlu0 %2269
    %v2271 = vsel %vm436, %v2270, 0
    %2273 = vmatprep.subr.mxu0 0.0
    %2274 = vmatpush1.msra.mxu0 0.0
    %2275 = vmatprep.subr.mxu0 0.0
    %2276 = vmatpush1.msra.mxu0 0.0
    %2277 = vmatprep.subr.mxu0 0.0
    %2278 = vmatpush1.msra.mxu0 0.0
    %2279 = vmatprep.subr.mxu0 0.0
    %2280 = vmatpush1.msra.mxu0 0.0
    %2281 = vmatprep.subr.mxu0 0.0
    %2282 = vmatpush1.msra.mxu0 0.0
    %2283 = vmatprep.subr.mxu0 0.0
    %2284 = vmatpush1.msra.mxu0 0.0
    %2285 = vmatprep.subr.mxu0 0.0
    %2286 = vmatpush1.msra.mxu0 0.0
    %2287 = vmatprep.subr.mxu0 0.0
    %2288 = vmatpush1.msra.mxu0 0.0
    %2289 = vmatprep.subr.mxu0 0.0
    %2290 = vmatpush1.msra.mxu0 0.0
    %2291 = vmatprep.subr.mxu0 0.0
    %2292 = vmatpush1.msra.mxu0 0.0
    %2293 = vmatprep.subr.mxu0 0.0
    %2294 = vmatpush1.msra.mxu0 0.0
    %2295 = vmatprep.subr.mxu0 0.0
    %2296 = vmatpush1.msra.mxu0 0.0
    %2297 = vmatprep.subr.mxu0 0.0
    %2298 = vmatpush1.msra.mxu0 %v387
    %2299 = vmatprep.subr.mxu0 0.0
    %2300 = vmatpush1.msra.mxu0 %v386
    %2301 = vmatprep.subr.mxu0 0.0
    %2302 = vmatpush1.msra.mxu0 %v385
    %2303 = vmatprep.subr.mxu0 0.0
    %2304 = vmatpush1.msra.mxu0 %v384
    %2305 = vmatprep.subr.mxu0 0.0
    %2306 = vmatpush2.msra.mxu0 0.0
    %2307 = vmatprep.subr.mxu0 0.0
    %2308 = vmatpush2.msra.mxu0 0.0
    %2309 = vmatprep.subr.mxu0 0.0
    %2310 = vmatpush2.msra.mxu0 0.0
    %2311 = vmatprep.subr.mxu0 0.0
    %2312 = vmatpush2.msra.mxu0 0.0
    %2313 = vmatprep.subr.mxu0 0.0
    %2314 = vmatpush2.msra.mxu0 0.0
    %2315 = vmatprep.subr.mxu0 0.0
    %2316 = vmatpush2.msra.mxu0 0.0
    %2317 = vmatprep.subr.mxu0 0.0
    %2318 = vmatpush2.msra.mxu0 0.0
    %2319 = vmatprep.subr.mxu0 0.0
    %2320 = vmatpush2.msra.mxu0 0.0
    %2321 = vmatprep.subr.mxu0 0.0
    %2322 = vmatpush2.msra.mxu0 0.0
    %2323 = vmatprep.subr.mxu0 0.0
    %2324 = vmatpush2.msra.mxu0 0.0
    %2325 = vmatprep.subr.mxu0 0.0
    %2326 = vmatpush2.msra.mxu0 0.0
    %2327 = vmatprep.subr.mxu0 0.0
    %2328 = vmatpush2.msra.mxu0 0.0
    %2329 = vmatprep.subr.mxu0 0.0
    %2330 = vmatpush2.msra.mxu0 0.0
    %2331 = vmatprep.subr.mxu0 0.0
    %2332 = vmatpush2.msra.mxu0 0.0
    %2333 = vmatprep.subr.mxu0 0.0
    %2334 = vmatpush2.msra.mxu0 0.0
    %2335 = vmatprep.subr.mxu0 0.0
    %2336 = vmatpush2.msra.mxu0 0.0
    %2337 = vmatprep.mubr.f32.mxu0 0.0
    %2338 = vmatmul.mubr.f32.gmra.mxu0 %v2271
    %v2339 = vpop.f32.mrf.mxu0
    %v2340 = vadd.f32 0.0, %v2339
    %v2341 = vpop.f32.mrf.mxu0
    %2342 = vdwg.mxu0
    %v2344 = vrot.slane %v2267, 4
    %2345 = vrot.lane.b32.xlu0 %v2344, 64
    %v2346 = vpop.permute.xlu0 %2345
    %v2347 = vsel %vm436, %v2346, 0
    %2349 = vmatprep.subr.mxu0 0.0
    %2350 = vmatpush1.msra.mxu0 0.0
    %2351 = vmatprep.subr.mxu0 0.0
    %2352 = vmatpush1.msra.mxu0 0.0
    %2353 = vmatprep.subr.mxu0 0.0
    %2354 = vmatpush1.msra.mxu0 0.0
    %2355 = vmatprep.subr.mxu0 0.0
    %2356 = vmatpush1.msra.mxu0 0.0
    %2357 = vmatprep.subr.mxu0 0.0
    %2358 = vmatpush1.msra.mxu0 0.0
    %2359 = vmatprep.subr.mxu0 0.0
    %2360 = vmatpush1.msra.mxu0 0.0
    %2361 = vmatprep.subr.mxu0 0.0
    %2362 = vmatpush1.msra.mxu0 0.0
    %2363 = vmatprep.subr.mxu0 0.0
    %2364 = vmatpush1.msra.mxu0 0.0
    %2365 = vmatprep.subr.mxu0 0.0
    %2366 = vmatpush1.msra.mxu0 0.0
    %2367 = vmatprep.subr.mxu0 0.0
    %2368 = vmatpush1.msra.mxu0 0.0
    %2369 = vmatprep.subr.mxu0 0.0
    %2370 = vmatpush1.msra.mxu0 0.0
    %2371 = vmatprep.subr.mxu0 0.0
    %2372 = vmatpush1.msra.mxu0 0.0
    %2373 = vmatprep.subr.mxu0 0.0
    %2374 = vmatpush1.msra.mxu0 %v378
    %2375 = vmatprep.subr.mxu0 0.0
    %2376 = vmatpush1.msra.mxu0 %v377
    %2377 = vmatprep.subr.mxu0 0.0
    %2378 = vmatpush1.msra.mxu0 %v376
    %2379 = vmatprep.subr.mxu0 0.0
    %2380 = vmatpush1.msra.mxu0 %v375
    %2381 = vmatprep.subr.mxu0 0.0
    %2382 = vmatpush2.msra.mxu0 0.0
    %2383 = vmatprep.subr.mxu0 0.0
    %2384 = vmatpush2.msra.mxu0 0.0
    %2385 = vmatprep.subr.mxu0 0.0
    %2386 = vmatpush2.msra.mxu0 0.0
    %2387 = vmatprep.subr.mxu0 0.0
    %2388 = vmatpush2.msra.mxu0 0.0
    %2389 = vmatprep.subr.mxu0 0.0
    %2390 = vmatpush2.msra.mxu0 0.0
    %2391 = vmatprep.subr.mxu0 0.0
    %2392 = vmatpush2.msra.mxu0 0.0
    %2393 = vmatprep.subr.mxu0 0.0
    %2394 = vmatpush2.msra.mxu0 0.0
    %2395 = vmatprep.subr.mxu0 0.0
    %2396 = vmatpush2.msra.mxu0 0.0
    %2397 = vmatprep.subr.mxu0 0.0
    %2398 = vmatpush2.msra.mxu0 0.0
    %2399 = vmatprep.subr.mxu0 0.0
    %2400 = vmatpush2.msra.mxu0 0.0
    %2401 = vmatprep.subr.mxu0 0.0
    %2402 = vmatpush2.msra.mxu0 0.0
    %2403 = vmatprep.subr.mxu0 0.0
    %2404 = vmatpush2.msra.mxu0 0.0
    %2405 = vmatprep.subr.mxu0 0.0
    %2406 = vmatpush2.msra.mxu0 0.0
    %2407 = vmatprep.subr.mxu0 0.0
    %2408 = vmatpush2.msra.mxu0 0.0
    %2409 = vmatprep.subr.mxu0 0.0
    %2410 = vmatpush2.msra.mxu0 0.0
    %2411 = vmatprep.subr.mxu0 0.0
    %2412 = vmatpush2.msra.mxu0 0.0
    %2413 = vmatprep.mubr.f32.mxu0 0.0
    %2414 = vmatmul.mubr.f32.gmra.mxu0 %v2347
    %v2415 = vpop.f32.mrf.mxu0
    %v2416 = vadd.f32 %v2340, %v2415
    %v2417 = vpop.f32.mrf.mxu0
    %2418 = vdwg.mxu0
    %v2419 = vadd.f32 %v2416, %v412
    %v2420 = vxor.u32 %v2419, 2147483648
    %v2421 = vmul.f32 %v2420, 1.442695
    %v2422 = vpow.pop %v2421
    %v2423 = vadd.f32 %v2422, 1.0
    %v2424 = vrcp.pop %v2423
    %v2425 = vmul.f32 1.0, %v2424
    %v2426 = vtanh.pop %v2419
    %v2427 = vmul.f32 %v2425, %v2160
    %2429 = vrot.lane.b32.xlu0 %v2426, 32
    %v2430 = vpop.permute.xlu0 %2429
    %v2432 = vmul.f32 %v2425, %v2430
    %2434 = vrot.lane.b32.xlu0 %v2432, 32
    %v2435 = vpop.permute.xlu0 %2434
    %v2437 = vadd.f32 %v2427, %v2435
    %v2438 = vtanh.pop %v2437
    %2440 = vrot.lane.b32.xlu0 %v2438, 32
    %v2441 = vpop.permute.xlu0 %2440
    %v2443 = vmul.f32 %v2425, %v2441
    %2444 = vmatprep.subr.mxu0 0.0
    %2445 = vmatpush1.msra.mxu0 0.0
    %2446 = vmatprep.subr.mxu0 0.0
    %2447 = vmatpush1.msra.mxu0 0.0
    %2448 = vmatprep.subr.mxu0 0.0
    %2449 = vmatpush1.msra.mxu0 0.0
    %2450 = vmatprep.subr.mxu0 0.0
    %2451 = vmatpush1.msra.mxu0 0.0
    %2452 = vmatprep.subr.mxu0 0.0
    %2453 = vmatpush1.msra.mxu0 0.0
    %2454 = vmatprep.subr.mxu0 0.0
    %2455 = vmatpush1.msra.mxu0 0.0
    %2456 = vmatprep.subr.mxu0 0.0
    %2457 = vmatpush1.msra.mxu0 0.0
    %2458 = vmatprep.subr.mxu0 0.0
    %2459 = vmatpush1.msra.mxu0 0.0
    %2460 = vmatprep.subr.mxu0 0.0
    %2461 = vmatpush1.msra.mxu0 0.0
    %2462 = vmatprep.subr.mxu0 0.0
    %2463 = vmatpush1.msra.mxu0 0.0
    %2464 = vmatprep.subr.mxu0 0.0
    %2465 = vmatpush1.msra.mxu0 0.0
    %2466 = vmatprep.subr.mxu0 0.0
    %2467 = vmatpush1.msra.mxu0 0.0
    %2468 = vmatprep.subr.mxu0 0.0
    %2469 = vmatpush1.msra.mxu0 %v382
    %2470 = vmatprep.subr.mxu0 0.0
    %2471 = vmatpush1.msra.mxu0 %v381
    %2472 = vmatprep.subr.mxu0 0.0
    %2473 = vmatpush1.msra.mxu0 %v380
    %2474 = vmatprep.subr.mxu0 0.0
    %2475 = vmatpush1.msra.mxu0 %v379
    %2476 = vmatprep.subr.mxu0 0.0
    %2477 = vmatpush2.msra.mxu0 0.0
    %2478 = vmatprep.subr.mxu0 0.0
    %2479 = vmatpush2.msra.mxu0 0.0
    %2480 = vmatprep.subr.mxu0 0.0
    %2481 = vmatpush2.msra.mxu0 0.0
    %2482 = vmatprep.subr.mxu0 0.0
    %2483 = vmatpush2.msra.mxu0 0.0
    %2484 = vmatprep.subr.mxu0 0.0
    %2485 = vmatpush2.msra.mxu0 0.0
    %2486 = vmatprep.subr.mxu0 0.0
    %2487 = vmatpush2.msra.mxu0 0.0
    %2488 = vmatprep.subr.mxu0 0.0
    %2489 = vmatpush2.msra.mxu0 0.0
    %2490 = vmatprep.subr.mxu0 0.0
    %2491 = vmatpush2.msra.mxu0 0.0
    %2492 = vmatprep.subr.mxu0 0.0
    %2493 = vmatpush2.msra.mxu0 0.0
    %2494 = vmatprep.subr.mxu0 0.0
    %2495 = vmatpush2.msra.mxu0 0.0
    %2496 = vmatprep.subr.mxu0 0.0
    %2497 = vmatpush2.msra.mxu0 0.0
    %2498 = vmatprep.subr.mxu0 0.0
    %2499 = vmatpush2.msra.mxu0 0.0
    %2500 = vmatprep.subr.mxu0 0.0
    %2501 = vmatpush2.msra.mxu0 0.0
    %2502 = vmatprep.subr.mxu0 0.0
    %2503 = vmatpush2.msra.mxu0 0.0
    %2504 = vmatprep.subr.mxu0 0.0
    %2505 = vmatpush2.msra.mxu0 0.0
    %2506 = vmatprep.subr.mxu0 0.0
    %2507 = vmatpush2.msra.mxu0 0.0
    %2508 = vmatprep.mubr.f32.mxu0 0.0
    %2509 = vmatmul.mubr.f32.gmra.mxu0 %v2347
    %v2510 = vpop.f32.mrf.mxu0
    %v2511 = vadd.f32 0.0, %v2510
    %v2512 = vpop.f32.mrf.mxu0
    %2513 = vdwg.mxu0
    %v2515 = vrot.slane %v2511, 2
    %v2517 = vadd.f32 %v515, %v2515
    %v2518 = vxor.u32 %v2517, 2147483648
    %v2519 = vmul.f32 %v2518, 1.442695
    %v2520 = vpow.pop %v2519
    %v2521 = vadd.f32 %v2520, 1.0
    %v2522 = vrcp.pop %v2521
    %v2523 = vmul.f32 1.0, %v2522
    %v2524 = vtanh.pop %v2517
    %v2526 = vrot.slane %v2261, 6
    %v2528 = vmul.f32 %v2523, %v2526
    %2530 = vrot.lane.b32.xlu0 %v2524, 32
    %v2531 = vpop.permute.xlu0 %2530
    %v2533 = vmul.f32 %v2523, %v2531
    %2535 = vrot.lane.b32.xlu0 %v2533, 32
    %v2536 = vpop.permute.xlu0 %2535
    %v2538 = vadd.f32 %v2528, %v2536
    %v2539 = vtanh.pop %v2538
    %2541 = vrot.lane.b32.xlu0 %v2539, 32
    %v2542 = vpop.permute.xlu0 %2541
    %v2544 = vmul.f32 %v2523, %v2542
    %2546 = vrot.lane.b32.xlu0 %v2443, 64
    %v2547 = vpop.permute.xlu0 %2546
    %v2548 = vsel %vm436, %v2547, 0
    %2550 = vmatprep.subr.mxu0 0.0
    %2551 = vmatpush1.msra.mxu0 0.0
    %2552 = vmatprep.subr.mxu0 0.0
    %2553 = vmatpush1.msra.mxu0 0.0
    %2554 = vmatprep.subr.mxu0 0.0
    %2555 = vmatpush1.msra.mxu0 0.0
    %2556 = vmatprep.subr.mxu0 0.0
    %2557 = vmatpush1.msra.mxu0 0.0
    %2558 = vmatprep.subr.mxu0 0.0
    %2559 = vmatpush1.msra.mxu0 0.0
    %2560 = vmatprep.subr.mxu0 0.0
    %2561 = vmatpush1.msra.mxu0 0.0
    %2562 = vmatprep.subr.mxu0 0.0
    %2563 = vmatpush1.msra.mxu0 0.0
    %2564 = vmatprep.subr.mxu0 0.0
    %2565 = vmatpush1.msra.mxu0 0.0
    %2566 = vmatprep.subr.mxu0 0.0
    %2567 = vmatpush1.msra.mxu0 0.0
    %2568 = vmatprep.subr.mxu0 0.0
    %2569 = vmatpush1.msra.mxu0 0.0
    %2570 = vmatprep.subr.mxu0 0.0
    %2571 = vmatpush1.msra.mxu0 0.0
    %2572 = vmatprep.subr.mxu0 0.0
    %2573 = vmatpush1.msra.mxu0 0.0
    %2574 = vmatprep.subr.mxu0 0.0
    %2575 = vmatpush1.msra.mxu0 %v387
    %2576 = vmatprep.subr.mxu0 0.0
    %2577 = vmatpush1.msra.mxu0 %v386
    %2578 = vmatprep.subr.mxu0 0.0
    %2579 = vmatpush1.msra.mxu0 %v385
    %2580 = vmatprep.subr.mxu0 0.0
    %2581 = vmatpush1.msra.mxu0 %v384
    %2582 = vmatprep.subr.mxu0 0.0
    %2583 = vmatpush2.msra.mxu0 0.0
    %2584 = vmatprep.subr.mxu0 0.0
    %2585 = vmatpush2.msra.mxu0 0.0
    %2586 = vmatprep.subr.mxu0 0.0
    %2587 = vmatpush2.msra.mxu0 0.0
    %2588 = vmatprep.subr.mxu0 0.0
    %2589 = vmatpush2.msra.mxu0 0.0
    %2590 = vmatprep.subr.mxu0 0.0
    %2591 = vmatpush2.msra.mxu0 0.0
    %2592 = vmatprep.subr.mxu0 0.0
    %2593 = vmatpush2.msra.mxu0 0.0
    %2594 = vmatprep.subr.mxu0 0.0
    %2595 = vmatpush2.msra.mxu0 0.0
    %2596 = vmatprep.subr.mxu0 0.0
    %2597 = vmatpush2.msra.mxu0 0.0
    %2598 = vmatprep.subr.mxu0 0.0
    %2599 = vmatpush2.msra.mxu0 0.0
    %2600 = vmatprep.subr.mxu0 0.0
    %2601 = vmatpush2.msra.mxu0 0.0
    %2602 = vmatprep.subr.mxu0 0.0
    %2603 = vmatpush2.msra.mxu0 0.0
    %2604 = vmatprep.subr.mxu0 0.0
    %2605 = vmatpush2.msra.mxu0 0.0
    %2606 = vmatprep.subr.mxu0 0.0
    %2607 = vmatpush2.msra.mxu0 0.0
    %2608 = vmatprep.subr.mxu0 0.0
    %2609 = vmatpush2.msra.mxu0 0.0
    %2610 = vmatprep.subr.mxu0 0.0
    %2611 = vmatpush2.msra.mxu0 0.0
    %2612 = vmatprep.subr.mxu0 0.0
    %2613 = vmatpush2.msra.mxu0 0.0
    %2614 = vmatprep.mubr.f32.mxu0 0.0
    %2615 = vmatmul.mubr.f32.gmra.mxu0 %v2548
    %v2616 = vpop.f32.mrf.mxu0
    %v2617 = vadd.f32 0.0, %v2616
    %v2618 = vpop.f32.mrf.mxu0
    %2619 = vdwg.mxu0
    %v2621 = vrot.slane %v2544, 6
    %2622 = vrot.lane.b32.xlu0 %v2621, 64
    %v2623 = vpop.permute.xlu0 %2622
    %v2624 = vsel %vm436, %v2623, 0
    %2626 = vmatprep.subr.mxu0 0.0
    %2627 = vmatpush1.msra.mxu0 0.0
    %2628 = vmatprep.subr.mxu0 0.0
    %2629 = vmatpush1.msra.mxu0 0.0
    %2630 = vmatprep.subr.mxu0 0.0
    %2631 = vmatpush1.msra.mxu0 0.0
    %2632 = vmatprep.subr.mxu0 0.0
    %2633 = vmatpush1.msra.mxu0 0.0
    %2634 = vmatprep.subr.mxu0 0.0
    %2635 = vmatpush1.msra.mxu0 0.0
    %2636 = vmatprep.subr.mxu0 0.0
    %2637 = vmatpush1.msra.mxu0 0.0
    %2638 = vmatprep.subr.mxu0 0.0
    %2639 = vmatpush1.msra.mxu0 0.0
    %2640 = vmatprep.subr.mxu0 0.0
    %2641 = vmatpush1.msra.mxu0 0.0
    %2642 = vmatprep.subr.mxu0 0.0
    %2643 = vmatpush1.msra.mxu0 0.0
    %2644 = vmatprep.subr.mxu0 0.0
    %2645 = vmatpush1.msra.mxu0 0.0
    %2646 = vmatprep.subr.mxu0 0.0
    %2647 = vmatpush1.msra.mxu0 0.0
    %2648 = vmatprep.subr.mxu0 0.0
    %2649 = vmatpush1.msra.mxu0 0.0
    %2650 = vmatprep.subr.mxu0 0.0
    %2651 = vmatpush1.msra.mxu0 %v378
    %2652 = vmatprep.subr.mxu0 0.0
    %2653 = vmatpush1.msra.mxu0 %v377
    %2654 = vmatprep.subr.mxu0 0.0
    %2655 = vmatpush1.msra.mxu0 %v376
    %2656 = vmatprep.subr.mxu0 0.0
    %2657 = vmatpush1.msra.mxu0 %v375
    %2658 = vmatprep.subr.mxu0 0.0
    %2659 = vmatpush2.msra.mxu0 0.0
    %2660 = vmatprep.subr.mxu0 0.0
    %2661 = vmatpush2.msra.mxu0 0.0
    %2662 = vmatprep.subr.mxu0 0.0
    %2663 = vmatpush2.msra.mxu0 0.0
    %2664 = vmatprep.subr.mxu0 0.0
    %2665 = vmatpush2.msra.mxu0 0.0
    %2666 = vmatprep.subr.mxu0 0.0
    %2667 = vmatpush2.msra.mxu0 0.0
    %2668 = vmatprep.subr.mxu0 0.0
    %2669 = vmatpush2.msra.mxu0 0.0
    %2670 = vmatprep.subr.mxu0 0.0
    %2671 = vmatpush2.msra.mxu0 0.0
    %2672 = vmatprep.subr.mxu0 0.0
    %2673 = vmatpush2.msra.mxu0 0.0
    %2674 = vmatprep.subr.mxu0 0.0
    %2675 = vmatpush2.msra.mxu0 0.0
    %2676 = vmatprep.subr.mxu0 0.0
    %2677 = vmatpush2.msra.mxu0 0.0
    %2678 = vmatprep.subr.mxu0 0.0
    %2679 = vmatpush2.msra.mxu0 0.0
    %2680 = vmatprep.subr.mxu0 0.0
    %2681 = vmatpush2.msra.mxu0 0.0
    %2682 = vmatprep.subr.mxu0 0.0
    %2683 = vmatpush2.msra.mxu0 0.0
    %2684 = vmatprep.subr.mxu0 0.0
    %2685 = vmatpush2.msra.mxu0 0.0
    %2686 = vmatprep.subr.mxu0 0.0
    %2687 = vmatpush2.msra.mxu0 0.0
    %2688 = vmatprep.subr.mxu0 0.0
    %2689 = vmatpush2.msra.mxu0 0.0
    %2690 = vmatprep.mubr.f32.mxu0 0.0
    %2691 = vmatmul.mubr.f32.gmra.mxu0 %v2624
    %v2692 = vpop.f32.mrf.mxu0
    %v2693 = vadd.f32 %v2617, %v2692
    %v2694 = vpop.f32.mrf.mxu0
    %2695 = vdwg.mxu0
    %v2696 = vadd.f32 %v2693, %v412
    %v2697 = vxor.u32 %v2696, 2147483648
    %v2698 = vmul.f32 %v2697, 1.442695
    %v2699 = vpow.pop %v2698
    %v2700 = vadd.f32 %v2699, 1.0
    %v2701 = vrcp.pop %v2700
    %v2702 = vmul.f32 1.0, %v2701
    %v2703 = vtanh.pop %v2696
    %v2704 = vmul.f32 %v2702, %v2437
    %2706 = vrot.lane.b32.xlu0 %v2703, 32
    %v2707 = vpop.permute.xlu0 %2706
    %v2709 = vmul.f32 %v2702, %v2707
    %2711 = vrot.lane.b32.xlu0 %v2709, 32
    %v2712 = vpop.permute.xlu0 %2711
    %v2714 = vadd.f32 %v2704, %v2712
    %v2715 = vtanh.pop %v2714
    %2717 = vrot.lane.b32.xlu0 %v2715, 32
    %v2718 = vpop.permute.xlu0 %2717
    %v2720 = vmul.f32 %v2702, %v2718
    %2721 = vmatprep.subr.mxu0 0.0
    %2722 = vmatpush1.msra.mxu0 0.0
    %2723 = vmatprep.subr.mxu0 0.0
    %2724 = vmatpush1.msra.mxu0 0.0
    %2725 = vmatprep.subr.mxu0 0.0
    %2726 = vmatpush1.msra.mxu0 0.0
    %2727 = vmatprep.subr.mxu0 0.0
    %2728 = vmatpush1.msra.mxu0 0.0
    %2729 = vmatprep.subr.mxu0 0.0
    %2730 = vmatpush1.msra.mxu0 0.0
    %2731 = vmatprep.subr.mxu0 0.0
    %2732 = vmatpush1.msra.mxu0 0.0
    %2733 = vmatprep.subr.mxu0 0.0
    %2734 = vmatpush1.msra.mxu0 0.0
    %2735 = vmatprep.subr.mxu0 0.0
    %2736 = vmatpush1.msra.mxu0 0.0
    %2737 = vmatprep.subr.mxu0 0.0
    %2738 = vmatpush1.msra.mxu0 0.0
    %2739 = vmatprep.subr.mxu0 0.0
    %2740 = vmatpush1.msra.mxu0 0.0
    %2741 = vmatprep.subr.mxu0 0.0
    %2742 = vmatpush1.msra.mxu0 0.0
    %2743 = vmatprep.subr.mxu0 0.0
    %2744 = vmatpush1.msra.mxu0 0.0
    %2745 = vmatprep.subr.mxu0 0.0
    %2746 = vmatpush1.msra.mxu0 %v400
    %2747 = vmatprep.subr.mxu0 0.0
    %2748 = vmatpush1.msra.mxu0 %v399
    %2749 = vmatprep.subr.mxu0 0.0
    %2750 = vmatpush1.msra.mxu0 %v398
    %2751 = vmatprep.subr.mxu0 0.0
    %2752 = vmatpush1.msra.mxu0 %v397
    %2753 = vmatprep.subr.mxu0 0.0
    %2754 = vmatpush2.msra.mxu0 0.0
    %2755 = vmatprep.subr.mxu0 0.0
    %2756 = vmatpush2.msra.mxu0 0.0
    %2757 = vmatprep.subr.mxu0 0.0
    %2758 = vmatpush2.msra.mxu0 0.0
    %2759 = vmatprep.subr.mxu0 0.0
    %2760 = vmatpush2.msra.mxu0 0.0
    %2761 = vmatprep.subr.mxu0 0.0
    %2762 = vmatpush2.msra.mxu0 0.0
    %2763 = vmatprep.subr.mxu0 0.0
    %2764 = vmatpush2.msra.mxu0 0.0
    %2765 = vmatprep.subr.mxu0 0.0
    %2766 = vmatpush2.msra.mxu0 0.0
    %2767 = vmatprep.subr.mxu0 0.0
    %2768 = vmatpush2.msra.mxu0 0.0
    %2769 = vmatprep.subr.mxu0 0.0
    %2770 = vmatpush2.msra.mxu0 0.0
    %2771 = vmatprep.subr.mxu0 0.0
    %2772 = vmatpush2.msra.mxu0 0.0
    %2773 = vmatprep.subr.mxu0 0.0
    %2774 = vmatpush2.msra.mxu0 0.0
    %2775 = vmatprep.subr.mxu0 0.0
    %2776 = vmatpush2.msra.mxu0 0.0
    %2777 = vmatprep.subr.mxu0 0.0
    %2778 = vmatpush2.msra.mxu0 0.0
    %2779 = vmatprep.subr.mxu0 0.0
    %2780 = vmatpush2.msra.mxu0 0.0
    %2781 = vmatprep.subr.mxu0 0.0
    %2782 = vmatpush2.msra.mxu0 0.0
    %2783 = vmatprep.subr.mxu0 0.0
    %2784 = vmatpush2.msra.mxu0 0.0
    %2785 = vmatprep.mubr.f32.mxu0 0.0
    %2786 = vmatmul.mubr.f32.gmra.mxu0 %v2624
    %v2787 = vpop.f32.mrf.mxu0
    %v2788 = vadd.f32 0.0, %v2787
    %v2789 = vpop.f32.mrf.mxu0
    %2790 = vdwg.mxu0
    %2791 = vmatprep.subr.mxu0 0.0
    %2792 = vmatpush1.msra.mxu0 0.0
    %2793 = vmatprep.subr.mxu0 0.0
    %2794 = vmatpush1.msra.mxu0 0.0
    %2795 = vmatprep.subr.mxu0 0.0
    %2796 = vmatpush1.msra.mxu0 0.0
    %2797 = vmatprep.subr.mxu0 0.0
    %2798 = vmatpush1.msra.mxu0 0.0
    %2799 = vmatprep.subr.mxu0 0.0
    %2800 = vmatpush1.msra.mxu0 0.0
    %2801 = vmatprep.subr.mxu0 0.0
    %2802 = vmatpush1.msra.mxu0 0.0
    %2803 = vmatprep.subr.mxu0 0.0
    %2804 = vmatpush1.msra.mxu0 0.0
    %2805 = vmatprep.subr.mxu0 0.0
    %2806 = vmatpush1.msra.mxu0 0.0
    %2807 = vmatprep.subr.mxu0 0.0
    %2808 = vmatpush1.msra.mxu0 0.0
    %2809 = vmatprep.subr.mxu0 0.0
    %2810 = vmatpush1.msra.mxu0 0.0
    %2811 = vmatprep.subr.mxu0 0.0
    %2812 = vmatpush1.msra.mxu0 0.0
    %2813 = vmatprep.subr.mxu0 0.0
    %2814 = vmatpush1.msra.mxu0 0.0
    %2815 = vmatprep.subr.mxu0 0.0
    %2816 = vmatpush1.msra.mxu0 %v391
    %2817 = vmatprep.subr.mxu0 0.0
    %2818 = vmatpush1.msra.mxu0 %v390
    %2819 = vmatprep.subr.mxu0 0.0
    %2820 = vmatpush1.msra.mxu0 %v389
    %2821 = vmatprep.subr.mxu0 0.0
    %2822 = vmatpush1.msra.mxu0 %v388
    %2823 = vmatprep.subr.mxu0 0.0
    %2824 = vmatpush2.msra.mxu0 0.0
    %2825 = vmatprep.subr.mxu0 0.0
    %2826 = vmatpush2.msra.mxu0 0.0
    %2827 = vmatprep.subr.mxu0 0.0
    %2828 = vmatpush2.msra.mxu0 0.0
    %2829 = vmatprep.subr.mxu0 0.0
    %2830 = vmatpush2.msra.mxu0 0.0
    %2831 = vmatprep.subr.mxu0 0.0
    %2832 = vmatpush2.msra.mxu0 0.0
    %2833 = vmatprep.subr.mxu0 0.0
    %2834 = vmatpush2.msra.mxu0 0.0
    %2835 = vmatprep.subr.mxu0 0.0
    %2836 = vmatpush2.msra.mxu0 0.0
    %2837 = vmatprep.subr.mxu0 0.0
    %2838 = vmatpush2.msra.mxu0 0.0
    %2839 = vmatprep.subr.mxu0 0.0
    %2840 = vmatpush2.msra.mxu0 0.0
    %2841 = vmatprep.subr.mxu0 0.0
    %2842 = vmatpush2.msra.mxu0 0.0
    %2843 = vmatprep.subr.mxu0 0.0
    %2844 = vmatpush2.msra.mxu0 0.0
    %2845 = vmatprep.subr.mxu0 0.0
    %2846 = vmatpush2.msra.mxu0 0.0
    %2847 = vmatprep.subr.mxu0 0.0
    %2848 = vmatpush2.msra.mxu0 0.0
    %2849 = vmatprep.subr.mxu0 0.0
    %2850 = vmatpush2.msra.mxu0 0.0
    %2851 = vmatprep.subr.mxu0 0.0
    %2852 = vmatpush2.msra.mxu0 0.0
    %2853 = vmatprep.subr.mxu0 0.0
    %2854 = vmatpush2.msra.mxu0 0.0
    %2855 = vmatprep.mubr.f32.mxu0 0.0
    %2856 = vmatmul.mubr.f32.gmra.mxu0 %v519
    %v2857 = vpop.f32.mrf.mxu0
    %v2858 = vadd.f32 %v2788, %v2857
    %v2859 = vpop.f32.mrf.mxu0
    %2860 = vdwg.mxu0
    %v2861 = vadd.f32 %v2858, %v419
    %v2862 = vxor.u32 %v2861, 2147483648
    %v2863 = vmul.f32 %v2862, 1.442695
    %v2864 = vpow.pop %v2863
    %v2865 = vadd.f32 %v2864, 1.0
    %v2866 = vrcp.pop %v2865
    %v2867 = vmul.f32 1.0, %v2866
    %v2868 = vtanh.pop %v2861
    %v2870 = vrot.slane %v2538, 6
    %v2872 = vmul.f32 %v2867, %v2870
    %2874 = vrot.lane.b32.xlu0 %v2868, 32
    %v2875 = vpop.permute.xlu0 %2874
    %v2877 = vmul.f32 %v2867, %v2875
    %2879 = vrot.lane.b32.xlu0 %v2877, 32
    %v2880 = vpop.permute.xlu0 %2879
    %v2882 = vadd.f32 %v2872, %v2880
    %v2883 = vtanh.pop %v2882
    %2885 = vrot.lane.b32.xlu0 %v2883, 32
    %v2886 = vpop.permute.xlu0 %2885
    %v2888 = vmul.f32 %v2867, %v2886
    %2890 = vrot.lane.b32.xlu0 %v2720, 64
    %v2891 = vpop.permute.xlu0 %2890
    %v2892 = vsel %vm436, %v2891, 0
    %2894 = vmatprep.subr.mxu0 0.0
    %2895 = vmatpush1.msra.mxu0 0.0
    %2896 = vmatprep.subr.mxu0 0.0
    %2897 = vmatpush1.msra.mxu0 0.0
    %2898 = vmatprep.subr.mxu0 0.0
    %2899 = vmatpush1.msra.mxu0 0.0
    %2900 = vmatprep.subr.mxu0 0.0
    %2901 = vmatpush1.msra.mxu0 0.0
    %2902 = vmatprep.subr.mxu0 0.0
    %2903 = vmatpush1.msra.mxu0 0.0
    %2904 = vmatprep.subr.mxu0 0.0
    %2905 = vmatpush1.msra.mxu0 0.0
    %2906 = vmatprep.subr.mxu0 0.0
    %2907 = vmatpush1.msra.mxu0 0.0
    %2908 = vmatprep.subr.mxu0 0.0
    %2909 = vmatpush1.msra.mxu0 0.0
    %2910 = vmatprep.subr.mxu0 0.0
    %2911 = vmatpush1.msra.mxu0 0.0
    %2912 = vmatprep.subr.mxu0 0.0
    %2913 = vmatpush1.msra.mxu0 0.0
    %2914 = vmatprep.subr.mxu0 0.0
    %2915 = vmatpush1.msra.mxu0 0.0
    %2916 = vmatprep.subr.mxu0 0.0
    %2917 = vmatpush1.msra.mxu0 0.0
    %2918 = vmatprep.subr.mxu0 0.0
    %2919 = vmatpush1.msra.mxu0 %v405
    %2920 = vmatprep.subr.mxu0 0.0
    %2921 = vmatpush1.msra.mxu0 %v404
    %2922 = vmatprep.subr.mxu0 0.0
    %2923 = vmatpush1.msra.mxu0 %v403
    %2924 = vmatprep.subr.mxu0 0.0
    %2925 = vmatpush1.msra.mxu0 %v402
    %2926 = vmatprep.subr.mxu0 0.0
    %2927 = vmatpush2.msra.mxu0 0.0
    %2928 = vmatprep.subr.mxu0 0.0
    %2929 = vmatpush2.msra.mxu0 0.0
    %2930 = vmatprep.subr.mxu0 0.0
    %2931 = vmatpush2.msra.mxu0 0.0
    %2932 = vmatprep.subr.mxu0 0.0
    %2933 = vmatpush2.msra.mxu0 0.0
    %2934 = vmatprep.subr.mxu0 0.0
    %2935 = vmatpush2.msra.mxu0 0.0
    %2936 = vmatprep.subr.mxu0 0.0
    %2937 = vmatpush2.msra.mxu0 0.0
    %2938 = vmatprep.subr.mxu0 0.0
    %2939 = vmatpush2.msra.mxu0 0.0
    %2940 = vmatprep.subr.mxu0 0.0
    %2941 = vmatpush2.msra.mxu0 0.0
    %2942 = vmatprep.subr.mxu0 0.0
    %2943 = vmatpush2.msra.mxu0 0.0
    %2944 = vmatprep.subr.mxu0 0.0
    %2945 = vmatpush2.msra.mxu0 0.0
    %2946 = vmatprep.subr.mxu0 0.0
    %2947 = vmatpush2.msra.mxu0 0.0
    %2948 = vmatprep.subr.mxu0 0.0
    %2949 = vmatpush2.msra.mxu0 0.0
    %2950 = vmatprep.subr.mxu0 0.0
    %2951 = vmatpush2.msra.mxu0 0.0
    %2952 = vmatprep.subr.mxu0 0.0
    %2953 = vmatpush2.msra.mxu0 0.0
    %2954 = vmatprep.subr.mxu0 0.0
    %2955 = vmatpush2.msra.mxu0 0.0
    %2956 = vmatprep.subr.mxu0 0.0
    %2957 = vmatpush2.msra.mxu0 0.0
    %2958 = vmatprep.mubr.f32.mxu0 0.0
    %2959 = vmatmul.mubr.f32.gmra.mxu0 %v2892
    %v2960 = vpop.f32.mrf.mxu0
    %v2961 = vadd.f32 0.0, %v2960
    %v2962 = vpop.f32.mrf.mxu0
    %2963 = vdwg.mxu0
    %2965 = vrot.lane.b32.xlu0 %v2888, 64
    %v2966 = vpop.permute.xlu0 %2965
    %v2967 = vsel %vm436, %v2966, 0
    %2969 = vmatprep.subr.mxu0 0.0
    %2970 = vmatpush1.msra.mxu0 0.0
    %2971 = vmatprep.subr.mxu0 0.0
    %2972 = vmatpush1.msra.mxu0 0.0
    %2973 = vmatprep.subr.mxu0 0.0
    %2974 = vmatpush1.msra.mxu0 0.0
    %2975 = vmatprep.subr.mxu0 0.0
    %2976 = vmatpush1.msra.mxu0 0.0
    %2977 = vmatprep.subr.mxu0 0.0
    %2978 = vmatpush1.msra.mxu0 0.0
    %2979 = vmatprep.subr.mxu0 0.0
    %2980 = vmatpush1.msra.mxu0 0.0
    %2981 = vmatprep.subr.mxu0 0.0
    %2982 = vmatpush1.msra.mxu0 0.0
    %2983 = vmatprep.subr.mxu0 0.0
    %2984 = vmatpush1.msra.mxu0 0.0
    %2985 = vmatprep.subr.mxu0 0.0
    %2986 = vmatpush1.msra.mxu0 0.0
    %2987 = vmatprep.subr.mxu0 0.0
    %2988 = vmatpush1.msra.mxu0 0.0
    %2989 = vmatprep.subr.mxu0 0.0
    %2990 = vmatpush1.msra.mxu0 0.0
    %2991 = vmatprep.subr.mxu0 0.0
    %2992 = vmatpush1.msra.mxu0 0.0
    %2993 = vmatprep.subr.mxu0 0.0
    %2994 = vmatpush1.msra.mxu0 %v396
    %2995 = vmatprep.subr.mxu0 0.0
    %2996 = vmatpush1.msra.mxu0 %v395
    %2997 = vmatprep.subr.mxu0 0.0
    %2998 = vmatpush1.msra.mxu0 %v394
    %2999 = vmatprep.subr.mxu0 0.0
    %3000 = vmatpush1.msra.mxu0 %v393
    %3001 = vmatprep.subr.mxu0 0.0
    %3002 = vmatpush2.msra.mxu0 0.0
    %3003 = vmatprep.subr.mxu0 0.0
    %3004 = vmatpush2.msra.mxu0 0.0
    %3005 = vmatprep.subr.mxu0 0.0
    %3006 = vmatpush2.msra.mxu0 0.0
    %3007 = vmatprep.subr.mxu0 0.0
    %3008 = vmatpush2.msra.mxu0 0.0
    %3009 = vmatprep.subr.mxu0 0.0
    %3010 = vmatpush2.msra.mxu0 0.0
    %3011 = vmatprep.subr.mxu0 0.0
    %3012 = vmatpush2.msra.mxu0 0.0
    %3013 = vmatprep.subr.mxu0 0.0
    %3014 = vmatpush2.msra.mxu0 0.0
    %3015 = vmatprep.subr.mxu0 0.0
    %3016 = vmatpush2.msra.mxu0 0.0
    %3017 = vmatprep.subr.mxu0 0.0
    %3018 = vmatpush2.msra.mxu0 0.0
    %3019 = vmatprep.subr.mxu0 0.0
    %3020 = vmatpush2.msra.mxu0 0.0
    %3021 = vmatprep.subr.mxu0 0.0
    %3022 = vmatpush2.msra.mxu0 0.0
    %3023 = vmatprep.subr.mxu0 0.0
    %3024 = vmatpush2.msra.mxu0 0.0
    %3025 = vmatprep.subr.mxu0 0.0
    %3026 = vmatpush2.msra.mxu0 0.0
    %3027 = vmatprep.subr.mxu0 0.0
    %3028 = vmatpush2.msra.mxu0 0.0
    %3029 = vmatprep.subr.mxu0 0.0
    %3030 = vmatpush2.msra.mxu0 0.0
    %3031 = vmatprep.subr.mxu0 0.0
    %3032 = vmatpush2.msra.mxu0 0.0
    %3033 = vmatprep.mubr.f32.mxu0 0.0
    %3034 = vmatmul.mubr.f32.gmra.mxu0 %v2967
    %v3035 = vpop.f32.mrf.mxu0
    %v3036 = vadd.f32 %v2961, %v3035
    %v3037 = vpop.f32.mrf.mxu0
    %3038 = vdwg.mxu0
    %v3039 = vadd.f32 %v3036, %v427
    %v3040 = vxor.u32 %v3039, 2147483648
    %v3041 = vmul.f32 %v3040, 1.442695
    %v3042 = vpow.pop %v3041
    %v3043 = vadd.f32 %v3042, 1.0
    %v3044 = vrcp.pop %v3043
    %v3045 = vmul.f32 1.0, %v3044
    %v3046 = vtanh.pop %v3039
    %v3047 = vmul.f32 %v3045, %v2714
    %3049 = vrot.lane.b32.xlu0 %v3046, 32
    %v3050 = vpop.permute.xlu0 %3049
    %v3052 = vmul.f32 %v3045, %v3050
    %3054 = vrot.lane.b32.xlu0 %v3052, 32
    %v3055 = vpop.permute.xlu0 %3054
    %v3057 = vadd.f32 %v3047, %v3055
    %v3058 = vtanh.pop %v3057
    %3060 = vrot.lane.b32.xlu0 %v3058, 32
    %v3061 = vpop.permute.xlu0 %3060
    %v3063 = vmul.f32 %v3045, %v3061
    %3065 = vrot.lane.b32.xlu0 %v3063, 64
    %v3066 = vpop.permute.xlu0 %3065
    %vm3068 = vcmask 254976
    %3069 = vst.msk [vmem:[#allocation2] sm:$0x3] %vm3068, %v3066
    %3070 = vmatprep.subr.mxu0 0.0
    %3071 = vmatpush1.msra.mxu0 0.0
    %3072 = vmatprep.subr.mxu0 0.0
    %3073 = vmatpush1.msra.mxu0 0.0
    %3074 = vmatprep.subr.mxu0 0.0
    %3075 = vmatpush1.msra.mxu0 0.0
    %3076 = vmatprep.subr.mxu0 0.0
    %3077 = vmatpush1.msra.mxu0 0.0
    %3078 = vmatprep.subr.mxu0 0.0
    %3079 = vmatpush1.msra.mxu0 0.0
    %3080 = vmatprep.subr.mxu0 0.0
    %3081 = vmatpush1.msra.mxu0 0.0
    %3082 = vmatprep.subr.mxu0 0.0
    %3083 = vmatpush1.msra.mxu0 0.0
    %3084 = vmatprep.subr.mxu0 0.0
    %3085 = vmatpush1.msra.mxu0 0.0
    %3086 = vmatprep.subr.mxu0 0.0
    %3087 = vmatpush1.msra.mxu0 0.0
    %3088 = vmatprep.subr.mxu0 0.0
    %3089 = vmatpush1.msra.mxu0 0.0
    %3090 = vmatprep.subr.mxu0 0.0
    %3091 = vmatpush1.msra.mxu0 0.0
    %3092 = vmatprep.subr.mxu0 0.0
    %3093 = vmatpush1.msra.mxu0 0.0
    %3094 = vmatprep.subr.mxu0 0.0
    %3095 = vmatpush1.msra.mxu0 %v400
    %3096 = vmatprep.subr.mxu0 0.0
    %3097 = vmatpush1.msra.mxu0 %v399
    %3098 = vmatprep.subr.mxu0 0.0
    %3099 = vmatpush1.msra.mxu0 %v398
    %3100 = vmatprep.subr.mxu0 0.0
    %3101 = vmatpush1.msra.mxu0 %v397
    %3102 = vmatprep.subr.mxu0 0.0
    %3103 = vmatpush2.msra.mxu0 0.0
    %3104 = vmatprep.subr.mxu0 0.0
    %3105 = vmatpush2.msra.mxu0 0.0
    %3106 = vmatprep.subr.mxu0 0.0
    %3107 = vmatpush2.msra.mxu0 0.0
    %3108 = vmatprep.subr.mxu0 0.0
    %3109 = vmatpush2.msra.mxu0 0.0
    %3110 = vmatprep.subr.mxu0 0.0
    %3111 = vmatpush2.msra.mxu0 0.0
    %3112 = vmatprep.subr.mxu0 0.0
    %3113 = vmatpush2.msra.mxu0 0.0
    %3114 = vmatprep.subr.mxu0 0.0
    %3115 = vmatpush2.msra.mxu0 0.0
    %3116 = vmatprep.subr.mxu0 0.0
    %3117 = vmatpush2.msra.mxu0 0.0
    %3118 = vmatprep.subr.mxu0 0.0
    %3119 = vmatpush2.msra.mxu0 0.0
    %3120 = vmatprep.subr.mxu0 0.0
    %3121 = vmatpush2.msra.mxu0 0.0
    %3122 = vmatprep.subr.mxu0 0.0
    %3123 = vmatpush2.msra.mxu0 0.0
    %3124 = vmatprep.subr.mxu0 0.0
    %3125 = vmatpush2.msra.mxu0 0.0
    %3126 = vmatprep.subr.mxu0 0.0
    %3127 = vmatpush2.msra.mxu0 0.0
    %3128 = vmatprep.subr.mxu0 0.0
    %3129 = vmatpush2.msra.mxu0 0.0
    %3130 = vmatprep.subr.mxu0 0.0
    %3131 = vmatpush2.msra.mxu0 0.0
    %3132 = vmatprep.subr.mxu0 0.0
    %3133 = vmatpush2.msra.mxu0 0.0
    %3134 = vmatprep.mubr.f32.mxu0 0.0
    %3135 = vmatmul.mubr.f32.gmra.mxu0 %v2967
    %v3136 = vpop.f32.mrf.mxu0
    %v3137 = vadd.f32 0.0, %v3136
    %v3138 = vpop.f32.mrf.mxu0
    %3139 = vdwg.mxu0
    %v3140 = vsel %vm436, %v3066, 0
    %3142 = vmatprep.subr.mxu0 0.0
    %3143 = vmatpush1.msra.mxu0 0.0
    %3144 = vmatprep.subr.mxu0 0.0
    %3145 = vmatpush1.msra.mxu0 0.0
    %3146 = vmatprep.subr.mxu0 0.0
    %3147 = vmatpush1.msra.mxu0 0.0
    %3148 = vmatprep.subr.mxu0 0.0
    %3149 = vmatpush1.msra.mxu0 0.0
    %3150 = vmatprep.subr.mxu0 0.0
    %3151 = vmatpush1.msra.mxu0 0.0
    %3152 = vmatprep.subr.mxu0 0.0
    %3153 = vmatpush1.msra.mxu0 0.0
    %3154 = vmatprep.subr.mxu0 0.0
    %3155 = vmatpush1.msra.mxu0 0.0
    %3156 = vmatprep.subr.mxu0 0.0
    %3157 = vmatpush1.msra.mxu0 0.0
    %3158 = vmatprep.subr.mxu0 0.0
    %3159 = vmatpush1.msra.mxu0 0.0
    %3160 = vmatprep.subr.mxu0 0.0
    %3161 = vmatpush1.msra.mxu0 0.0
    %3162 = vmatprep.subr.mxu0 0.0
    %3163 = vmatpush1.msra.mxu0 0.0
    %3164 = vmatprep.subr.mxu0 0.0
    %3165 = vmatpush1.msra.mxu0 0.0
    %3166 = vmatprep.subr.mxu0 0.0
    %3167 = vmatpush1.msra.mxu0 %v391
    %3168 = vmatprep.subr.mxu0 0.0
    %3169 = vmatpush1.msra.mxu0 %v390
    %3170 = vmatprep.subr.mxu0 0.0
    %3171 = vmatpush1.msra.mxu0 %v389
    %3172 = vmatprep.subr.mxu0 0.0
    %3173 = vmatpush1.msra.mxu0 %v388
    %3174 = vmatprep.subr.mxu0 0.0
    %3175 = vmatpush2.msra.mxu0 0.0
    %3176 = vmatprep.subr.mxu0 0.0
    %3177 = vmatpush2.msra.mxu0 0.0
    %3178 = vmatprep.subr.mxu0 0.0
    %3179 = vmatpush2.msra.mxu0 0.0
    %3180 = vmatprep.subr.mxu0 0.0
    %3181 = vmatpush2.msra.mxu0 0.0
    %3182 = vmatprep.subr.mxu0 0.0
    %3183 = vmatpush2.msra.mxu0 0.0
    %3184 = vmatprep.subr.mxu0 0.0
    %3185 = vmatpush2.msra.mxu0 0.0
    %3186 = vmatprep.subr.mxu0 0.0
    %3187 = vmatpush2.msra.mxu0 0.0
    %3188 = vmatprep.subr.mxu0 0.0
    %3189 = vmatpush2.msra.mxu0 0.0
    %3190 = vmatprep.subr.mxu0 0.0
    %3191 = vmatpush2.msra.mxu0 0.0
    %3192 = vmatprep.subr.mxu0 0.0
    %3193 = vmatpush2.msra.mxu0 0.0
    %3194 = vmatprep.subr.mxu0 0.0
    %3195 = vmatpush2.msra.mxu0 0.0
    %3196 = vmatprep.subr.mxu0 0.0
    %3197 = vmatpush2.msra.mxu0 0.0
    %3198 = vmatprep.subr.mxu0 0.0
    %3199 = vmatpush2.msra.mxu0 0.0
    %3200 = vmatprep.subr.mxu0 0.0
    %3201 = vmatpush2.msra.mxu0 0.0
    %3202 = vmatprep.subr.mxu0 0.0
    %3203 = vmatpush2.msra.mxu0 0.0
    %3204 = vmatprep.subr.mxu0 0.0
    %3205 = vmatpush2.msra.mxu0 0.0
    %3206 = vmatprep.mubr.f32.mxu0 0.0
    %3207 = vmatmul.mubr.f32.gmra.mxu0 %v3140
    %v3208 = vpop.f32.mrf.mxu0
    %v3209 = vadd.f32 %v3137, %v3208
    %v3210 = vpop.f32.mrf.mxu0
    %3211 = vdwg.mxu0
    %v3212 = vadd.f32 %v3209, %v419
    %v3213 = vxor.u32 %v3212, 2147483648
    %v3214 = vmul.f32 %v3213, 1.442695
    %v3215 = vpow.pop %v3214
    %v3216 = vadd.f32 %v3215, 1.0
    %v3217 = vrcp.pop %v3216
    %v3218 = vmul.f32 1.0, %v3217
    %v3219 = vtanh.pop %v3212
    %v3220 = vmul.f32 %v3218, %v2882
    %3222 = vrot.lane.b32.xlu0 %v3219, 32
    %v3223 = vpop.permute.xlu0 %3222
    %v3225 = vmul.f32 %v3218, %v3223
    %3227 = vrot.lane.b32.xlu0 %v3225, 32
    %v3228 = vpop.permute.xlu0 %3227
    %v3230 = vadd.f32 %v3220, %v3228
    %v3231 = vtanh.pop %v3230
    %3233 = vrot.lane.b32.xlu0 %v3231, 32
    %v3234 = vpop.permute.xlu0 %3233
    %v3236 = vmul.f32 %v3218, %v3234
    %3237 = vmatprep.subr.mxu0 0.0
    %3238 = vmatpush1.msra.mxu0 0.0
    %3239 = vmatprep.subr.mxu0 0.0
    %3240 = vmatpush1.msra.mxu0 0.0
    %3241 = vmatprep.subr.mxu0 0.0
    %3242 = vmatpush1.msra.mxu0 0.0
    %3243 = vmatprep.subr.mxu0 0.0
    %3244 = vmatpush1.msra.mxu0 0.0
    %3245 = vmatprep.subr.mxu0 0.0
    %3246 = vmatpush1.msra.mxu0 0.0
    %3247 = vmatprep.subr.mxu0 0.0
    %3248 = vmatpush1.msra.mxu0 0.0
    %3249 = vmatprep.subr.mxu0 0.0
    %3250 = vmatpush1.msra.mxu0 0.0
    %3251 = vmatprep.subr.mxu0 0.0
    %3252 = vmatpush1.msra.mxu0 0.0
    %3253 = vmatprep.subr.mxu0 0.0
    %3254 = vmatpush1.msra.mxu0 0.0
    %3255 = vmatprep.subr.mxu0 0.0
    %3256 = vmatpush1.msra.mxu0 0.0
    %3257 = vmatprep.subr.mxu0 0.0
    %3258 = vmatpush1.msra.mxu0 0.0
    %3259 = vmatprep.subr.mxu0 0.0
    %3260 = vmatpush1.msra.mxu0 0.0
    %3261 = vmatprep.subr.mxu0 0.0
    %3262 = vmatpush1.msra.mxu0 %v405
    %3263 = vmatprep.subr.mxu0 0.0
    %3264 = vmatpush1.msra.mxu0 %v404
    %3265 = vmatprep.subr.mxu0 0.0
    %3266 = vmatpush1.msra.mxu0 %v403
    %3267 = vmatprep.subr.mxu0 0.0
    %3268 = vmatpush1.msra.mxu0 %v402
    %3269 = vmatprep.subr.mxu0 0.0
    %3270 = vmatpush2.msra.mxu0 0.0
    %3271 = vmatprep.subr.mxu0 0.0
    %3272 = vmatpush2.msra.mxu0 0.0
    %3273 = vmatprep.subr.mxu0 0.0
    %3274 = vmatpush2.msra.mxu0 0.0
    %3275 = vmatprep.subr.mxu0 0.0
    %3276 = vmatpush2.msra.mxu0 0.0
    %3277 = vmatprep.subr.mxu0 0.0
    %3278 = vmatpush2.msra.mxu0 0.0
    %3279 = vmatprep.subr.mxu0 0.0
    %3280 = vmatpush2.msra.mxu0 0.0
    %3281 = vmatprep.subr.mxu0 0.0
    %3282 = vmatpush2.msra.mxu0 0.0
    %3283 = vmatprep.subr.mxu0 0.0
    %3284 = vmatpush2.msra.mxu0 0.0
    %3285 = vmatprep.subr.mxu0 0.0
    %3286 = vmatpush2.msra.mxu0 0.0
    %3287 = vmatprep.subr.mxu0 0.0
    %3288 = vmatpush2.msra.mxu0 0.0
    %3289 = vmatprep.subr.mxu0 0.0
    %3290 = vmatpush2.msra.mxu0 0.0
    %3291 = vmatprep.subr.mxu0 0.0
    %3292 = vmatpush2.msra.mxu0 0.0
    %3293 = vmatprep.subr.mxu0 0.0
    %3294 = vmatpush2.msra.mxu0 0.0
    %3295 = vmatprep.subr.mxu0 0.0
    %3296 = vmatpush2.msra.mxu0 0.0
    %3297 = vmatprep.subr.mxu0 0.0
    %3298 = vmatpush2.msra.mxu0 0.0
    %3299 = vmatprep.subr.mxu0 0.0
    %3300 = vmatpush2.msra.mxu0 0.0
    %3301 = vmatprep.mubr.f32.mxu0 0.0
    %3302 = vmatmul.mubr.f32.gmra.mxu0 %v3140
    %v3303 = vpop.f32.mrf.mxu0
    %v3304 = vadd.f32 0.0, %v3303
    %v3305 = vpop.f32.mrf.mxu0
    %3306 = vdwg.mxu0
    %3308 = vrot.lane.b32.xlu0 %v3236, 64
    %v3309 = vpop.permute.xlu0 %3308
    %v3310 = vsel %vm436, %v3309, 0
    %3312 = vmatprep.subr.mxu0 0.0
    %3313 = vmatpush1.msra.mxu0 0.0
    %3314 = vmatprep.subr.mxu0 0.0
    %3315 = vmatpush1.msra.mxu0 0.0
    %3316 = vmatprep.subr.mxu0 0.0
    %3317 = vmatpush1.msra.mxu0 0.0
    %3318 = vmatprep.subr.mxu0 0.0
    %3319 = vmatpush1.msra.mxu0 0.0
    %3320 = vmatprep.subr.mxu0 0.0
    %3321 = vmatpush1.msra.mxu0 0.0
    %3322 = vmatprep.subr.mxu0 0.0
    %3323 = vmatpush1.msra.mxu0 0.0
    %3324 = vmatprep.subr.mxu0 0.0
    %3325 = vmatpush1.msra.mxu0 0.0
    %3326 = vmatprep.subr.mxu0 0.0
    %3327 = vmatpush1.msra.mxu0 0.0
    %3328 = vmatprep.subr.mxu0 0.0
    %3329 = vmatpush1.msra.mxu0 0.0
    %3330 = vmatprep.subr.mxu0 0.0
    %3331 = vmatpush1.msra.mxu0 0.0
    %3332 = vmatprep.subr.mxu0 0.0
    %3333 = vmatpush1.msra.mxu0 0.0
    %3334 = vmatprep.subr.mxu0 0.0
    %3335 = vmatpush1.msra.mxu0 0.0
    %3336 = vmatprep.subr.mxu0 0.0
    %3337 = vmatpush1.msra.mxu0 %v396
    %3338 = vmatprep.subr.mxu0 0.0
    %3339 = vmatpush1.msra.mxu0 %v395
    %3340 = vmatprep.subr.mxu0 0.0
    %3341 = vmatpush1.msra.mxu0 %v394
    %3342 = vmatprep.subr.mxu0 0.0
    %3343 = vmatpush1.msra.mxu0 %v393
    %3344 = vmatprep.subr.mxu0 0.0
    %3345 = vmatpush2.msra.mxu0 0.0
    %3346 = vmatprep.subr.mxu0 0.0
    %3347 = vmatpush2.msra.mxu0 0.0
    %3348 = vmatprep.subr.mxu0 0.0
    %3349 = vmatpush2.msra.mxu0 0.0
    %3350 = vmatprep.subr.mxu0 0.0
    %3351 = vmatpush2.msra.mxu0 0.0
    %3352 = vmatprep.subr.mxu0 0.0
    %3353 = vmatpush2.msra.mxu0 0.0
    %3354 = vmatprep.subr.mxu0 0.0
    %3355 = vmatpush2.msra.mxu0 0.0
    %3356 = vmatprep.subr.mxu0 0.0
    %3357 = vmatpush2.msra.mxu0 0.0
    %3358 = vmatprep.subr.mxu0 0.0
    %3359 = vmatpush2.msra.mxu0 0.0
    %3360 = vmatprep.subr.mxu0 0.0
    %3361 = vmatpush2.msra.mxu0 0.0
    %3362 = vmatprep.subr.mxu0 0.0
    %3363 = vmatpush2.msra.mxu0 0.0
    %3364 = vmatprep.subr.mxu0 0.0
    %3365 = vmatpush2.msra.mxu0 0.0
    %3366 = vmatprep.subr.mxu0 0.0
    %3367 = vmatpush2.msra.mxu0 0.0
    %3368 = vmatprep.subr.mxu0 0.0
    %3369 = vmatpush2.msra.mxu0 0.0
    %3370 = vmatprep.subr.mxu0 0.0
    %3371 = vmatpush2.msra.mxu0 0.0
    %3372 = vmatprep.subr.mxu0 0.0
    %3373 = vmatpush2.msra.mxu0 0.0
    %3374 = vmatprep.subr.mxu0 0.0
    %3375 = vmatpush2.msra.mxu0 0.0
    %3376 = vmatprep.mubr.f32.mxu0 0.0
    %3377 = vmatmul.mubr.f32.gmra.mxu0 %v3310
    %v3378 = vpop.f32.mrf.mxu0
    %v3379 = vadd.f32 %v3304, %v3378
    %v3380 = vpop.f32.mrf.mxu0
    %3381 = vdwg.mxu0
    %v3382 = vadd.f32 %v3379, %v427
    %v3383 = vxor.u32 %v3382, 2147483648
    %v3384 = vmul.f32 %v3383, 1.442695
    %v3385 = vpow.pop %v3384
    %v3386 = vadd.f32 %v3385, 1.0
    %v3387 = vrcp.pop %v3386
    %v3388 = vmul.f32 1.0, %v3387
    %v3389 = vtanh.pop %v3382
    %v3390 = vmul.f32 %v3388, %v3057
    %3392 = vrot.lane.b32.xlu0 %v3389, 32
    %v3393 = vpop.permute.xlu0 %3392
    %v3395 = vmul.f32 %v3388, %v3393
    %3397 = vrot.lane.b32.xlu0 %v3395, 32
    %v3398 = vpop.permute.xlu0 %3397
    %v3400 = vadd.f32 %v3390, %v3398
    %v3401 = vtanh.pop %v3400
    %3403 = vrot.lane.b32.xlu0 %v3401, 32
    %v3404 = vpop.permute.xlu0 %3403
    %v3406 = vmul.f32 %v3388, %v3404
    %3408 = vrot.lane.b32.xlu0 %v3406, 64
    %v3409 = vpop.permute.xlu0 %3408
    %3411 = vst.msk [vmem:[#allocation2 + $0x2] sm:$0x3] %vm3068, %v3409
    %3412 = vmatprep.subr.mxu0 0.0
    %3413 = vmatpush1.msra.mxu0 0.0
    %3414 = vmatprep.subr.mxu0 0.0
    %3415 = vmatpush1.msra.mxu0 0.0
    %3416 = vmatprep.subr.mxu0 0.0
    %3417 = vmatpush1.msra.mxu0 0.0
    %3418 = vmatprep.subr.mxu0 0.0
    %3419 = vmatpush1.msra.mxu0 0.0
    %3420 = vmatprep.subr.mxu0 0.0
    %3421 = vmatpush1.msra.mxu0 0.0
    %3422 = vmatprep.subr.mxu0 0.0
    %3423 = vmatpush1.msra.mxu0 0.0
    %3424 = vmatprep.subr.mxu0 0.0
    %3425 = vmatpush1.msra.mxu0 0.0
    %3426 = vmatprep.subr.mxu0 0.0
    %3427 = vmatpush1.msra.mxu0 0.0
    %3428 = vmatprep.subr.mxu0 0.0
    %3429 = vmatpush1.msra.mxu0 0.0
    %3430 = vmatprep.subr.mxu0 0.0
    %3431 = vmatpush1.msra.mxu0 0.0
    %3432 = vmatprep.subr.mxu0 0.0
    %3433 = vmatpush1.msra.mxu0 0.0
    %3434 = vmatprep.subr.mxu0 0.0
    %3435 = vmatpush1.msra.mxu0 0.0
    %3436 = vmatprep.subr.mxu0 0.0
    %3437 = vmatpush1.msra.mxu0 %v400
    %3438 = vmatprep.subr.mxu0 0.0
    %3439 = vmatpush1.msra.mxu0 %v399
    %3440 = vmatprep.subr.mxu0 0.0
    %3441 = vmatpush1.msra.mxu0 %v398
    %3442 = vmatprep.subr.mxu0 0.0
    %3443 = vmatpush1.msra.mxu0 %v397
    %3444 = vmatprep.subr.mxu0 0.0
    %3445 = vmatpush2.msra.mxu0 0.0
    %3446 = vmatprep.subr.mxu0 0.0
    %3447 = vmatpush2.msra.mxu0 0.0
    %3448 = vmatprep.subr.mxu0 0.0
    %3449 = vmatpush2.msra.mxu0 0.0
    %3450 = vmatprep.subr.mxu0 0.0
    %3451 = vmatpush2.msra.mxu0 0.0
    %3452 = vmatprep.subr.mxu0 0.0
    %3453 = vmatpush2.msra.mxu0 0.0
    %3454 = vmatprep.subr.mxu0 0.0
    %3455 = vmatpush2.msra.mxu0 0.0
    %3456 = vmatprep.subr.mxu0 0.0
    %3457 = vmatpush2.msra.mxu0 0.0
    %3458 = vmatprep.subr.mxu0 0.0
    %3459 = vmatpush2.msra.mxu0 0.0
    %3460 = vmatprep.subr.mxu0 0.0
    %3461 = vmatpush2.msra.mxu0 0.0
    %3462 = vmatprep.subr.mxu0 0.0
    %3463 = vmatpush2.msra.mxu0 0.0
    %3464 = vmatprep.subr.mxu0 0.0
    %3465 = vmatpush2.msra.mxu0 0.0
    %3466 = vmatprep.subr.mxu0 0.0
    %3467 = vmatpush2.msra.mxu0 0.0
    %3468 = vmatprep.subr.mxu0 0.0
    %3469 = vmatpush2.msra.mxu0 0.0
    %3470 = vmatprep.subr.mxu0 0.0
    %3471 = vmatpush2.msra.mxu0 0.0
    %3472 = vmatprep.subr.mxu0 0.0
    %3473 = vmatpush2.msra.mxu0 0.0
    %3474 = vmatprep.subr.mxu0 0.0
    %3475 = vmatpush2.msra.mxu0 0.0
    %3476 = vmatprep.mubr.f32.mxu0 0.0
    %3477 = vmatmul.mubr.f32.gmra.mxu0 %v3310
    %v3478 = vpop.f32.mrf.mxu0
    %v3479 = vadd.f32 0.0, %v3478
    %v3480 = vpop.f32.mrf.mxu0
    %3481 = vdwg.mxu0
    %v3482 = vsel %vm436, %v3409, 0
    %3484 = vmatprep.subr.mxu0 0.0
    %3485 = vmatpush1.msra.mxu0 0.0
    %3486 = vmatprep.subr.mxu0 0.0
    %3487 = vmatpush1.msra.mxu0 0.0
    %3488 = vmatprep.subr.mxu0 0.0
    %3489 = vmatpush1.msra.mxu0 0.0
    %3490 = vmatprep.subr.mxu0 0.0
    %3491 = vmatpush1.msra.mxu0 0.0
    %3492 = vmatprep.subr.mxu0 0.0
    %3493 = vmatpush1.msra.mxu0 0.0
    %3494 = vmatprep.subr.mxu0 0.0
    %3495 = vmatpush1.msra.mxu0 0.0
    %3496 = vmatprep.subr.mxu0 0.0
    %3497 = vmatpush1.msra.mxu0 0.0
    %3498 = vmatprep.subr.mxu0 0.0
    %3499 = vmatpush1.msra.mxu0 0.0
    %3500 = vmatprep.subr.mxu0 0.0
    %3501 = vmatpush1.msra.mxu0 0.0
    %3502 = vmatprep.subr.mxu0 0.0
    %3503 = vmatpush1.msra.mxu0 0.0
    %3504 = vmatprep.subr.mxu0 0.0
    %3505 = vmatpush1.msra.mxu0 0.0
    %3506 = vmatprep.subr.mxu0 0.0
    %3507 = vmatpush1.msra.mxu0 0.0
    %3508 = vmatprep.subr.mxu0 0.0
    %3509 = vmatpush1.msra.mxu0 %v391
    %3510 = vmatprep.subr.mxu0 0.0
    %3511 = vmatpush1.msra.mxu0 %v390
    %3512 = vmatprep.subr.mxu0 0.0
    %3513 = vmatpush1.msra.mxu0 %v389
    %3514 = vmatprep.subr.mxu0 0.0
    %3515 = vmatpush1.msra.mxu0 %v388
    %3516 = vmatprep.subr.mxu0 0.0
    %3517 = vmatpush2.msra.mxu0 0.0
    %3518 = vmatprep.subr.mxu0 0.0
    %3519 = vmatpush2.msra.mxu0 0.0
    %3520 = vmatprep.subr.mxu0 0.0
    %3521 = vmatpush2.msra.mxu0 0.0
    %3522 = vmatprep.subr.mxu0 0.0
    %3523 = vmatpush2.msra.mxu0 0.0
    %3524 = vmatprep.subr.mxu0 0.0
    %3525 = vmatpush2.msra.mxu0 0.0
    %3526 = vmatprep.subr.mxu0 0.0
    %3527 = vmatpush2.msra.mxu0 0.0
    %3528 = vmatprep.subr.mxu0 0.0
    %3529 = vmatpush2.msra.mxu0 0.0
    %3530 = vmatprep.subr.mxu0 0.0
    %3531 = vmatpush2.msra.mxu0 0.0
    %3532 = vmatprep.subr.mxu0 0.0
    %3533 = vmatpush2.msra.mxu0 0.0
    %3534 = vmatprep.subr.mxu0 0.0
    %3535 = vmatpush2.msra.mxu0 0.0
    %3536 = vmatprep.subr.mxu0 0.0
    %3537 = vmatpush2.msra.mxu0 0.0
    %3538 = vmatprep.subr.mxu0 0.0
    %3539 = vmatpush2.msra.mxu0 0.0
    %3540 = vmatprep.subr.mxu0 0.0
    %3541 = vmatpush2.msra.mxu0 0.0
    %3542 = vmatprep.subr.mxu0 0.0
    %3543 = vmatpush2.msra.mxu0 0.0
    %3544 = vmatprep.subr.mxu0 0.0
    %3545 = vmatpush2.msra.mxu0 0.0
    %3546 = vmatprep.subr.mxu0 0.0
    %3547 = vmatpush2.msra.mxu0 0.0
    %3548 = vmatprep.mubr.f32.mxu0 0.0
    %3549 = vmatmul.mubr.f32.gmra.mxu0 %v3482
    %v3550 = vpop.f32.mrf.mxu0
    %v3551 = vadd.f32 %v3479, %v3550
    %v3552 = vpop.f32.mrf.mxu0
    %3553 = vdwg.mxu0
    %v3554 = vadd.f32 %v3551, %v419
    %v3555 = vxor.u32 %v3554, 2147483648
    %v3556 = vmul.f32 %v3555, 1.442695
    %v3557 = vpow.pop %v3556
    %v3558 = vadd.f32 %v3557, 1.0
    %v3559 = vrcp.pop %v3558
    %v3560 = vmul.f32 1.0, %v3559
    %v3561 = vtanh.pop %v3554
    %v3562 = vmul.f32 %v3560, %v3230
    %3564 = vrot.lane.b32.xlu0 %v3561, 32
    %v3565 = vpop.permute.xlu0 %3564
    %v3567 = vmul.f32 %v3560, %v3565
    %3569 = vrot.lane.b32.xlu0 %v3567, 32
    %v3570 = vpop.permute.xlu0 %3569
    %v3572 = vadd.f32 %v3562, %v3570
    %v3573 = vtanh.pop %v3572
    %3575 = vrot.lane.b32.xlu0 %v3573, 32
    %v3576 = vpop.permute.xlu0 %3575
    %v3578 = vmul.f32 %v3560, %v3576
    %3579 = vmatprep.subr.mxu0 0.0
    %3580 = vmatpush1.msra.mxu0 0.0
    %3581 = vmatprep.subr.mxu0 0.0
    %3582 = vmatpush1.msra.mxu0 0.0
    %3583 = vmatprep.subr.mxu0 0.0
    %3584 = vmatpush1.msra.mxu0 0.0
    %3585 = vmatprep.subr.mxu0 0.0
    %3586 = vmatpush1.msra.mxu0 0.0
    %3587 = vmatprep.subr.mxu0 0.0
    %3588 = vmatpush1.msra.mxu0 0.0
    %3589 = vmatprep.subr.mxu0 0.0
    %3590 = vmatpush1.msra.mxu0 0.0
    %3591 = vmatprep.subr.mxu0 0.0
    %3592 = vmatpush1.msra.mxu0 0.0
    %3593 = vmatprep.subr.mxu0 0.0
    %3594 = vmatpush1.msra.mxu0 0.0
    %3595 = vmatprep.subr.mxu0 0.0
    %3596 = vmatpush1.msra.mxu0 0.0
    %3597 = vmatprep.subr.mxu0 0.0
    %3598 = vmatpush1.msra.mxu0 0.0
    %3599 = vmatprep.subr.mxu0 0.0
    %3600 = vmatpush1.msra.mxu0 0.0
    %3601 = vmatprep.subr.mxu0 0.0
    %3602 = vmatpush1.msra.mxu0 0.0
    %3603 = vmatprep.subr.mxu0 0.0
    %3604 = vmatpush1.msra.mxu0 %v405
    %3605 = vmatprep.subr.mxu0 0.0
    %3606 = vmatpush1.msra.mxu0 %v404
    %3607 = vmatprep.subr.mxu0 0.0
    %3608 = vmatpush1.msra.mxu0 %v403
    %3609 = vmatprep.subr.mxu0 0.0
    %3610 = vmatpush1.msra.mxu0 %v402
    %3611 = vmatprep.subr.mxu0 0.0
    %3612 = vmatpush2.msra.mxu0 0.0
    %3613 = vmatprep.subr.mxu0 0.0
    %3614 = vmatpush2.msra.mxu0 0.0
    %3615 = vmatprep.subr.mxu0 0.0
    %3616 = vmatpush2.msra.mxu0 0.0
    %3617 = vmatprep.subr.mxu0 0.0
    %3618 = vmatpush2.msra.mxu0 0.0
    %3619 = vmatprep.subr.mxu0 0.0
    %3620 = vmatpush2.msra.mxu0 0.0
    %3621 = vmatprep.subr.mxu0 0.0
    %3622 = vmatpush2.msra.mxu0 0.0
    %3623 = vmatprep.subr.mxu0 0.0
    %3624 = vmatpush2.msra.mxu0 0.0
    %3625 = vmatprep.subr.mxu0 0.0
    %3626 = vmatpush2.msra.mxu0 0.0
    %3627 = vmatprep.subr.mxu0 0.0
    %3628 = vmatpush2.msra.mxu0 0.0
    %3629 = vmatprep.subr.mxu0 0.0
    %3630 = vmatpush2.msra.mxu0 0.0
    %3631 = vmatprep.subr.mxu0 0.0
    %3632 = vmatpush2.msra.mxu0 0.0
    %3633 = vmatprep.subr.mxu0 0.0
    %3634 = vmatpush2.msra.mxu0 0.0
    %3635 = vmatprep.subr.mxu0 0.0
    %3636 = vmatpush2.msra.mxu0 0.0
    %3637 = vmatprep.subr.mxu0 0.0
    %3638 = vmatpush2.msra.mxu0 0.0
    %3639 = vmatprep.subr.mxu0 0.0
    %3640 = vmatpush2.msra.mxu0 0.0
    %3641 = vmatprep.subr.mxu0 0.0
    %3642 = vmatpush2.msra.mxu0 0.0
    %3643 = vmatprep.mubr.f32.mxu0 0.0
    %3644 = vmatmul.mubr.f32.gmra.mxu0 %v3482
    %v3645 = vpop.f32.mrf.mxu0
    %v3646 = vadd.f32 0.0, %v3645
    %v3647 = vpop.f32.mrf.mxu0
    %3648 = vdwg.mxu0
    %3650 = vrot.lane.b32.xlu0 %v3578, 64
    %v3651 = vpop.permute.xlu0 %3650
    %v3652 = vsel %vm436, %v3651, 0
    %3654 = vmatprep.subr.mxu0 0.0
    %3655 = vmatpush1.msra.mxu0 0.0
    %3656 = vmatprep.subr.mxu0 0.0
    %3657 = vmatpush1.msra.mxu0 0.0
    %3658 = vmatprep.subr.mxu0 0.0
    %3659 = vmatpush1.msra.mxu0 0.0
    %3660 = vmatprep.subr.mxu0 0.0
    %3661 = vmatpush1.msra.mxu0 0.0
    %3662 = vmatprep.subr.mxu0 0.0
    %3663 = vmatpush1.msra.mxu0 0.0
    %3664 = vmatprep.subr.mxu0 0.0
    %3665 = vmatpush1.msra.mxu0 0.0
    %3666 = vmatprep.subr.mxu0 0.0
    %3667 = vmatpush1.msra.mxu0 0.0
    %3668 = vmatprep.subr.mxu0 0.0
    %3669 = vmatpush1.msra.mxu0 0.0
    %3670 = vmatprep.subr.mxu0 0.0
    %3671 = vmatpush1.msra.mxu0 0.0
    %3672 = vmatprep.subr.mxu0 0.0
    %3673 = vmatpush1.msra.mxu0 0.0
    %3674 = vmatprep.subr.mxu0 0.0
    %3675 = vmatpush1.msra.mxu0 0.0
    %3676 = vmatprep.subr.mxu0 0.0
    %3677 = vmatpush1.msra.mxu0 0.0
    %3678 = vmatprep.subr.mxu0 0.0
    %3679 = vmatpush1.msra.mxu0 %v396
    %3680 = vmatprep.subr.mxu0 0.0
    %3681 = vmatpush1.msra.mxu0 %v395
    %3682 = vmatprep.subr.mxu0 0.0
    %3683 = vmatpush1.msra.mxu0 %v394
    %3684 = vmatprep.subr.mxu0 0.0
    %3685 = vmatpush1.msra.mxu0 %v393
    %3686 = vmatprep.subr.mxu0 0.0
    %3687 = vmatpush2.msra.mxu0 0.0
    %3688 = vmatprep.subr.mxu0 0.0
    %3689 = vmatpush2.msra.mxu0 0.0
    %3690 = vmatprep.subr.mxu0 0.0
    %3691 = vmatpush2.msra.mxu0 0.0
    %3692 = vmatprep.subr.mxu0 0.0
    %3693 = vmatpush2.msra.mxu0 0.0
    %3694 = vmatprep.subr.mxu0 0.0
    %3695 = vmatpush2.msra.mxu0 0.0
    %3696 = vmatprep.subr.mxu0 0.0
    %3697 = vmatpush2.msra.mxu0 0.0
    %3698 = vmatprep.subr.mxu0 0.0
    %3699 = vmatpush2.msra.mxu0 0.0
    %3700 = vmatprep.subr.mxu0 0.0
    %3701 = vmatpush2.msra.mxu0 0.0
    %3702 = vmatprep.subr.mxu0 0.0
    %3703 = vmatpush2.msra.mxu0 0.0
    %3704 = vmatprep.subr.mxu0 0.0
    %3705 = vmatpush2.msra.mxu0 0.0
    %3706 = vmatprep.subr.mxu0 0.0
    %3707 = vmatpush2.msra.mxu0 0.0
    %3708 = vmatprep.subr.mxu0 0.0
    %3709 = vmatpush2.msra.mxu0 0.0
    %3710 = vmatprep.subr.mxu0 0.0
    %3711 = vmatpush2.msra.mxu0 0.0
    %3712 = vmatprep.subr.mxu0 0.0
    %3713 = vmatpush2.msra.mxu0 0.0
    %3714 = vmatprep.subr.mxu0 0.0
    %3715 = vmatpush2.msra.mxu0 0.0
    %3716 = vmatprep.subr.mxu0 0.0
    %3717 = vmatpush2.msra.mxu0 0.0
    %3718 = vmatprep.mubr.f32.mxu0 0.0
    %3719 = vmatmul.mubr.f32.gmra.mxu0 %v3652
    %v3720 = vpop.f32.mrf.mxu0
    %v3721 = vadd.f32 %v3646, %v3720
    %v3722 = vpop.f32.mrf.mxu0
    %3723 = vdwg.mxu0
    %v3724 = vadd.f32 %v3721, %v427
    %v3725 = vxor.u32 %v3724, 2147483648
    %v3726 = vmul.f32 %v3725, 1.442695
    %v3727 = vpow.pop %v3726
    %v3728 = vadd.f32 %v3727, 1.0
    %v3729 = vrcp.pop %v3728
    %v3730 = vmul.f32 1.0, %v3729
    %v3731 = vtanh.pop %v3724
    %v3732 = vmul.f32 %v3730, %v3400
    %3734 = vrot.lane.b32.xlu0 %v3731, 32
    %v3735 = vpop.permute.xlu0 %3734
    %v3737 = vmul.f32 %v3730, %v3735
    %3739 = vrot.lane.b32.xlu0 %v3737, 32
    %v3740 = vpop.permute.xlu0 %3739
    %v3742 = vadd.f32 %v3732, %v3740
    %v3743 = vtanh.pop %v3742
    %3745 = vrot.lane.b32.xlu0 %v3743, 32
    %v3746 = vpop.permute.xlu0 %3745
    %v3748 = vmul.f32 %v3730, %v3746
    %3750 = vrot.lane.b32.xlu0 %v3748, 64
    %v3751 = vpop.permute.xlu0 %3750
    %3753 = vst.msk [vmem:[#allocation2 + $0x4] sm:$0x3] %vm3068, %v3751
    %3754 = vmatprep.subr.mxu0 0.0
    %3755 = vmatpush1.msra.mxu0 0.0
    %3756 = vmatprep.subr.mxu0 0.0
    %3757 = vmatpush1.msra.mxu0 0.0
    %3758 = vmatprep.subr.mxu0 0.0
    %3759 = vmatpush1.msra.mxu0 0.0
    %3760 = vmatprep.subr.mxu0 0.0
    %3761 = vmatpush1.msra.mxu0 0.0
    %3762 = vmatprep.subr.mxu0 0.0
    %3763 = vmatpush1.msra.mxu0 0.0
    %3764 = vmatprep.subr.mxu0 0.0
    %3765 = vmatpush1.msra.mxu0 0.0
    %3766 = vmatprep.subr.mxu0 0.0
    %3767 = vmatpush1.msra.mxu0 0.0
    %3768 = vmatprep.subr.mxu0 0.0
    %3769 = vmatpush1.msra.mxu0 0.0
    %3770 = vmatprep.subr.mxu0 0.0
    %3771 = vmatpush1.msra.mxu0 0.0
    %3772 = vmatprep.subr.mxu0 0.0
    %3773 = vmatpush1.msra.mxu0 0.0
    %3774 = vmatprep.subr.mxu0 0.0
    %3775 = vmatpush1.msra.mxu0 0.0
    %3776 = vmatprep.subr.mxu0 0.0
    %3777 = vmatpush1.msra.mxu0 0.0
    %3778 = vmatprep.subr.mxu0 0.0
    %3779 = vmatpush1.msra.mxu0 %v400
    %3780 = vmatprep.subr.mxu0 0.0
    %3781 = vmatpush1.msra.mxu0 %v399
    %3782 = vmatprep.subr.mxu0 0.0
    %3783 = vmatpush1.msra.mxu0 %v398
    %3784 = vmatprep.subr.mxu0 0.0
    %3785 = vmatpush1.msra.mxu0 %v397
    %3786 = vmatprep.subr.mxu0 0.0
    %3787 = vmatpush2.msra.mxu0 0.0
    %3788 = vmatprep.subr.mxu0 0.0
    %3789 = vmatpush2.msra.mxu0 0.0
    %3790 = vmatprep.subr.mxu0 0.0
    %3791 = vmatpush2.msra.mxu0 0.0
    %3792 = vmatprep.subr.mxu0 0.0
    %3793 = vmatpush2.msra.mxu0 0.0
    %3794 = vmatprep.subr.mxu0 0.0
    %3795 = vmatpush2.msra.mxu0 0.0
    %3796 = vmatprep.subr.mxu0 0.0
    %3797 = vmatpush2.msra.mxu0 0.0
    %3798 = vmatprep.subr.mxu0 0.0
    %3799 = vmatpush2.msra.mxu0 0.0
    %3800 = vmatprep.subr.mxu0 0.0
    %3801 = vmatpush2.msra.mxu0 0.0
    %3802 = vmatprep.subr.mxu0 0.0
    %3803 = vmatpush2.msra.mxu0 0.0
    %3804 = vmatprep.subr.mxu0 0.0
    %3805 = vmatpush2.msra.mxu0 0.0
    %3806 = vmatprep.subr.mxu0 0.0
    %3807 = vmatpush2.msra.mxu0 0.0
    %3808 = vmatprep.subr.mxu0 0.0
    %3809 = vmatpush2.msra.mxu0 0.0
    %3810 = vmatprep.subr.mxu0 0.0
    %3811 = vmatpush2.msra.mxu0 0.0
    %3812 = vmatprep.subr.mxu0 0.0
    %3813 = vmatpush2.msra.mxu0 0.0
    %3814 = vmatprep.subr.mxu0 0.0
    %3815 = vmatpush2.msra.mxu0 0.0
    %3816 = vmatprep.subr.mxu0 0.0
    %3817 = vmatpush2.msra.mxu0 0.0
    %3818 = vmatprep.mubr.f32.mxu0 0.0
    %3819 = vmatmul.mubr.f32.gmra.mxu0 %v3652
    %v3820 = vpop.f32.mrf.mxu0
    %v3821 = vadd.f32 0.0, %v3820
    %v3822 = vpop.f32.mrf.mxu0
    %3823 = vdwg.mxu0
    %v3824 = vsel %vm436, %v3751, 0
    %3826 = vmatprep.subr.mxu0 0.0
    %3827 = vmatpush1.msra.mxu0 0.0
    %3828 = vmatprep.subr.mxu0 0.0
    %3829 = vmatpush1.msra.mxu0 0.0
    %3830 = vmatprep.subr.mxu0 0.0
    %3831 = vmatpush1.msra.mxu0 0.0
    %3832 = vmatprep.subr.mxu0 0.0
    %3833 = vmatpush1.msra.mxu0 0.0
    %3834 = vmatprep.subr.mxu0 0.0
    %3835 = vmatpush1.msra.mxu0 0.0
    %3836 = vmatprep.subr.mxu0 0.0
    %3837 = vmatpush1.msra.mxu0 0.0
    %3838 = vmatprep.subr.mxu0 0.0
    %3839 = vmatpush1.msra.mxu0 0.0
    %3840 = vmatprep.subr.mxu0 0.0
    %3841 = vmatpush1.msra.mxu0 0.0
    %3842 = vmatprep.subr.mxu0 0.0
    %3843 = vmatpush1.msra.mxu0 0.0
    %3844 = vmatprep.subr.mxu0 0.0
    %3845 = vmatpush1.msra.mxu0 0.0
    %3846 = vmatprep.subr.mxu0 0.0
    %3847 = vmatpush1.msra.mxu0 0.0
    %3848 = vmatprep.subr.mxu0 0.0
    %3849 = vmatpush1.msra.mxu0 0.0
    %3850 = vmatprep.subr.mxu0 0.0
    %3851 = vmatpush1.msra.mxu0 %v391
    %3852 = vmatprep.subr.mxu0 0.0
    %3853 = vmatpush1.msra.mxu0 %v390
    %3854 = vmatprep.subr.mxu0 0.0
    %3855 = vmatpush1.msra.mxu0 %v389
    %3856 = vmatprep.subr.mxu0 0.0
    %3857 = vmatpush1.msra.mxu0 %v388
    %3858 = vmatprep.subr.mxu0 0.0
    %3859 = vmatpush2.msra.mxu0 0.0
    %3860 = vmatprep.subr.mxu0 0.0
    %3861 = vmatpush2.msra.mxu0 0.0
    %3862 = vmatprep.subr.mxu0 0.0
    %3863 = vmatpush2.msra.mxu0 0.0
    %3864 = vmatprep.subr.mxu0 0.0
    %3865 = vmatpush2.msra.mxu0 0.0
    %3866 = vmatprep.subr.mxu0 0.0
    %3867 = vmatpush2.msra.mxu0 0.0
    %3868 = vmatprep.subr.mxu0 0.0
    %3869 = vmatpush2.msra.mxu0 0.0
    %3870 = vmatprep.subr.mxu0 0.0
    %3871 = vmatpush2.msra.mxu0 0.0
    %3872 = vmatprep.subr.mxu0 0.0
    %3873 = vmatpush2.msra.mxu0 0.0
    %3874 = vmatprep.subr.mxu0 0.0
    %3875 = vmatpush2.msra.mxu0 0.0
    %3876 = vmatprep.subr.mxu0 0.0
    %3877 = vmatpush2.msra.mxu0 0.0
    %3878 = vmatprep.subr.mxu0 0.0
    %3879 = vmatpush2.msra.mxu0 0.0
    %3880 = vmatprep.subr.mxu0 0.0
    %3881 = vmatpush2.msra.mxu0 0.0
    %3882 = vmatprep.subr.mxu0 0.0
    %3883 = vmatpush2.msra.mxu0 0.0
    %3884 = vmatprep.subr.mxu0 0.0
    %3885 = vmatpush2.msra.mxu0 0.0
    %3886 = vmatprep.subr.mxu0 0.0
    %3887 = vmatpush2.msra.mxu0 0.0
    %3888 = vmatprep.subr.mxu0 0.0
    %3889 = vmatpush2.msra.mxu0 0.0
    %3890 = vmatprep.mubr.f32.mxu0 0.0
    %3891 = vmatmul.mubr.f32.gmra.mxu0 %v3824
    %v3892 = vpop.f32.mrf.mxu0
    %v3893 = vadd.f32 %v3821, %v3892
    %v3894 = vpop.f32.mrf.mxu0
    %3895 = vdwg.mxu0
    %v3896 = vadd.f32 %v3893, %v419
    %v3897 = vxor.u32 %v3896, 2147483648
    %v3898 = vmul.f32 %v3897, 1.442695
    %v3899 = vpow.pop %v3898
    %v3900 = vadd.f32 %v3899, 1.0
    %v3901 = vrcp.pop %v3900
    %v3902 = vmul.f32 1.0, %v3901
    %v3903 = vtanh.pop %v3896
    %v3904 = vmul.f32 %v3902, %v3572
    %3906 = vrot.lane.b32.xlu0 %v3903, 32
    %v3907 = vpop.permute.xlu0 %3906
    %v3909 = vmul.f32 %v3902, %v3907
    %3911 = vrot.lane.b32.xlu0 %v3909, 32
    %v3912 = vpop.permute.xlu0 %3911
    %v3914 = vadd.f32 %v3904, %v3912
    %v3915 = vtanh.pop %v3914
    %3917 = vrot.lane.b32.xlu0 %v3915, 32
    %v3918 = vpop.permute.xlu0 %3917
    %v3920 = vmul.f32 %v3902, %v3918
    %3921 = vmatprep.subr.mxu0 0.0
    %3922 = vmatpush1.msra.mxu0 0.0
    %3923 = vmatprep.subr.mxu0 0.0
    %3924 = vmatpush1.msra.mxu0 0.0
    %3925 = vmatprep.subr.mxu0 0.0
    %3926 = vmatpush1.msra.mxu0 0.0
    %3927 = vmatprep.subr.mxu0 0.0
    %3928 = vmatpush1.msra.mxu0 0.0
    %3929 = vmatprep.subr.mxu0 0.0
    %3930 = vmatpush1.msra.mxu0 0.0
    %3931 = vmatprep.subr.mxu0 0.0
    %3932 = vmatpush1.msra.mxu0 0.0
    %3933 = vmatprep.subr.mxu0 0.0
    %3934 = vmatpush1.msra.mxu0 0.0
    %3935 = vmatprep.subr.mxu0 0.0
    %3936 = vmatpush1.msra.mxu0 0.0
    %3937 = vmatprep.subr.mxu0 0.0
    %3938 = vmatpush1.msra.mxu0 0.0
    %3939 = vmatprep.subr.mxu0 0.0
    %3940 = vmatpush1.msra.mxu0 0.0
    %3941 = vmatprep.subr.mxu0 0.0
    %3942 = vmatpush1.msra.mxu0 0.0
    %3943 = vmatprep.subr.mxu0 0.0
    %3944 = vmatpush1.msra.mxu0 0.0
    %3945 = vmatprep.subr.mxu0 0.0
    %3946 = vmatpush1.msra.mxu0 %v405
    %3947 = vmatprep.subr.mxu0 0.0
    %3948 = vmatpush1.msra.mxu0 %v404
    %3949 = vmatprep.subr.mxu0 0.0
    %3950 = vmatpush1.msra.mxu0 %v403
    %3951 = vmatprep.subr.mxu0 0.0
    %3952 = vmatpush1.msra.mxu0 %v402
    %3953 = vmatprep.subr.mxu0 0.0
    %3954 = vmatpush2.msra.mxu0 0.0
    %3955 = vmatprep.subr.mxu0 0.0
    %3956 = vmatpush2.msra.mxu0 0.0
    %3957 = vmatprep.subr.mxu0 0.0
    %3958 = vmatpush2.msra.mxu0 0.0
    %3959 = vmatprep.subr.mxu0 0.0
    %3960 = vmatpush2.msra.mxu0 0.0
    %3961 = vmatprep.subr.mxu0 0.0
    %3962 = vmatpush2.msra.mxu0 0.0
    %3963 = vmatprep.subr.mxu0 0.0
    %3964 = vmatpush2.msra.mxu0 0.0
    %3965 = vmatprep.subr.mxu0 0.0
    %3966 = vmatpush2.msra.mxu0 0.0
    %3967 = vmatprep.subr.mxu0 0.0
    %3968 = vmatpush2.msra.mxu0 0.0
    %3969 = vmatprep.subr.mxu0 0.0
    %3970 = vmatpush2.msra.mxu0 0.0
    %3971 = vmatprep.subr.mxu0 0.0
    %3972 = vmatpush2.msra.mxu0 0.0
    %3973 = vmatprep.subr.mxu0 0.0
    %3974 = vmatpush2.msra.mxu0 0.0
    %3975 = vmatprep.subr.mxu0 0.0
    %3976 = vmatpush2.msra.mxu0 0.0
    %3977 = vmatprep.subr.mxu0 0.0
    %3978 = vmatpush2.msra.mxu0 0.0
    %3979 = vmatprep.subr.mxu0 0.0
    %3980 = vmatpush2.msra.mxu0 0.0
    %3981 = vmatprep.subr.mxu0 0.0
    %3982 = vmatpush2.msra.mxu0 0.0
    %3983 = vmatprep.subr.mxu0 0.0
    %3984 = vmatpush2.msra.mxu0 0.0
    %3985 = vmatprep.mubr.f32.mxu0 0.0
    %3986 = vmatmul.mubr.f32.gmra.mxu0 %v3824
    %v3987 = vpop.f32.mrf.mxu0
    %v3988 = vadd.f32 0.0, %v3987
    %v3989 = vpop.f32.mrf.mxu0
    %3990 = vdwg.mxu0
    %3992 = vrot.lane.b32.xlu0 %v3920, 64
    %v3993 = vpop.permute.xlu0 %3992
    %v3994 = vsel %vm436, %v3993, 0
    %3996 = vmatprep.subr.mxu0 0.0
    %3997 = vmatpush1.msra.mxu0 0.0
    %3998 = vmatprep.subr.mxu0 0.0
    %3999 = vmatpush1.msra.mxu0 0.0
    %4000 = vmatprep.subr.mxu0 0.0
    %4001 = vmatpush1.msra.mxu0 0.0
    %4002 = vmatprep.subr.mxu0 0.0
    %4003 = vmatpush1.msra.mxu0 0.0
    %4004 = vmatprep.subr.mxu0 0.0
    %4005 = vmatpush1.msra.mxu0 0.0
    %4006 = vmatprep.subr.mxu0 0.0
    %4007 = vmatpush1.msra.mxu0 0.0
    %4008 = vmatprep.subr.mxu0 0.0
    %4009 = vmatpush1.msra.mxu0 0.0
    %4010 = vmatprep.subr.mxu0 0.0
    %4011 = vmatpush1.msra.mxu0 0.0
    %4012 = vmatprep.subr.mxu0 0.0
    %4013 = vmatpush1.msra.mxu0 0.0
    %4014 = vmatprep.subr.mxu0 0.0
    %4015 = vmatpush1.msra.mxu0 0.0
    %4016 = vmatprep.subr.mxu0 0.0
    %4017 = vmatpush1.msra.mxu0 0.0
    %4018 = vmatprep.subr.mxu0 0.0
    %4019 = vmatpush1.msra.mxu0 0.0
    %4020 = vmatprep.subr.mxu0 0.0
    %4021 = vmatpush1.msra.mxu0 %v396
    %4022 = vmatprep.subr.mxu0 0.0
    %4023 = vmatpush1.msra.mxu0 %v395
    %4024 = vmatprep.subr.mxu0 0.0
    %4025 = vmatpush1.msra.mxu0 %v394
    %4026 = vmatprep.subr.mxu0 0.0
    %4027 = vmatpush1.msra.mxu0 %v393
    %4028 = vmatprep.subr.mxu0 0.0
    %4029 = vmatpush2.msra.mxu0 0.0
    %4030 = vmatprep.subr.mxu0 0.0
    %4031 = vmatpush2.msra.mxu0 0.0
    %4032 = vmatprep.subr.mxu0 0.0
    %4033 = vmatpush2.msra.mxu0 0.0
    %4034 = vmatprep.subr.mxu0 0.0
    %4035 = vmatpush2.msra.mxu0 0.0
    %4036 = vmatprep.subr.mxu0 0.0
    %4037 = vmatpush2.msra.mxu0 0.0
    %4038 = vmatprep.subr.mxu0 0.0
    %4039 = vmatpush2.msra.mxu0 0.0
    %4040 = vmatprep.subr.mxu0 0.0
    %4041 = vmatpush2.msra.mxu0 0.0
    %4042 = vmatprep.subr.mxu0 0.0
    %4043 = vmatpush2.msra.mxu0 0.0
    %4044 = vmatprep.subr.mxu0 0.0
    %4045 = vmatpush2.msra.mxu0 0.0
    %4046 = vmatprep.subr.mxu0 0.0
    %4047 = vmatpush2.msra.mxu0 0.0
    %4048 = vmatprep.subr.mxu0 0.0
    %4049 = vmatpush2.msra.mxu0 0.0
    %4050 = vmatprep.subr.mxu0 0.0
    %4051 = vmatpush2.msra.mxu0 0.0
    %4052 = vmatprep.subr.mxu0 0.0
    %4053 = vmatpush2.msra.mxu0 0.0
    %4054 = vmatprep.subr.mxu0 0.0
    %4055 = vmatpush2.msra.mxu0 0.0
    %4056 = vmatprep.subr.mxu0 0.0
    %4057 = vmatpush2.msra.mxu0 0.0
    %4058 = vmatprep.subr.mxu0 0.0
    %4059 = vmatpush2.msra.mxu0 0.0
    %4060 = vmatprep.mubr.f32.mxu0 0.0
    %4061 = vmatmul.mubr.f32.gmra.mxu0 %v3994
    %v4062 = vpop.f32.mrf.mxu0
    %v4063 = vadd.f32 %v3988, %v4062
    %v4064 = vpop.f32.mrf.mxu0
    %4065 = vdwg.mxu0
    %v4066 = vadd.f32 %v4063, %v427
    %v4067 = vxor.u32 %v4066, 2147483648
    %v4068 = vmul.f32 %v4067, 1.442695
    %v4069 = vpow.pop %v4068
    %v4070 = vadd.f32 %v4069, 1.0
    %v4071 = vrcp.pop %v4070
    %v4072 = vmul.f32 1.0, %v4071
    %v4073 = vtanh.pop %v4066
    %v4074 = vmul.f32 %v4072, %v3742
    %4076 = vrot.lane.b32.xlu0 %v4073, 32
    %v4077 = vpop.permute.xlu0 %4076
    %v4079 = vmul.f32 %v4072, %v4077
    %4081 = vrot.lane.b32.xlu0 %v4079, 32
    %v4082 = vpop.permute.xlu0 %4081
    %v4084 = vadd.f32 %v4074, %v4082
    %v4085 = vtanh.pop %v4084
    %4087 = vrot.lane.b32.xlu0 %v4085, 32
    %v4088 = vpop.permute.xlu0 %4087
    %v4090 = vmul.f32 %v4072, %v4088
    %4092 = vrot.lane.b32.xlu0 %v4090, 64
    %v4093 = vpop.permute.xlu0 %4092
    %4095 = vst.msk [vmem:[#allocation2 + $0x6] sm:$0x3] %vm3068, %v4093
    %v4096 = vld [vmem:[#allocation2] sm:$0xff]
    %v4097 = vld [vmem:[%s13] sm:$0xff]
    %v4098 = vld [vmem:[%s13 + $0x8] sm:$0xff]
    %v4099 = vld [vmem:[%s13 + $0x10] sm:$0xff]
    %v4100 = vld [vmem:[%s13 + $0x18] sm:$0xff]
    %v4101 = vld [vmem:[%s14] sm:$0x1]
    %v4103 = vlaneseq
    %v4104 = vshrl.u32 %v4103, 7
    %v4105 = vsub.s32 0, %v4104
    %v4106 = vrot.slane %v4101, %v4105
    %v4109 = vsel %vm436, %v4096, 0
    %4111 = vmatprep.subr.mxu0 0.0
    %4112 = vmatpush1.msra.mxu0 0.0
    %4113 = vmatprep.subr.mxu0 0.0
    %4114 = vmatpush1.msra.mxu0 0.0
    %4115 = vmatprep.subr.mxu0 0.0
    %4116 = vmatpush1.msra.mxu0 0.0
    %4117 = vmatprep.subr.mxu0 0.0
    %4118 = vmatpush1.msra.mxu0 0.0
    %4119 = vmatprep.subr.mxu0 0.0
    %4120 = vmatpush1.msra.mxu0 0.0
    %4121 = vmatprep.subr.mxu0 0.0
    %4122 = vmatpush1.msra.mxu0 0.0
    %4123 = vmatprep.subr.mxu0 0.0
    %4124 = vmatpush1.msra.mxu0 0.0
    %4125 = vmatprep.subr.mxu0 0.0
    %4126 = vmatpush1.msra.mxu0 0.0
    %4127 = vmatprep.subr.mxu0 0.0
    %4128 = vmatpush1.msra.mxu0 0.0
    %4129 = vmatprep.subr.mxu0 0.0
    %4130 = vmatpush1.msra.mxu0 0.0
    %4131 = vmatprep.subr.mxu0 0.0
    %4132 = vmatpush1.msra.mxu0 0.0
    %4133 = vmatprep.subr.mxu0 0.0
    %4134 = vmatpush1.msra.mxu0 0.0
    %4135 = vmatprep.subr.mxu0 0.0
    %4136 = vmatpush1.msra.mxu0 %v4100
    %4137 = vmatprep.subr.mxu0 0.0
    %4138 = vmatpush1.msra.mxu0 %v4099
    %4139 = vmatprep.subr.mxu0 0.0
    %4140 = vmatpush1.msra.mxu0 %v4098
    %4141 = vmatprep.subr.mxu0 0.0
    %4142 = vmatpush1.msra.mxu0 %v4097
    %4143 = vmatprep.subr.mxu0 0.0
    %4144 = vmatpush2.msra.mxu0 0.0
    %4145 = vmatprep.subr.mxu0 0.0
    %4146 = vmatpush2.msra.mxu0 0.0
    %4147 = vmatprep.subr.mxu0 0.0
    %4148 = vmatpush2.msra.mxu0 0.0
    %4149 = vmatprep.subr.mxu0 0.0
    %4150 = vmatpush2.msra.mxu0 0.0
    %4151 = vmatprep.subr.mxu0 0.0
    %4152 = vmatpush2.msra.mxu0 0.0
    %4153 = vmatprep.subr.mxu0 0.0
    %4154 = vmatpush2.msra.mxu0 0.0
    %4155 = vmatprep.subr.mxu0 0.0
    %4156 = vmatpush2.msra.mxu0 0.0
    %4157 = vmatprep.subr.mxu0 0.0
    %4158 = vmatpush2.msra.mxu0 0.0
    %4159 = vmatprep.subr.mxu0 0.0
    %4160 = vmatpush2.msra.mxu0 0.0
    %4161 = vmatprep.subr.mxu0 0.0
    %4162 = vmatpush2.msra.mxu0 0.0
    %4163 = vmatprep.subr.mxu0 0.0
    %4164 = vmatpush2.msra.mxu0 0.0
    %4165 = vmatprep.subr.mxu0 0.0
    %4166 = vmatpush2.msra.mxu0 0.0
    %4167 = vmatprep.subr.mxu0 0.0
    %4168 = vmatpush2.msra.mxu0 0.0
    %4169 = vmatprep.subr.mxu0 0.0
    %4170 = vmatpush2.msra.mxu0 0.0
    %4171 = vmatprep.subr.mxu0 0.0
    %4172 = vmatpush2.msra.mxu0 0.0
    %4173 = vmatprep.subr.mxu0 0.0
    %4174 = vmatpush2.msra.mxu0 0.0
    %4175 = vmatprep.mubr.f32.mxu0 0.0
    %4176 = vmatmul.mubr.f32.gmra.mxu0 %v4109
    %v4177 = vpop.f32.mrf.mxu0
    %v4178 = vadd.f32 %v4106, %v4177
    %v4179 = vpop.f32.mrf.mxu0
    %4180 = vdwg.mxu0
    %v4181 = vld [vmem:[%s15] sm:$0xff]
    %v4182 = vld [vmem:[%s15 + $0x8] sm:$0xff]
    %v4183 = vld [vmem:[%s15 + $0x10] sm:$0xff]
    %v4184 = vld [vmem:[%s15 + $0x18] sm:$0xff]
    %v4185 = vld [vmem:[%s15 + $0x20] sm:$0xff]
    %v4186 = vld [vmem:[%s15 + $0x28] sm:$0xff]
    %v4187 = vld [vmem:[#allocation3] sm:$0x1]
    %v4189 = vlaneseq
    %v4190 = vshrl.u32 %v4189, 7
    %v4191 = vsub.s32 0, %v4190
    %v4192 = vrot.slane %v4187, %v4191
    %v4195 = vsel %vm288, %v4178, 0
    %4197 = vmatprep.subr.mxu0 0.0
    %4198 = vmatpush1.msra.mxu0 0.0
    %4199 = vmatprep.subr.mxu0 0.0
    %4200 = vmatpush1.msra.mxu0 0.0
    %4201 = vmatprep.subr.mxu0 0.0
    %4202 = vmatpush1.msra.mxu0 0.0
    %4203 = vmatprep.subr.mxu0 0.0
    %4204 = vmatpush1.msra.mxu0 0.0
    %4205 = vmatprep.subr.mxu0 0.0
    %4206 = vmatpush1.msra.mxu0 0.0
    %4207 = vmatprep.subr.mxu0 0.0
    %4208 = vmatpush1.msra.mxu0 0.0
    %4209 = vmatprep.subr.mxu0 0.0
    %4210 = vmatpush1.msra.mxu0 0.0
    %4211 = vmatprep.subr.mxu0 0.0
    %4212 = vmatpush1.msra.mxu0 0.0
    %4213 = vmatprep.subr.mxu0 0.0
    %4214 = vmatpush1.msra.mxu0 0.0
    %4215 = vmatprep.subr.mxu0 0.0
    %4216 = vmatpush1.msra.mxu0 0.0
    %4217 = vmatprep.subr.mxu0 0.0
    %4218 = vmatpush1.msra.mxu0 %v4186
    %4219 = vmatprep.subr.mxu0 0.0
    %4220 = vmatpush1.msra.mxu0 %v4185
    %4221 = vmatprep.subr.mxu0 0.0
    %4222 = vmatpush1.msra.mxu0 %v4184
    %4223 = vmatprep.subr.mxu0 0.0
    %4224 = vmatpush1.msra.mxu0 %v4183
    %4225 = vmatprep.subr.mxu0 0.0
    %4226 = vmatpush1.msra.mxu0 %v4182
    %4227 = vmatprep.subr.mxu0 0.0
    %4228 = vmatpush1.msra.mxu0 %v4181
    %4229 = vmatprep.subr.mxu0 0.0
    %4230 = vmatpush2.msra.mxu0 0.0
    %4231 = vmatprep.subr.mxu0 0.0
    %4232 = vmatpush2.msra.mxu0 0.0
    %4233 = vmatprep.subr.mxu0 0.0
    %4234 = vmatpush2.msra.mxu0 0.0
    %4235 = vmatprep.subr.mxu0 0.0
    %4236 = vmatpush2.msra.mxu0 0.0
    %4237 = vmatprep.subr.mxu0 0.0
    %4238 = vmatpush2.msra.mxu0 0.0
    %4239 = vmatprep.subr.mxu0 0.0
    %4240 = vmatpush2.msra.mxu0 0.0
    %4241 = vmatprep.subr.mxu0 0.0
    %4242 = vmatpush2.msra.mxu0 0.0
    %4243 = vmatprep.subr.mxu0 0.0
    %4244 = vmatpush2.msra.mxu0 0.0
    %4245 = vmatprep.subr.mxu0 0.0
    %4246 = vmatpush2.msra.mxu0 0.0
    %4247 = vmatprep.subr.mxu0 0.0
    %4248 = vmatpush2.msra.mxu0 0.0
    %4249 = vmatprep.subr.mxu0 0.0
    %4250 = vmatpush2.msra.mxu0 0.0
    %4251 = vmatprep.subr.mxu0 0.0
    %4252 = vmatpush2.msra.mxu0 0.0
    %4253 = vmatprep.subr.mxu0 0.0
    %4254 = vmatpush2.msra.mxu0 0.0
    %4255 = vmatprep.subr.mxu0 0.0
    %4256 = vmatpush2.msra.mxu0 0.0
    %4257 = vmatprep.subr.mxu0 0.0
    %4258 = vmatpush2.msra.mxu0 0.0
    %4259 = vmatprep.subr.mxu0 0.0
    %4260 = vmatpush2.msra.mxu0 0.0
    %4261 = vmatprep.mubr.f32.mxu0 0.0
    %4262 = vmatmul.mubr.f32.gmra.mxu0 %v4195
    %v4263 = vpop.f32.mrf.mxu0
    %v4264 = vadd.f32 %v4192, %v4263
    %v4265 = vpop.f32.mrf.mxu0
    %4266 = vdwg.mxu0
    %v4267 = vld [vmem:[%s17] sm:$0xff]
    %v4268 = vld [vmem:[%s17 + $0x8] sm:$0xff]
    %v4269 = vld [vmem:[%s17 + $0x10] sm:$0xff]
    %v4270 = vld [vmem:[%s17 + $0x18] sm:$0xff]
    %v4271 = vld [vmem:[%s17 + $0x20] sm:$0xff]
    %v4272 = vld [vmem:[%s17 + $0x28] sm:$0xff]
    %v4273 = vld [vmem:[%s17 + $0x30] sm:$0xff]
    %v4274 = vld [vmem:[%s17 + $0x38] sm:$0xff]
    %v4275 = vld [vmem:[#allocation5] sm:$0x1]
    %v4277 = vlaneseq
    %v4278 = vshrl.u32 %v4277, 7
    %v4279 = vsub.s32 0, %v4278
    %v4280 = vrot.slane %v4275, %v4279
    %v4283 = vsel %vm193, %v4264, 0
    %4285 = vmatprep.subr.mxu0 0.0
    %4286 = vmatpush1.msra.mxu0 0.0
    %4287 = vmatprep.subr.mxu0 0.0
    %4288 = vmatpush1.msra.mxu0 0.0
    %4289 = vmatprep.subr.mxu0 0.0
    %4290 = vmatpush1.msra.mxu0 0.0
    %4291 = vmatprep.subr.mxu0 0.0
    %4292 = vmatpush1.msra.mxu0 0.0
    %4293 = vmatprep.subr.mxu0 0.0
    %4294 = vmatpush1.msra.mxu0 0.0
    %4295 = vmatprep.subr.mxu0 0.0
    %4296 = vmatpush1.msra.mxu0 0.0
    %4297 = vmatprep.subr.mxu0 0.0
    %4298 = vmatpush1.msra.mxu0 0.0
    %4299 = vmatprep.subr.mxu0 0.0
    %4300 = vmatpush1.msra.mxu0 0.0
    %4301 = vmatprep.subr.mxu0 0.0
    %4302 = vmatpush1.msra.mxu0 %v4274
    %4303 = vmatprep.subr.mxu0 0.0
    %4304 = vmatpush1.msra.mxu0 %v4273
    %4305 = vmatprep.subr.mxu0 0.0
    %4306 = vmatpush1.msra.mxu0 %v4272
    %4307 = vmatprep.subr.mxu0 0.0
    %4308 = vmatpush1.msra.mxu0 %v4271
    %4309 = vmatprep.subr.mxu0 0.0
    %4310 = vmatpush1.msra.mxu0 %v4270
    %4311 = vmatprep.subr.mxu0 0.0
    %4312 = vmatpush1.msra.mxu0 %v4269
    %4313 = vmatprep.subr.mxu0 0.0
    %4314 = vmatpush1.msra.mxu0 %v4268
    %4315 = vmatprep.subr.mxu0 0.0
    %4316 = vmatpush1.msra.mxu0 %v4267
    %4317 = vmatprep.subr.mxu0 0.0
    %4318 = vmatpush2.msra.mxu0 0.0
    %4319 = vmatprep.subr.mxu0 0.0
    %4320 = vmatpush2.msra.mxu0 0.0
    %4321 = vmatprep.subr.mxu0 0.0
    %4322 = vmatpush2.msra.mxu0 0.0
    %4323 = vmatprep.subr.mxu0 0.0
    %4324 = vmatpush2.msra.mxu0 0.0
    %4325 = vmatprep.subr.mxu0 0.0
    %4326 = vmatpush2.msra.mxu0 0.0
    %4327 = vmatprep.subr.mxu0 0.0
    %4328 = vmatpush2.msra.mxu0 0.0
    %4329 = vmatprep.subr.mxu0 0.0
    %4330 = vmatpush2.msra.mxu0 0.0
    %4331 = vmatprep.subr.mxu0 0.0
    %4332 = vmatpush2.msra.mxu0 0.0
    %4333 = vmatprep.subr.mxu0 0.0
    %4334 = vmatpush2.msra.mxu0 0.0
    %4335 = vmatprep.subr.mxu0 0.0
    %4336 = vmatpush2.msra.mxu0 0.0
    %4337 = vmatprep.subr.mxu0 0.0
    %4338 = vmatpush2.msra.mxu0 0.0
    %4339 = vmatprep.subr.mxu0 0.0
    %4340 = vmatpush2.msra.mxu0 0.0
    %4341 = vmatprep.subr.mxu0 0.0
    %4342 = vmatpush2.msra.mxu0 0.0
    %4343 = vmatprep.subr.mxu0 0.0
    %4344 = vmatpush2.msra.mxu0 0.0
    %4345 = vmatprep.subr.mxu0 0.0
    %4346 = vmatpush2.msra.mxu0 0.0
    %4347 = vmatprep.subr.mxu0 0.0
    %4348 = vmatpush2.msra.mxu0 0.0
    %4349 = vmatprep.mubr.f32.mxu0 0.0
    %4350 = vmatmul.mubr.f32.gmra.mxu0 %v4283
    %v4351 = vpop.f32.mrf.mxu0
    %v4352 = vadd.f32 %v4280, %v4351
    %v4353 = vpop.f32.mrf.mxu0
    %4354 = vdwg.mxu0
    %4355 = vst.msk [vmem:[%s19] sm:$0xff] %vm96, %v4352
    // Predicated region
    $region86: #{fclstm_bnode_forward.1} parent=1 // pred_check
      _
    $region87: #{fclstm_bnode_forward.1} parent=1 // pred_check_branch
      %4357 = sbr.rel (0) target = $region89
    $region88: #{fclstm_bnode_forward.1} parent=1 // pred_region
      _
    $region89: #{fclstm_bnode_forward.1} parent=1 // pred_fallthru
      _
    // Predicated region
    $region90: #{fclstm_bnode_forward.1} parent=1 // pred_check
      _
    $region91: #{fclstm_bnode_forward.1} parent=1 // pred_check_branch
      %4359 = sbr.rel (0) target = $region93
    $region92: #{fclstm_bnode_forward.1} parent=1 // pred_region
      _
    $region93: #{fclstm_bnode_forward.1} parent=1 // pred_fallthru
      _
    %4360 = vsyncpa [#allocation4], 1
    %4361 = vsyncpa [#allocation6], 1

</llo_original>
